<compile_context>
chip_gen: v7x
topology: tpu7x:2x2x1
jax: 0.10.0
libtpu: 0.0.40
codegen_flags: <defaults>
</compile_context>

<pallas_src>
import jax
import jax.numpy as jnp
from jax import lax
from jax.experimental import pallas as pl
from jax.experimental.pallas import tpu as pltpu

B = 2                     # batch
H = W = 28                # spatial (implied by fc = Linear(14*14*32, 10))
KH = KW = 5
CIN, COUT = 1, 32
PW = W + KW - 1           # 32 padded width
POOL_H = POOL_W = 14
POOL_COLS = POOL_W * COUT # 448 dense pooled lanes per row
K_CONV = KH * PW          # 160: stacked conv contraction depth
N_CONV = W * COUT         # 896 conv output lanes
NCLS = 10
NPAD = 128                # lane-dense fc output width
EPS = 1e-5


# ----------------------------- fused Pallas kernel ---------------------------

def make_kernel(bt):
    rows_half = POOL_H * bt          # rows per h-parity group (= pooled rows per step)

    def fused_cnn_kernel(xs_ref, band_ref, shift_ref, wrow_ref, bias_ref, o_ref,
                         conv_ref, pool_ref):
        # xs_ref:    (2*14*bt, 160) bf16  rows ordered (h-parity, pooled-row i, image b)
        # band_ref:  (160, 896)     bf16  banded conv weights, BN scale folded,
        #                                 columns = (even-w | odd-w) * 32 channels
        # shift_ref: (1, 896)       f32   folded BN shift (conv bias absorbed)
        # wrow_ref:  (14, 448, 128) bf16  per-pooled-row fc weights (dense lanes)
        # bias_ref:  (1, 128)       f32   fc bias, zero padded
        # o_ref:     (bt, 128)      f32   lane-dense logits
        # conv_ref:  (2*14*bt, 896) f32   scratch: conv+BN+ReLU activation
        # pool_ref:  (14*bt, 448)   bf16  scratch: dense pooled activation

        # ---- conv: ONE K=160 bf16 MXU matmul, f32 accumulate; +shift, ReLU ----
        conv = jnp.dot(xs_ref[...], band_ref[...],
                       preferred_element_type=jnp.float32)          # (2*14*bt, 896)
        conv_ref[...] = jnp.maximum(conv + shift_ref[...], 0.0)

        # ---- 2x2 max-pool, all in bulk ----
        # h-pairs: top half of the scratch holds even h, bottom half odd h.
        hmax = jnp.maximum(conv_ref[pl.ds(0, rows_half), :],
                           conv_ref[pl.ds(rows_half, rows_half), :])  # (14*bt, 896)
        # w-pairs: even-w columns live in lanes [0,448), odd-w in [448,896).
        pool_ref[...] = jnp.maximum(hmax[:, :POOL_COLS],
                                    hmax[:, POOL_COLS:]).astype(jnp.bfloat16)

        # ---- fc: 14 matmuls with M=bt, K=448 (dense), N=128; f32 accumulate ----
        acc = jnp.zeros((bt, NPAD), jnp.float32)
        for i in range(POOL_H):
            lhs = pool_ref[pl.ds(i * bt, bt), :]                     # (bt, 448) bf16
            acc = acc + jnp.dot(lhs, wrow_ref[i],
                                preferred_element_type=jnp.float32)  # (bt, 128)
        o_ref[...] = acc + bias_ref[...]

    return fused_cnn_kernel


# --------------------- one-time parameter preprocessing ----------------------

def prepare_params(conv_w, conv_b, bn_gamma, bn_beta, bn_mean, bn_var,
                   fc_w, fc_b):
    """Hoisted out of the jitted forward (runs once)."""
    scale = bn_gamma / jnp.sqrt(bn_var + EPS)                      # (32,)
    shift = bn_beta + scale * (conv_b - bn_mean)                   # (32,)

    # Scaled conv taps, [c, dh, dw].
    wk = conv_w[:, 0].astype(jnp.float32) * scale[:, None, None]   # (32, 5, 5)

    # Banded weight band4[dh, w_in, w_out, c] = wk[c, dh, w_in - w_out] (0<=dw<5).
    dw_i = jnp.arange(KW)[:, None, None]
    win_i = jnp.arange(PW)[None, :, None]
    wout_i = jnp.arange(W)[None, None, :]
    sel = (win_i == wout_i + dw_i).astype(jnp.float32)             # (5, 32, 28)
    band4 = jnp.einsum("kiw,cdk->diwc", sel, wk)                   # (5, 32, 28, 32)
    # Split output columns into (even w | odd w) so the w-pool is a dense 448-lane max.
    perm = jnp.concatenate([jnp.arange(0, W, 2), jnp.arange(1, W, 2)])
    band4 = band4[:, :, perm, :]
    band = band4.reshape(K_CONV, N_CONV).astype(jnp.bfloat16)      # (160, 896)

    shift_row = jnp.tile(shift, W).reshape(1, N_CONV).astype(jnp.float32)

    # fc weight: PyTorch (10, 6272) expects CHW flattening of the pooled map.
    # Re-index to [pooled_row i][lane j*32+c][n], pad n -> 128.  No junk lanes.
    w4 = fc_w.reshape(NCLS, COUT, POOL_H, POOL_W)                  # [n, c, i, j]
    w4 = jnp.transpose(w4, (2, 3, 1, 0))                           # [i, j, c, n]
    w4 = jnp.pad(w4, ((0, 0), (0, 0), (0, 0), (0, NPAD - NCLS)))   # (14, 14, 32, 128)
    wrow = w4.reshape(POOL_H, POOL_COLS, NPAD).astype(jnp.bfloat16)  # (14, 448, 128)

    bias_row = jnp.pad(fc_b, (0, NPAD - NCLS)).reshape(1, NPAD).astype(jnp.float32)
    return band, shift_row, wrow, bias_row


# --------------------------------- wrapper -----------------------------------

@jax.jit
def cnn_forward(x, band, shift_row, wrow, bias_row):
    """x: (B, 1, 28, 28) float32 (NCHW, like PyTorch). Returns (B, 10)."""
    b = x.shape[0]
    bt = b if b <= 8 else 8                   # images per grid step
    b_pad = ((b + bt - 1) // bt) * bt
    steps = b_pad // bt

    # Pad spatially, stack the 5 shifted row-windows along lanes (K=160), and order
    # rows as (step, h-parity, pooled-row i, image) so the kernel's pool is two
    # contiguous bulk maxes.  Pure layout plumbing on a tiny array.
    xp = jnp.pad(x[:, 0], ((0, b_pad - b), (2, 2), (2, 2)))              # (b_pad,32,32)
    xs = jnp.concatenate([xp[:, dh:dh + H, :] for dh in range(KH)], axis=-1)  # (b_pad,28,160)
    xs = xs.reshape(steps, bt, POOL_H, 2, K_CONV)                        # h = 2*i + parity
    xs = jnp.transpose(xs, (0, 3, 2, 1, 4))                              # (step,parity,i,b,160)
    xs = xs.reshape(steps * 2 * POOL_H * bt, K_CONV).astype(jnp.bfloat16)

    rows_step = 2 * POOL_H * bt

    out_pad = pl.pallas_call(
        make_kernel(bt),
        out_shape=jax.ShapeDtypeStruct((b_pad, NPAD), jnp.float32),
        grid=(steps,),
        in_specs=[
            pl.BlockSpec((rows_step, K_CONV), lambda s: (s, 0)),          # stacked image rows
            pl.BlockSpec((K_CONV, N_CONV), lambda s: (0, 0)),             # conv band weights
            pl.BlockSpec((1, N_CONV), lambda s: (0, 0)),                  # BN shift
            pl.BlockSpec((POOL_H, POOL_COLS, NPAD), lambda s: (0, 0, 0)), # fc weights
            pl.BlockSpec((1, NPAD), lambda s: (0, 0)),                    # fc bias
        ],
        out_specs=pl.BlockSpec((bt, NPAD), lambda s: (s, 0)),
        scratch_shapes=[
            pltpu.VMEM((rows_step, N_CONV), jnp.float32),                 # conv activation
            pltpu.VMEM((POOL_H * bt, POOL_COLS), jnp.bfloat16),           # pooled activation
        ],
        compiler_params=pltpu.CompilerParams(
            # Single step at tiny batch: no megacore split -> weights DMA'd once.
            dimension_semantics=("parallel",) if steps > 1 else ("arbitrary",),
        ),
    )(xs, band, shift_row, wrow, bias_row)

    return out_pad[:b, :NCLS]


# ----------------------------- pure-JAX reference ----------------------------

def reference_forward(x, conv_w, conv_b, bn_gamma, bn_beta, bn_mean, bn_var,
                      fc_w, fc_b):
    conv = lax.conv_general_dilated(
        x, conv_w, window_strides=(1, 1), padding=((2, 2), (2, 2)),
        dimension_numbers=("NCHW", "OIHW", "NCHW"))
    conv = conv + conv_b[None, :, None, None]
    bn = (bn_gamma[None, :, None, None]
          * (conv - bn_mean[None, :, None, None])
          / jnp.sqrt(bn_var + EPS)[None, :, None, None]
          + bn_beta[None, :, None, None])
    act = jnp.maximum(bn, 0.0)
    pooled = lax.reduce_window(act, -jnp.inf, lax.max,
                               (1, 1, 2, 2), (1, 1, 2, 2), "VALID")
    flat = pooled.reshape(x.shape[0], -1)            # CHW flatten (PyTorch .view)
    return flat @ fc_w.T + fc_b


# ----------------------------------- main ------------------------------------

if __name__ == "__main__":
    key = jax.random.PRNGKey(0)
    ks = jax.random.split(key, 9)

    x = jax.random.normal(ks[0], (B, CIN, H, W), dtype=jnp.float32)

    conv_w = 0.1 * jax.random.normal(ks[1], (COUT, CIN, KH, KW), jnp.float32)
    conv_b = 0.1 * jax.random.normal(ks[2], (COUT,), jnp.float32)
    bn_gamma = 1.0 + 0.1 * jax.random.normal(ks[3], (COUT,), jnp.float32)
    bn_beta = 0.1 * jax.random.normal(ks[4], (COUT,), jnp.float32)
    bn_mean = 0.1 * jax.random.normal(ks[5], (COUT,), jnp.float32)
    bn_var = jax.random.uniform(ks[6], (COUT,), jnp.float32, 0.5, 1.5)
    fc_w = 0.02 * jax.random.normal(ks[7], (NCLS, POOL_H * POOL_W * COUT), jnp.float32)
    fc_b = 0.02 * jax.random.normal(ks[8], (NCLS,), jnp.float32)

    params = (conv_w, conv_b, bn_gamma, bn_beta, bn_mean, bn_var, fc_w, fc_b)

    fused_params = prepare_params(*params)           # one-time weight prep
    out = cnn_forward(x, *fused_params)
    out = jax.block_until_ready(out)

    ref = reference_forward(x, *params)
    assert out.shape == (B, NCLS)
    max_err = jnp.max(jnp.abs(out - ref))
    assert jnp.allclose(out, ref, atol=1e-2, rtol=1e-2), (
        f"mismatch: max abs err {max_err}")

    print("KERNEL_OK")
</pallas_src>

<mosaic_0001>
module attributes {stable_mosaic.version = 11 : i64} {
  func.func @fused_cnn_kernel(%arg0: i32, %arg1: memref<56x160xbf16, #tpu.memory_space<vmem>>, %arg2: memref<160x896xbf16, #tpu.memory_space<vmem>>, %arg3: memref<1x896xf32, #tpu.memory_space<vmem>>, %arg4: memref<14x448x128xbf16, #tpu.memory_space<vmem>>, %arg5: memref<1x128xf32, #tpu.memory_space<vmem>>, %arg6: memref<2x128xf32, #tpu.memory_space<vmem>>, %arg7: memref<56x896xf32, #tpu.memory_space<vmem>>, %arg8: memref<28x448xbf16, #tpu.memory_space<vmem>>) attributes {dimension_semantics = [#tpu.dimension_semantics<arbitrary>], iteration_bounds = array<i64: 1>, scalar_prefetch = 0 : i64, scratch_operands = 2 : i64, tpu.core_type = #tpu.core_type<tc>, window_params = [{transform_indices = @transform_0, window_bounds = array<i64: 56, 160>}, {pipeline_mode = #tpu.pipeline_mode<synchronous>, transform_indices = @transform_1, window_bounds = array<i64: 160, 896>}, {pipeline_mode = #tpu.pipeline_mode<synchronous>, transform_indices = @transform_2, window_bounds = array<i64: 1, 896>}, {pipeline_mode = #tpu.pipeline_mode<synchronous>, transform_indices = @transform_3, window_bounds = array<i64: 14, 448, 128>}, {pipeline_mode = #tpu.pipeline_mode<synchronous>, transform_indices = @transform_4, window_bounds = array<i64: 1, 128>}, {transform_indices = @transform_5, window_bounds = array<i64: 2, 128>}]} {
    %c0 = arith.constant 0 : index
    %c0_0 = arith.constant 0 : index
    %0 = vector.load %arg1[%c0, %c0_0] : memref<56x160xbf16, #tpu.memory_space<vmem>>, vector<56x160xbf16>
    %c0_1 = arith.constant 0 : index
    %c0_2 = arith.constant 0 : index
    %1 = vector.load %arg2[%c0_1, %c0_2] : memref<160x896xbf16, #tpu.memory_space<vmem>>, vector<160x896xbf16>
    %cst = arith.constant dense<0.000000e+00> : vector<56x896xf32>
    %2 = tpu.matmul %0, %1, %cst {dimension_numbers = #tpu.dot_dimension_numbers<[1], [0], [0], [1], [0, 0, 1, 1], [], []>} : vector<56x160xbf16>, vector<160x896xbf16>, vector<56x896xf32> -> vector<56x896xf32>
    %c0_3 = arith.constant 0 : index
    %c0_4 = arith.constant 0 : index
    %3 = vector.load %arg3[%c0_3, %c0_4] : memref<1x896xf32, #tpu.memory_space<vmem>>, vector<1x896xf32>
    %4 = vector.broadcast %3 : vector<1x896xf32> to vector<56x896xf32>
    %5 = arith.addf %2, %4 : vector<56x896xf32>
    %cst_5 = arith.constant 0.000000e+00 : f32
    %6 = vector.broadcast %cst_5 : f32 to vector<56x896xf32>
    %7 = arith.maximumf %5, %6 : vector<56x896xf32>
    %c0_6 = arith.constant 0 : index
    %c0_7 = arith.constant 0 : index
    %8 = vector.load %arg7[%c0_6, %c0_7] : memref<56x896xf32, #tpu.memory_space<vmem>>, vector<56x896xf32>
    tpu.vector_store %arg7[%c0_6, %c0_7], %7 {strides = array<i32>} : memref<56x896xf32, #tpu.memory_space<vmem>>, vector<56x896xf32>,
    %c0_8 = arith.constant 0 : index
    %c0_9 = arith.constant 0 : index
    %9 = vector.load %arg7[%c0_8, %c0_9] : memref<56x896xf32, #tpu.memory_space<vmem>>, vector<28x896xf32>
    %c28 = arith.constant 28 : index
    %c0_10 = arith.constant 0 : index
    %10 = vector.load %arg7[%c28, %c0_10] : memref<56x896xf32, #tpu.memory_space<vmem>>, vector<28x896xf32>
    %11 = arith.maximumf %9, %10 : vector<28x896xf32>
    %12 = vector.extract_strided_slice %11 {offsets = [0, 0], sizes = [28, 448], strides = [1, 1]} : vector<28x896xf32> to vector<28x448xf32>
    %13 = vector.extract_strided_slice %11 {offsets = [0, 448], sizes = [28, 448], strides = [1, 1]} : vector<28x896xf32> to vector<28x448xf32>
    %14 = arith.maximumf %12, %13 : vector<28x448xf32>
    %15 = arith.truncf %14 : vector<28x448xf32> to vector<28x448xbf16>
    %c0_11 = arith.constant 0 : index
    %c0_12 = arith.constant 0 : index
    %16 = vector.load %arg8[%c0_11, %c0_12] : memref<28x448xbf16, #tpu.memory_space<vmem>>, vector<28x448xbf16>
    tpu.vector_store %arg8[%c0_11, %c0_12], %15 {strides = array<i32>} : memref<28x448xbf16, #tpu.memory_space<vmem>>, vector<28x448xbf16>,
    %cst_13 = arith.constant 0.000000e+00 : f32
    %17 = vector.broadcast %cst_13 : f32 to vector<2x128xf32>
    %c0_14 = arith.constant 0 : index
    %c0_15 = arith.constant 0 : index
    %18 = vector.load %arg8[%c0_14, %c0_15] : memref<28x448xbf16, #tpu.memory_space<vmem>>, vector<2x448xbf16>
    %c0_16 = arith.constant 0 : index
    %c0_17 = arith.constant 0 : index
    %c0_18 = arith.constant 0 : index
    %19 = vector.load %arg4[%c0_16, %c0_17, %c0_18] : memref<14x448x128xbf16, #tpu.memory_space<vmem>>, vector<1x448x128xbf16>
    %20 = vector.shape_cast %19 : vector<1x448x128xbf16> to vector<448x128xbf16>
    %cst_19 = arith.constant dense<0.000000e+00> : vector<2x128xf32>
    %21 = tpu.matmul %18, %20, %cst_19 {dimension_numbers = #tpu.dot_dimension_numbers<[1], [0], [0], [1], [0, 0, 1, 1], [], []>} : vector<2x448xbf16>, vector<448x128xbf16>, vector<2x128xf32> -> vector<2x128xf32>
    %22 = arith.addf %17, %21 : vector<2x128xf32>
    %c2 = arith.constant 2 : index
    %c0_20 = arith.constant 0 : index
    %23 = vector.load %arg8[%c2, %c0_20] : memref<28x448xbf16, #tpu.memory_space<vmem>>, vector<2x448xbf16>
    %c1 = arith.constant 1 : index
    %c0_21 = arith.constant 0 : index
    %c0_22 = arith.constant 0 : index
    %24 = vector.load %arg4[%c1, %c0_21, %c0_22] : memref<14x448x128xbf16, #tpu.memory_space<vmem>>, vector<1x448x128xbf16>
    %25 = vector.shape_cast %24 : vector<1x448x128xbf16> to vector<448x128xbf16>
    %cst_23 = arith.constant dense<0.000000e+00> : vector<2x128xf32>
    %26 = tpu.matmul %23, %25, %cst_23 {dimension_numbers = #tpu.dot_dimension_numbers<[1], [0], [0], [1], [0, 0, 1, 1], [], []>} : vector<2x448xbf16>, vector<448x128xbf16>, vector<2x128xf32> -> vector<2x128xf32>
    %27 = arith.addf %22, %26 : vector<2x128xf32>
    %c4 = arith.constant 4 : index
    %c0_24 = arith.constant 0 : index
    %28 = vector.load %arg8[%c4, %c0_24] : memref<28x448xbf16, #tpu.memory_space<vmem>>, vector<2x448xbf16>
    %c2_25 = arith.constant 2 : index
    %c0_26 = arith.constant 0 : index
    %c0_27 = arith.constant 0 : index
    %29 = vector.load %arg4[%c2_25, %c0_26, %c0_27] : memref<14x448x128xbf16, #tpu.memory_space<vmem>>, vector<1x448x128xbf16>
    %30 = vector.shape_cast %29 : vector<1x448x128xbf16> to vector<448x128xbf16>
    %cst_28 = arith.constant dense<0.000000e+00> : vector<2x128xf32>
    %31 = tpu.matmul %28, %30, %cst_28 {dimension_numbers = #tpu.dot_dimension_numbers<[1], [0], [0], [1], [0, 0, 1, 1], [], []>} : vector<2x448xbf16>, vector<448x128xbf16>, vector<2x128xf32> -> vector<2x128xf32>
    %32 = arith.addf %27, %31 : vector<2x128xf32>
    %c6 = arith.constant 6 : index
    %c0_29 = arith.constant 0 : index
    %33 = vector.load %arg8[%c6, %c0_29] : memref<28x448xbf16, #tpu.memory_space<vmem>>, vector<2x448xbf16>
    %c3 = arith.constant 3 : index
    %c0_30 = arith.constant 0 : index
    %c0_31 = arith.constant 0 : index
    %34 = vector.load %arg4[%c3, %c0_30, %c0_31] : memref<14x448x128xbf16, #tpu.memory_space<vmem>>, vector<1x448x128xbf16>
    %35 = vector.shape_cast %34 : vector<1x448x128xbf16> to vector<448x128xbf16>
    %cst_32 = arith.constant dense<0.000000e+00> : vector<2x128xf32>
    %36 = tpu.matmul %33, %35, %cst_32 {dimension_numbers = #tpu.dot_dimension_numbers<[1], [0], [0], [1], [0, 0, 1, 1], [], []>} : vector<2x448xbf16>, vector<448x128xbf16>, vector<2x128xf32> -> vector<2x128xf32>
    %37 = arith.addf %32, %36 : vector<2x128xf32>
    %c8 = arith.constant 8 : index
    %c0_33 = arith.constant 0 : index
    %38 = vector.load %arg8[%c8, %c0_33] : memref<28x448xbf16, #tpu.memory_space<vmem>>, vector<2x448xbf16>
    %c4_34 = arith.constant 4 : index
    %c0_35 = arith.constant 0 : index
    %c0_36 = arith.constant 0 : index
    %39 = vector.load %arg4[%c4_34, %c0_35, %c0_36] : memref<14x448x128xbf16, #tpu.memory_space<vmem>>, vector<1x448x128xbf16>
    %40 = vector.shape_cast %39 : vector<1x448x128xbf16> to vector<448x128xbf16>
    %cst_37 = arith.constant dense<0.000000e+00> : vector<2x128xf32>
    %41 = tpu.matmul %38, %40, %cst_37 {dimension_numbers = #tpu.dot_dimension_numbers<[1], [0], [0], [1], [0, 0, 1, 1], [], []>} : vector<2x448xbf16>, vector<448x128xbf16>, vector<2x128xf32> -> vector<2x128xf32>
    %42 = arith.addf %37, %41 : vector<2x128xf32>
    %c10 = arith.constant 10 : index
    %c0_38 = arith.constant 0 : index
    %43 = vector.load %arg8[%c10, %c0_38] : memref<28x448xbf16, #tpu.memory_space<vmem>>, vector<2x448xbf16>
    %c5 = arith.constant 5 : index
    %c0_39 = arith.constant 0 : index
    %c0_40 = arith.constant 0 : index
    %44 = vector.load %arg4[%c5, %c0_39, %c0_40] : memref<14x448x128xbf16, #tpu.memory_space<vmem>>, vector<1x448x128xbf16>
    %45 = vector.shape_cast %44 : vector<1x448x128xbf16> to vector<448x128xbf16>
    %cst_41 = arith.constant dense<0.000000e+00> : vector<2x128xf32>
    %46 = tpu.matmul %43, %45, %cst_41 {dimension_numbers = #tpu.dot_dimension_numbers<[1], [0], [0], [1], [0, 0, 1, 1], [], []>} : vector<2x448xbf16>, vector<448x128xbf16>, vector<2x128xf32> -> vector<2x128xf32>
    %47 = arith.addf %42, %46 : vector<2x128xf32>
    %c12 = arith.constant 12 : index
    %c0_42 = arith.constant 0 : index
    %48 = vector.load %arg8[%c12, %c0_42] : memref<28x448xbf16, #tpu.memory_space<vmem>>, vector<2x448xbf16>
    %c6_43 = arith.constant 6 : index
    %c0_44 = arith.constant 0 : index
    %c0_45 = arith.constant 0 : index
    %49 = vector.load %arg4[%c6_43, %c0_44, %c0_45] : memref<14x448x128xbf16, #tpu.memory_space<vmem>>, vector<1x448x128xbf16>
    %50 = vector.shape_cast %49 : vector<1x448x128xbf16> to vector<448x128xbf16>
    %cst_46 = arith.constant dense<0.000000e+00> : vector<2x128xf32>
    %51 = tpu.matmul %48, %50, %cst_46 {dimension_numbers = #tpu.dot_dimension_numbers<[1], [0], [0], [1], [0, 0, 1, 1], [], []>} : vector<2x448xbf16>, vector<448x128xbf16>, vector<2x128xf32> -> vector<2x128xf32>
    %52 = arith.addf %47, %51 : vector<2x128xf32>
    %c14 = arith.constant 14 : index
    %c0_47 = arith.constant 0 : index
    %53 = vector.load %arg8[%c14, %c0_47] : memref<28x448xbf16, #tpu.memory_space<vmem>>, vector<2x448xbf16>
    %c7 = arith.constant 7 : index
    %c0_48 = arith.constant 0 : index
    %c0_49 = arith.constant 0 : index
    %54 = vector.load %arg4[%c7, %c0_48, %c0_49] : memref<14x448x128xbf16, #tpu.memory_space<vmem>>, vector<1x448x128xbf16>
    %55 = vector.shape_cast %54 : vector<1x448x128xbf16> to vector<448x128xbf16>
    %cst_50 = arith.constant dense<0.000000e+00> : vector<2x128xf32>
    %56 = tpu.matmul %53, %55, %cst_50 {dimension_numbers = #tpu.dot_dimension_numbers<[1], [0], [0], [1], [0, 0, 1, 1], [], []>} : vector<2x448xbf16>, vector<448x128xbf16>, vector<2x128xf32> -> vector<2x128xf32>
    %57 = arith.addf %52, %56 : vector<2x128xf32>
    %c16 = arith.constant 16 : index
    %c0_51 = arith.constant 0 : index
    %58 = vector.load %arg8[%c16, %c0_51] : memref<28x448xbf16, #tpu.memory_space<vmem>>, vector<2x448xbf16>
    %c8_52 = arith.constant 8 : index
    %c0_53 = arith.constant 0 : index
    %c0_54 = arith.constant 0 : index
    %59 = vector.load %arg4[%c8_52, %c0_53, %c0_54] : memref<14x448x128xbf16, #tpu.memory_space<vmem>>, vector<1x448x128xbf16>
    %60 = vector.shape_cast %59 : vector<1x448x128xbf16> to vector<448x128xbf16>
    %cst_55 = arith.constant dense<0.000000e+00> : vector<2x128xf32>
    %61 = tpu.matmul %58, %60, %cst_55 {dimension_numbers = #tpu.dot_dimension_numbers<[1], [0], [0], [1], [0, 0, 1, 1], [], []>} : vector<2x448xbf16>, vector<448x128xbf16>, vector<2x128xf32> -> vector<2x128xf32>
    %62 = arith.addf %57, %61 : vector<2x128xf32>
    %c18 = arith.constant 18 : index
    %c0_56 = arith.constant 0 : index
    %63 = vector.load %arg8[%c18, %c0_56] : memref<28x448xbf16, #tpu.memory_space<vmem>>, vector<2x448xbf16>
    %c9 = arith.constant 9 : index
    %c0_57 = arith.constant 0 : index
    %c0_58 = arith.constant 0 : index
    %64 = vector.load %arg4[%c9, %c0_57, %c0_58] : memref<14x448x128xbf16, #tpu.memory_space<vmem>>, vector<1x448x128xbf16>
    %65 = vector.shape_cast %64 : vector<1x448x128xbf16> to vector<448x128xbf16>
    %cst_59 = arith.constant dense<0.000000e+00> : vector<2x128xf32>
    %66 = tpu.matmul %63, %65, %cst_59 {dimension_numbers = #tpu.dot_dimension_numbers<[1], [0], [0], [1], [0, 0, 1, 1], [], []>} : vector<2x448xbf16>, vector<448x128xbf16>, vector<2x128xf32> -> vector<2x128xf32>
    %67 = arith.addf %62, %66 : vector<2x128xf32>
    %c20 = arith.constant 20 : index
    %c0_60 = arith.constant 0 : index
    %68 = vector.load %arg8[%c20, %c0_60] : memref<28x448xbf16, #tpu.memory_space<vmem>>, vector<2x448xbf16>
    %c10_61 = arith.constant 10 : index
    %c0_62 = arith.constant 0 : index
    %c0_63 = arith.constant 0 : index
    %69 = vector.load %arg4[%c10_61, %c0_62, %c0_63] : memref<14x448x128xbf16, #tpu.memory_space<vmem>>, vector<1x448x128xbf16>
    %70 = vector.shape_cast %69 : vector<1x448x128xbf16> to vector<448x128xbf16>
    %cst_64 = arith.constant dense<0.000000e+00> : vector<2x128xf32>
    %71 = tpu.matmul %68, %70, %cst_64 {dimension_numbers = #tpu.dot_dimension_numbers<[1], [0], [0], [1], [0, 0, 1, 1], [], []>} : vector<2x448xbf16>, vector<448x128xbf16>, vector<2x128xf32> -> vector<2x128xf32>
    %72 = arith.addf %67, %71 : vector<2x128xf32>
    %c22 = arith.constant 22 : index
    %c0_65 = arith.constant 0 : index
    %73 = vector.load %arg8[%c22, %c0_65] : memref<28x448xbf16, #tpu.memory_space<vmem>>, vector<2x448xbf16>
    %c11 = arith.constant 11 : index
    %c0_66 = arith.constant 0 : index
    %c0_67 = arith.constant 0 : index
    %74 = vector.load %arg4[%c11, %c0_66, %c0_67] : memref<14x448x128xbf16, #tpu.memory_space<vmem>>, vector<1x448x128xbf16>
    %75 = vector.shape_cast %74 : vector<1x448x128xbf16> to vector<448x128xbf16>
    %cst_68 = arith.constant dense<0.000000e+00> : vector<2x128xf32>
    %76 = tpu.matmul %73, %75, %cst_68 {dimension_numbers = #tpu.dot_dimension_numbers<[1], [0], [0], [1], [0, 0, 1, 1], [], []>} : vector<2x448xbf16>, vector<448x128xbf16>, vector<2x128xf32> -> vector<2x128xf32>
    %77 = arith.addf %72, %76 : vector<2x128xf32>
    %c24 = arith.constant 24 : index
    %c0_69 = arith.constant 0 : index
    %78 = vector.load %arg8[%c24, %c0_69] : memref<28x448xbf16, #tpu.memory_space<vmem>>, vector<2x448xbf16>
    %c12_70 = arith.constant 12 : index
    %c0_71 = arith.constant 0 : index
    %c0_72 = arith.constant 0 : index
    %79 = vector.load %arg4[%c12_70, %c0_71, %c0_72] : memref<14x448x128xbf16, #tpu.memory_space<vmem>>, vector<1x448x128xbf16>
    %80 = vector.shape_cast %79 : vector<1x448x128xbf16> to vector<448x128xbf16>
    %cst_73 = arith.constant dense<0.000000e+00> : vector<2x128xf32>
    %81 = tpu.matmul %78, %80, %cst_73 {dimension_numbers = #tpu.dot_dimension_numbers<[1], [0], [0], [1], [0, 0, 1, 1], [], []>} : vector<2x448xbf16>, vector<448x128xbf16>, vector<2x128xf32> -> vector<2x128xf32>
    %82 = arith.addf %77, %81 : vector<2x128xf32>
    %c26 = arith.constant 26 : index
    %c0_74 = arith.constant 0 : index
    %83 = vector.load %arg8[%c26, %c0_74] : memref<28x448xbf16, #tpu.memory_space<vmem>>, vector<2x448xbf16>
    %c13 = arith.constant 13 : index
    %c0_75 = arith.constant 0 : index
    %c0_76 = arith.constant 0 : index
    %84 = vector.load %arg4[%c13, %c0_75, %c0_76] : memref<14x448x128xbf16, #tpu.memory_space<vmem>>, vector<1x448x128xbf16>
    %85 = vector.shape_cast %84 : vector<1x448x128xbf16> to vector<448x128xbf16>
    %cst_77 = arith.constant dense<0.000000e+00> : vector<2x128xf32>
    %86 = tpu.matmul %83, %85, %cst_77 {dimension_numbers = #tpu.dot_dimension_numbers<[1], [0], [0], [1], [0, 0, 1, 1], [], []>} : vector<2x448xbf16>, vector<448x128xbf16>, vector<2x128xf32> -> vector<2x128xf32>
    %87 = arith.addf %82, %86 : vector<2x128xf32>
    %c0_78 = arith.constant 0 : index
    %c0_79 = arith.constant 0 : index
    %88 = vector.load %arg5[%c0_78, %c0_79] : memref<1x128xf32, #tpu.memory_space<vmem>>, vector<1x128xf32>
    %89 = vector.broadcast %88 : vector<1x128xf32> to vector<2x128xf32>
    %90 = arith.addf %87, %89 : vector<2x128xf32>
    %c0_80 = arith.constant 0 : index
    %c0_81 = arith.constant 0 : index
    %91 = vector.load %arg6[%c0_80, %c0_81] : memref<2x128xf32, #tpu.memory_space<vmem>>, vector<2x128xf32>
    tpu.vector_store %arg6[%c0_80, %c0_81], %90 {strides = array<i32>} : memref<2x128xf32, #tpu.memory_space<vmem>>, vector<2x128xf32>,
    return
  }
  func.func @transform_0(%arg0: i32) -> (i32, i32) {
    %c0_i32 = arith.constant 0 : i32
    %c0_i32_0 = arith.constant 0 : i32
    return %arg0, %c0_i32 : i32, i32
  }
  func.func @transform_1(%arg0: i32) -> (i32, i32) {
    %c0_i32 = arith.constant 0 : i32
    %c0_i32_0 = arith.constant 0 : i32
    %c0_i32_1 = arith.constant 0 : i32
    return %c0_i32, %c0_i32_0 : i32, i32
  }
  func.func @transform_2(%arg0: i32) -> (i32, i32) {
    %c0_i32 = arith.constant 0 : i32
    %c0_i32_0 = arith.constant 0 : i32
    %c0_i32_1 = arith.constant 0 : i32
    return %c0_i32, %c0_i32_0 : i32, i32
  }
  func.func @transform_3(%arg0: i32) -> (i32, i32, i32) {
    %c0_i32 = arith.constant 0 : i32
    %c0_i32_0 = arith.constant 0 : i32
    %c0_i32_1 = arith.constant 0 : i32
    %c0_i32_2 = arith.constant 0 : i32
    return %c0_i32, %c0_i32_0, %c0_i32_1 : i32, i32, i32
  }
  func.func @transform_4(%arg0: i32) -> (i32, i32) {
    %c0_i32 = arith.constant 0 : i32
    %c0_i32_0 = arith.constant 0 : i32
    %c0_i32_1 = arith.constant 0 : i32
    return %c0_i32, %c0_i32_0 : i32, i32
  }
  func.func @transform_5(%arg0: i32) -> (i32, i32) {
    %c0_i32 = arith.constant 0 : i32
    %c0_i32_0 = arith.constant 0 : i32
    return %arg0, %c0_i32 : i32, i32
  }
}

</mosaic_0001>

<llo_original>
// kernel: cnn_forward.1
$region0: #{cnn_forward.1}
  #allocation0 [shape = 'u32[]', space=smem, size = 0x4, offset = 0x4, fixed_abs, tag = 'smem constant byte address 0x4 - core index']
  #allocation1 [shape = 'u32[144,128]{1,0:T(1,128)}', space=vmem, size = 0x12000, scoped, tag = 'internal scratch']
  #allocation2 [shape = 'f32[56,896]{1,0:T(8,128)}', space=vmem, size = 0x31000, scoped, tag = 'scratch operand']
  #allocation3 [shape = 'bf16[28,448]{1,0:T(8,128)(2,1)}', space=vmem, size = 0x8000, scoped, tag = 'scratch operand']
  %s0 = inlined_call_operand.vmem [shape: bf16[56,160], index: 0, kind: input, shape index: {}]
  %s1 = inlined_call_operand.hbm [shape: bf16[160,896], index: 1, kind: input, shape index: {}]
  %s2 = inlined_call_operand.hbm [shape: f32[1,896], index: 2, kind: input, shape index: {}]
  %s3 = inlined_call_operand.hbm [shape: bf16[14,448,128], index: 3, kind: input, shape index: {}]
  %s4 = inlined_call_operand.hbm [shape: f32[1,128], index: 4, kind: input, shape index: {}]
  %s5 = inlined_call_operand.hbm [shape: f32[2,128], index: 5, kind: output, shape index: {}]
  %s6 = sld [smem:[#allocation0]]
  $region46: #{cnn_forward.1} parent=0
    _
  %s8 = ssub.s32 1, %s6
  %s9 = scalar_select 0, %s8, %s6
  $region1: #{cnn_forward.1} parent=0
    #allocation4 [shape = 'u8[286720]{0}', space=vmem, size = 0x46000, scoped, tag = 'input window, operand 1, single buffered']
    #allocation5 [shape = 's32[1]{0}', space=sflag, size = 0x4, scoped, tag = 'scoped memory for cnn_forward.1']
    #allocation6 [shape = 's32[1]{0}', space=sflag, size = 0x4, scoped, tag = 'scoped memory for cnn_forward.1']
    #allocation7 [shape = 'u8[3584]{0}', space=vmem, size = 0x1000, scoped, tag = 'input window, operand 2, single buffered']
    #allocation8 [shape = 's32[1]{0}', space=sflag, size = 0x4, scoped, tag = 'scoped memory for cnn_forward.1']
    #allocation9 [shape = 'u8[1605632]{0}', space=vmem, size = 0x188000, scoped, tag = 'input window, operand 3, single buffered']
    #allocation10 [shape = 'u8[512]{0}', space=vmem, size = 0x400, scoped, tag = 'input window, operand 4, single buffered']
    #allocation11 [shape = 's32[1]{0}', space=sflag, size = 0x4, scoped, tag = 'scoped memory for cnn_forward.1']
    #allocation12 [shape = 'u8[1024]{0}', space=vmem, size = 0x400, scoped, tag = 'output window, operand 0, single buffered']
    %10 = vsyncpa [#allocation5], 0
    %11 = vsyncpa [#allocation8], 0
    %12 = vsyncpa [#allocation11], 0
    %13 = vsyncpa [#allocation6], 0
    // Predicated region
    $region2: #{cnn_forward.1} parent=1 // pred_check
      _
    $region3: #{cnn_forward.1} parent=1 // pred_check_branch
      %15 = sbr.rel (0) target = $region5
    $region4: #{cnn_forward.1} parent=1 // pred_region
      _
    $region5: #{cnn_forward.1} parent=1 // pred_fallthru
      _
    // Predicated region
    $region6: #{cnn_forward.1} parent=1 // pred_check
      _
    $region7: #{cnn_forward.1} parent=1 // pred_check_branch
      %17 = sbr.rel (0) target = $region9
    $region8: #{cnn_forward.1} parent=1 // pred_region
      %s19 = ssub.s32 8960, 8960
      %20 = vsyncadd [#allocation5], %s19
      %s21 = sshll.u32 [#allocation4], 4
      %s22 = int_to_ptr.vmem [resolvable:$true] %s21
      %27 = dma.hbm_to_vmem [thread:$0]  %s1, 8960, %s22, [#allocation5], 448, 448, 28
    $region9: #{cnn_forward.1} parent=1 // pred_fallthru
      _
    // Predicated region
    $region10: #{cnn_forward.1} parent=1 // pred_check
      _
    $region11: #{cnn_forward.1} parent=1 // pred_check_branch
      %29 = sbr.rel (0) target = $region13
    $region12: #{cnn_forward.1} parent=1 // pred_region
      %s31 = ssub.s32 112, 112
      %32 = vsyncadd [#allocation8], %s31
      %s34 = sshll.u32 [#allocation7], 4
      %s35 = int_to_ptr.vmem [resolvable:$true] %s34
      %37 = dma.hbm_to_vmem [thread:$0]  %s2, 112, %s35, [#allocation8]
    $region13: #{cnn_forward.1} parent=1 // pred_fallthru
      _
    // Predicated region
    $region14: #{cnn_forward.1} parent=1 // pred_check
      _
    $region15: #{cnn_forward.1} parent=1 // pred_check_branch
      %39 = sbr.rel (0) target = $region17
    $region16: #{cnn_forward.1} parent=1 // pred_region
      %s41 = ssub.s32 50176, 50176
      %42 = vsyncadd [#allocation8], %s41
      %s43 = sshll.u32 [#allocation9], 4
      %s44 = int_to_ptr.vmem [resolvable:$true] %s43
      %49 = dma.hbm_to_vmem [thread:$0]  %s3, 50176, %s44, [#allocation8], 64, 64, 4
    $region17: #{cnn_forward.1} parent=1 // pred_fallthru
      _
    // Predicated region
    $region18: #{cnn_forward.1} parent=1 // pred_check
      _
    $region19: #{cnn_forward.1} parent=1 // pred_check_branch
      %51 = sbr.rel (0) target = $region21
    $region20: #{cnn_forward.1} parent=1 // pred_region
      %s53 = ssub.s32 16, 16
      %54 = vsyncadd [#allocation11], %s53
      %s56 = sshll.u32 [#allocation10], 4
      %s57 = int_to_ptr.vmem [resolvable:$true] %s56
      %59 = dma.hbm_to_vmem [thread:$0]  %s4, 16, %s57, [#allocation11]
    $region21: #{cnn_forward.1} parent=1 // pred_fallthru
      _
    // Predicated region
    $region22: #{cnn_forward.1} parent=1 // pred_check
      _
    $region23: #{cnn_forward.1} parent=1 // pred_check_branch
      %61 = sbr.rel (0) target = $region25
    $region24: #{cnn_forward.1} parent=1 // pred_region
      %62 = dma.done [#allocation5], 8960
    $region25: #{cnn_forward.1} parent=1 // pred_fallthru
      _
    // Predicated region
    $region26: #{cnn_forward.1} parent=1 // pred_check
      _
    $region27: #{cnn_forward.1} parent=1 // pred_check_branch
      %64 = sbr.rel (0) target = $region29
    $region28: #{cnn_forward.1} parent=1 // pred_region
      %65 = dma.done [#allocation8], 112
    $region29: #{cnn_forward.1} parent=1 // pred_fallthru
      _
    // Predicated region
    $region30: #{cnn_forward.1} parent=1 // pred_check
      _
    $region31: #{cnn_forward.1} parent=1 // pred_check_branch
      %67 = sbr.rel (0) target = $region33
    $region32: #{cnn_forward.1} parent=1 // pred_region
      %68 = dma.done [#allocation8], 50176
    $region33: #{cnn_forward.1} parent=1 // pred_fallthru
      _
    // Predicated region
    $region34: #{cnn_forward.1} parent=1 // pred_check
      _
    $region35: #{cnn_forward.1} parent=1 // pred_check_branch
      %70 = sbr.rel (0) target = $region37
    $region36: #{cnn_forward.1} parent=1 // pred_region
      %71 = dma.done [#allocation11], 16
    $region37: #{cnn_forward.1} parent=1 // pred_fallthru
      _
    %v73 = vld [vmem:[%s0] sm:$0xff]
    %v74 = vld [vmem:[%s0 + $0x8] sm:$0xff]
    %v75 = vld [vmem:[%s0 + $0x10] sm:$0xff]
    %v76 = vld [vmem:[%s0 + $0x18] sm:$0xff]
    %v77 = vld [vmem:[%s0 + $0x20] sm:$0xff]
    %v78 = vld [vmem:[%s0 + $0x28] sm:$0xff]
    %v79 = vld [vmem:[%s0 + $0x30] sm:$0xff]
    %v80 = vld [vmem:[#allocation4] sm:$0xff]
    %v81 = vld [vmem:[#allocation4 + $0x8] sm:$0xff]
    %v82 = vld [vmem:[#allocation4 + $0x10] sm:$0xff]
    %v83 = vld [vmem:[#allocation4 + $0x18] sm:$0xf]
    %v84 = vld [vmem:[#allocation4 + $0x1c] sm:$0xff]
    %v85 = vld [vmem:[#allocation4 + $0x24] sm:$0xff]
    %v86 = vld [vmem:[#allocation4 + $0x2c] sm:$0xff]
    %v87 = vld [vmem:[#allocation4 + $0x34] sm:$0xf]
    %v88 = vld [vmem:[#allocation4 + $0x38] sm:$0xff]
    %v89 = vld [vmem:[#allocation4 + $0x40] sm:$0xff]
    %v90 = vld [vmem:[#allocation4 + $0x48] sm:$0xff]
    %v91 = vld [vmem:[#allocation4 + $0x50] sm:$0xf]
    %v92 = vld [vmem:[#allocation4 + $0x54] sm:$0xff]
    %v93 = vld [vmem:[#allocation4 + $0x5c] sm:$0xff]
    %v94 = vld [vmem:[#allocation4 + $0x64] sm:$0xff]
    %v95 = vld [vmem:[#allocation4 + $0x6c] sm:$0xf]
    %v96 = vld [vmem:[#allocation4 + $0x70] sm:$0xff]
    %v97 = vld [vmem:[#allocation4 + $0x78] sm:$0xff]
    %v98 = vld [vmem:[#allocation4 + $0x80] sm:$0xff]
    %v99 = vld [vmem:[#allocation4 + $0x88] sm:$0xf]
    %v100 = vld [vmem:[#allocation4 + $0x8c] sm:$0xff]
    %v101 = vld [vmem:[#allocation4 + $0x94] sm:$0xff]
    %v102 = vld [vmem:[#allocation4 + $0x9c] sm:$0xff]
    %v103 = vld [vmem:[#allocation4 + $0xa4] sm:$0xf]
    %v104 = vld [vmem:[#allocation4 + $0xa8] sm:$0xff]
    %v105 = vld [vmem:[#allocation4 + $0xb0] sm:$0xff]
    %v106 = vld [vmem:[#allocation4 + $0xb8] sm:$0xff]
    %v107 = vld [vmem:[#allocation4 + $0xc0] sm:$0xf]
    %v108 = vld [vmem:[#allocation4 + $0xc4] sm:$0xff]
    %v109 = vld [vmem:[#allocation4 + $0xcc] sm:$0xff]
    %v110 = vld [vmem:[#allocation4 + $0xd4] sm:$0xff]
    %v111 = vld [vmem:[#allocation4 + $0xdc] sm:$0xf]
    %v112 = vld [vmem:[#allocation4 + $0xe0] sm:$0xff]
    %v113 = vld [vmem:[#allocation4 + $0xe8] sm:$0xff]
    %v114 = vld [vmem:[#allocation4 + $0xf0] sm:$0xff]
    %v115 = vld [vmem:[#allocation4 + $0xf8] sm:$0xf]
    %v116 = vld [vmem:[#allocation4 + $0xfc] sm:$0xff]
    %v117 = vld [vmem:[#allocation4 + $0x104] sm:$0xff]
    %v118 = vld [vmem:[#allocation4 + $0x10c] sm:$0xff]
    %v119 = vld [vmem:[#allocation4 + $0x114] sm:$0xf]
    %v120 = vld [vmem:[#allocation4 + $0x118] sm:$0xff]
    %v121 = vld [vmem:[#allocation4 + $0x120] sm:$0xff]
    %v122 = vld [vmem:[#allocation4 + $0x128] sm:$0xff]
    %v123 = vld [vmem:[#allocation4 + $0x130] sm:$0xf]
    %v124 = vld [vmem:[#allocation4 + $0x134] sm:$0xff]
    %v125 = vld [vmem:[#allocation4 + $0x13c] sm:$0xff]
    %v126 = vld [vmem:[#allocation4 + $0x144] sm:$0xff]
    %v127 = vld [vmem:[#allocation4 + $0x14c] sm:$0xf]
    %v128 = vld [vmem:[#allocation4 + $0x150] sm:$0xff]
    %v129 = vld [vmem:[#allocation4 + $0x158] sm:$0xff]
    %v130 = vld [vmem:[#allocation4 + $0x160] sm:$0xff]
    %v131 = vld [vmem:[#allocation4 + $0x168] sm:$0xf]
    %v132 = vld [vmem:[#allocation4 + $0x16c] sm:$0xff]
    %v133 = vld [vmem:[#allocation4 + $0x174] sm:$0xff]
    %v134 = vld [vmem:[#allocation4 + $0x17c] sm:$0xff]
    %v135 = vld [vmem:[#allocation4 + $0x184] sm:$0xf]
    %v136 = vld [vmem:[#allocation4 + $0x188] sm:$0xff]
    %v137 = vld [vmem:[#allocation4 + $0x190] sm:$0xff]
    %v138 = vld [vmem:[#allocation4 + $0x198] sm:$0xff]
    %v139 = vld [vmem:[#allocation4 + $0x1a0] sm:$0xf]
    %v140 = vld [vmem:[#allocation4 + $0x1a4] sm:$0xff]
    %v141 = vld [vmem:[#allocation4 + $0x1ac] sm:$0xff]
    %v142 = vld [vmem:[#allocation4 + $0x1b4] sm:$0xff]
    %v143 = vld [vmem:[#allocation4 + $0x1bc] sm:$0xf]
    %v144 = vld [vmem:[#allocation4 + $0x1c0] sm:$0xff]
    %v145 = vld [vmem:[#allocation4 + $0x1c8] sm:$0xff]
    %v146 = vld [vmem:[#allocation4 + $0x1d0] sm:$0xff]
    %v147 = vld [vmem:[#allocation4 + $0x1d8] sm:$0xf]
    %v148 = vld [vmem:[#allocation4 + $0x1dc] sm:$0xff]
    %v149 = vld [vmem:[#allocation4 + $0x1e4] sm:$0xff]
    %v150 = vld [vmem:[#allocation4 + $0x1ec] sm:$0xff]
    %v151 = vld [vmem:[#allocation4 + $0x1f4] sm:$0xf]
    %v152 = vld [vmem:[#allocation4 + $0x1f8] sm:$0xff]
    %v153 = vld [vmem:[#allocation4 + $0x200] sm:$0xff]
    %v154 = vld [vmem:[#allocation4 + $0x208] sm:$0xff]
    %v155 = vld [vmem:[#allocation4 + $0x210] sm:$0xf]
    %v156 = vld [vmem:[#allocation4 + $0x214] sm:$0xff]
    %v157 = vld [vmem:[#allocation4 + $0x21c] sm:$0xff]
    %v158 = vld [vmem:[#allocation4 + $0x224] sm:$0xff]
    %v159 = vld [vmem:[#allocation4 + $0x22c] sm:$0xf]
    %v160 = vld [vmem:[#allocation7] sm:$0xff]
    %v162 = vlaneseq
    %v163 = vshrl.u32 %v162, 7
    %v164 = vsub.s32 0, %v163
    %v165 = vrot.slane %v160, %v164
    %v166 = vlaneseq
    %v167 = vshrl.u32 %v166, 7
    %v168 = vsub.s32 1, %v167
    %v169 = vrot.slane %v160, %v168
    %v170 = vlaneseq
    %v171 = vshrl.u32 %v170, 7
    %v172 = vsub.s32 2, %v171
    %v173 = vrot.slane %v160, %v172
    %v174 = vlaneseq
    %v175 = vshrl.u32 %v174, 7
    %v176 = vsub.s32 3, %v175
    %v177 = vrot.slane %v160, %v176
    %v178 = vlaneseq
    %v179 = vshrl.u32 %v178, 7
    %v180 = vsub.s32 4, %v179
    %v181 = vrot.slane %v160, %v180
    %v182 = vlaneseq
    %v183 = vshrl.u32 %v182, 7
    %v184 = vsub.s32 5, %v183
    %v185 = vrot.slane %v160, %v184
    %v186 = vlaneseq
    %v187 = vshrl.u32 %v186, 7
    %v188 = vsub.s32 6, %v187
    %v189 = vrot.slane %v160, %v188
    %v204 = vunpack.c.l.b16 %v73
    %v205 = vunpack.c.h.b16 %v73
    %v206 = vunpack.c.l.b16 %v74
    %v207 = vunpack.c.h.b16 %v74
    %v208 = vunpack.c.l.b16 %v75
    %v209 = vunpack.c.h.b16 %v75
    %v210 = vunpack.c.l.b16 %v76
    %v211 = vunpack.c.h.b16 %v76
    %v212 = vunpack.c.l.b16 %v77
    %v213 = vunpack.c.h.b16 %v77
    %v214 = vunpack.c.l.b16 %v78
    %v215 = vunpack.c.h.b16 %v78
    %v216 = vunpack.c.l.b16 %v79
    %v217 = vunpack.c.h.b16 %v79
    %v218 = vpack.c.b16 %v206, %v204
    %v219 = vpack.c.b16 %v207, %v205
    %v220 = vpack.c.b16 %v210, %v208
    %v221 = vpack.c.b16 %v211, %v209
    %v222 = vpack.c.b16 %v214, %v212
    %v223 = vpack.c.b16 %v215, %v213
    %v224 = vpack.c.b16 %v216, %v216
    %v225 = vpack.c.b16 %v217, %v217
    %v310 = vunpack.c.l.b16 %v80
    %v311 = vunpack.c.h.b16 %v80
    %v312 = vunpack.c.l.b16 %v81
    %v313 = vunpack.c.h.b16 %v81
    %v314 = vunpack.c.l.b16 %v82
    %v315 = vunpack.c.h.b16 %v82
    %v316 = vunpack.c.l.b16 %v83
    %v317 = vunpack.c.l.b16 %v84
    %v318 = vunpack.c.h.b16 %v84
    %v319 = vunpack.c.l.b16 %v85
    %v320 = vunpack.c.h.b16 %v85
    %v321 = vunpack.c.l.b16 %v86
    %v322 = vunpack.c.h.b16 %v86
    %v323 = vunpack.c.l.b16 %v87
    %v324 = vunpack.c.l.b16 %v88
    %v325 = vunpack.c.h.b16 %v88
    %v326 = vunpack.c.l.b16 %v89
    %v327 = vunpack.c.h.b16 %v89
    %v328 = vunpack.c.l.b16 %v90
    %v329 = vunpack.c.h.b16 %v90
    %v330 = vunpack.c.l.b16 %v91
    %v331 = vunpack.c.l.b16 %v92
    %v332 = vunpack.c.h.b16 %v92
    %v333 = vunpack.c.l.b16 %v93
    %v334 = vunpack.c.h.b16 %v93
    %v335 = vunpack.c.l.b16 %v94
    %v336 = vunpack.c.h.b16 %v94
    %v337 = vunpack.c.l.b16 %v95
    %v338 = vunpack.c.l.b16 %v96
    %v339 = vunpack.c.h.b16 %v96
    %v340 = vunpack.c.l.b16 %v97
    %v341 = vunpack.c.h.b16 %v97
    %v342 = vunpack.c.l.b16 %v98
    %v343 = vunpack.c.h.b16 %v98
    %v344 = vunpack.c.l.b16 %v99
    %v345 = vunpack.c.l.b16 %v100
    %v346 = vunpack.c.h.b16 %v100
    %v347 = vunpack.c.l.b16 %v101
    %v348 = vunpack.c.h.b16 %v101
    %v349 = vunpack.c.l.b16 %v102
    %v350 = vunpack.c.h.b16 %v102
    %v351 = vunpack.c.l.b16 %v103
    %v352 = vunpack.c.l.b16 %v104
    %v353 = vunpack.c.h.b16 %v104
    %v354 = vunpack.c.l.b16 %v105
    %v355 = vunpack.c.h.b16 %v105
    %v356 = vunpack.c.l.b16 %v106
    %v357 = vunpack.c.h.b16 %v106
    %v358 = vunpack.c.l.b16 %v107
    %v359 = vunpack.c.l.b16 %v108
    %v360 = vunpack.c.h.b16 %v108
    %v361 = vunpack.c.l.b16 %v109
    %v362 = vunpack.c.h.b16 %v109
    %v363 = vunpack.c.l.b16 %v110
    %v364 = vunpack.c.h.b16 %v110
    %v365 = vunpack.c.l.b16 %v111
    %v366 = vunpack.c.l.b16 %v112
    %v367 = vunpack.c.h.b16 %v112
    %v368 = vunpack.c.l.b16 %v113
    %v369 = vunpack.c.h.b16 %v113
    %v370 = vunpack.c.l.b16 %v114
    %v371 = vunpack.c.h.b16 %v114
    %v372 = vunpack.c.l.b16 %v115
    %v373 = vunpack.c.l.b16 %v116
    %v374 = vunpack.c.h.b16 %v116
    %v375 = vunpack.c.l.b16 %v117
    %v376 = vunpack.c.h.b16 %v117
    %v377 = vunpack.c.l.b16 %v118
    %v378 = vunpack.c.h.b16 %v118
    %v379 = vunpack.c.l.b16 %v119
    %v380 = vunpack.c.l.b16 %v120
    %v381 = vunpack.c.h.b16 %v120
    %v382 = vunpack.c.l.b16 %v121
    %v383 = vunpack.c.h.b16 %v121
    %v384 = vunpack.c.l.b16 %v122
    %v385 = vunpack.c.h.b16 %v122
    %v386 = vunpack.c.l.b16 %v123
    %v387 = vunpack.c.l.b16 %v124
    %v388 = vunpack.c.h.b16 %v124
    %v389 = vunpack.c.l.b16 %v125
    %v390 = vunpack.c.h.b16 %v125
    %v391 = vunpack.c.l.b16 %v126
    %v392 = vunpack.c.h.b16 %v126
    %v393 = vunpack.c.l.b16 %v127
    %v394 = vunpack.c.l.b16 %v128
    %v395 = vunpack.c.h.b16 %v128
    %v396 = vunpack.c.l.b16 %v129
    %v397 = vunpack.c.h.b16 %v129
    %v398 = vunpack.c.l.b16 %v130
    %v399 = vunpack.c.h.b16 %v130
    %v400 = vunpack.c.l.b16 %v131
    %v401 = vunpack.c.l.b16 %v132
    %v402 = vunpack.c.h.b16 %v132
    %v403 = vunpack.c.l.b16 %v133
    %v404 = vunpack.c.h.b16 %v133
    %v405 = vunpack.c.l.b16 %v134
    %v406 = vunpack.c.h.b16 %v134
    %v407 = vunpack.c.l.b16 %v135
    %v408 = vunpack.c.l.b16 %v136
    %v409 = vunpack.c.h.b16 %v136
    %v410 = vunpack.c.l.b16 %v137
    %v411 = vunpack.c.h.b16 %v137
    %v412 = vunpack.c.l.b16 %v138
    %v413 = vunpack.c.h.b16 %v138
    %v414 = vunpack.c.l.b16 %v139
    %v415 = vunpack.c.l.b16 %v140
    %v416 = vunpack.c.h.b16 %v140
    %v417 = vunpack.c.l.b16 %v141
    %v418 = vunpack.c.h.b16 %v141
    %v419 = vunpack.c.l.b16 %v142
    %v420 = vunpack.c.h.b16 %v142
    %v421 = vunpack.c.l.b16 %v143
    %v422 = vunpack.c.l.b16 %v144
    %v423 = vunpack.c.h.b16 %v144
    %v424 = vunpack.c.l.b16 %v145
    %v425 = vunpack.c.h.b16 %v145
    %v426 = vunpack.c.l.b16 %v146
    %v427 = vunpack.c.h.b16 %v146
    %v428 = vunpack.c.l.b16 %v147
    %v429 = vunpack.c.l.b16 %v148
    %v430 = vunpack.c.h.b16 %v148
    %v431 = vunpack.c.l.b16 %v149
    %v432 = vunpack.c.h.b16 %v149
    %v433 = vunpack.c.l.b16 %v150
    %v434 = vunpack.c.h.b16 %v150
    %v435 = vunpack.c.l.b16 %v151
    %v436 = vunpack.c.l.b16 %v152
    %v437 = vunpack.c.h.b16 %v152
    %v438 = vunpack.c.l.b16 %v153
    %v439 = vunpack.c.h.b16 %v153
    %v440 = vunpack.c.l.b16 %v154
    %v441 = vunpack.c.h.b16 %v154
    %v442 = vunpack.c.l.b16 %v155
    %v443 = vunpack.c.l.b16 %v156
    %v444 = vunpack.c.h.b16 %v156
    %v445 = vunpack.c.l.b16 %v157
    %v446 = vunpack.c.h.b16 %v157
    %v447 = vunpack.c.l.b16 %v158
    %v448 = vunpack.c.h.b16 %v158
    %v449 = vunpack.c.l.b16 %v159
    %v450 = vpack.c.b16 %v317, %v310
    %v451 = vpack.c.b16 %v318, %v311
    %v452 = vpack.c.b16 %v319, %v312
    %v453 = vpack.c.b16 %v320, %v313
    %v454 = vpack.c.b16 %v321, %v314
    %v455 = vpack.c.b16 %v322, %v315
    %v456 = vpack.c.b16 %v323, %v316
    %v457 = vpack.c.b16 %v331, %v324
    %v458 = vpack.c.b16 %v332, %v325
    %v459 = vpack.c.b16 %v333, %v326
    %v460 = vpack.c.b16 %v334, %v327
    %v461 = vpack.c.b16 %v335, %v328
    %v462 = vpack.c.b16 %v336, %v329
    %v463 = vpack.c.b16 %v337, %v330
    %v464 = vpack.c.b16 %v345, %v338
    %v465 = vpack.c.b16 %v346, %v339
    %v466 = vpack.c.b16 %v347, %v340
    %v467 = vpack.c.b16 %v348, %v341
    %v468 = vpack.c.b16 %v349, %v342
    %v469 = vpack.c.b16 %v350, %v343
    %v470 = vpack.c.b16 %v351, %v344
    %v471 = vpack.c.b16 %v359, %v352
    %v472 = vpack.c.b16 %v360, %v353
    %v473 = vpack.c.b16 %v361, %v354
    %v474 = vpack.c.b16 %v362, %v355
    %v475 = vpack.c.b16 %v363, %v356
    %v476 = vpack.c.b16 %v364, %v357
    %v477 = vpack.c.b16 %v365, %v358
    %v478 = vpack.c.b16 %v373, %v366
    %v479 = vpack.c.b16 %v374, %v367
    %v480 = vpack.c.b16 %v375, %v368
    %v481 = vpack.c.b16 %v376, %v369
    %v482 = vpack.c.b16 %v377, %v370
    %v483 = vpack.c.b16 %v378, %v371
    %v484 = vpack.c.b16 %v379, %v372
    %v485 = vpack.c.b16 %v387, %v380
    %v486 = vpack.c.b16 %v388, %v381
    %v487 = vpack.c.b16 %v389, %v382
    %v488 = vpack.c.b16 %v390, %v383
    %v489 = vpack.c.b16 %v391, %v384
    %v490 = vpack.c.b16 %v392, %v385
    %v491 = vpack.c.b16 %v393, %v386
    %v492 = vpack.c.b16 %v401, %v394
    %v493 = vpack.c.b16 %v402, %v395
    %v494 = vpack.c.b16 %v403, %v396
    %v495 = vpack.c.b16 %v404, %v397
    %v496 = vpack.c.b16 %v405, %v398
    %v497 = vpack.c.b16 %v406, %v399
    %v498 = vpack.c.b16 %v407, %v400
    %v499 = vpack.c.b16 %v415, %v408
    %v500 = vpack.c.b16 %v416, %v409
    %v501 = vpack.c.b16 %v417, %v410
    %v502 = vpack.c.b16 %v418, %v411
    %v503 = vpack.c.b16 %v419, %v412
    %v504 = vpack.c.b16 %v420, %v413
    %v505 = vpack.c.b16 %v421, %v414
    %v506 = vpack.c.b16 %v429, %v422
    %v507 = vpack.c.b16 %v430, %v423
    %v508 = vpack.c.b16 %v431, %v424
    %v509 = vpack.c.b16 %v432, %v425
    %v510 = vpack.c.b16 %v433, %v426
    %v511 = vpack.c.b16 %v434, %v427
    %v512 = vpack.c.b16 %v435, %v428
    %v513 = vpack.c.b16 %v443, %v436
    %v514 = vpack.c.b16 %v444, %v437
    %v515 = vpack.c.b16 %v445, %v438
    %v516 = vpack.c.b16 %v446, %v439
    %v517 = vpack.c.b16 %v447, %v440
    %v518 = vpack.c.b16 %v448, %v441
    %v519 = vpack.c.b16 %v449, %v442
    %vm590 = vcmask 261120
    %v592 = vsel %vm590, %v219, 0
    %v595 = vsel %vm590, %v221, 0
    %v598 = vsel %vm590, %v223, 0
    %v601 = vsel %vm590, %v225, 0
    %603 = vmatprep.subr.bf16.mxu0 %v451
    %604 = vmatpush1.bf16.msra.mxu0 %v450
    %605 = vmatprep.subr.bf16.mxu0 %v458
    %606 = vmatpush1.bf16.msra.mxu0 %v457
    %607 = vmatprep.subr.bf16.mxu0 %v465
    %608 = vmatpush1.bf16.msra.mxu0 %v464
    %609 = vmatprep.subr.bf16.mxu0 %v472
    %610 = vmatpush1.bf16.msra.mxu0 %v471
    %611 = vmatprep.subr.bf16.mxu0 %v479
    %612 = vmatpush1.bf16.msra.mxu0 %v478
    %613 = vmatprep.subr.bf16.mxu0 %v486
    %614 = vmatpush1.bf16.msra.mxu0 %v485
    %615 = vmatprep.subr.bf16.mxu0 %v493
    %616 = vmatpush1.bf16.msra.mxu0 %v492
    %617 = vmatprep.subr.bf16.mxu0 %v500
    %618 = vmatpush1.bf16.msra.mxu0 %v499
    %619 = vmatprep.subr.bf16.mxu0 %v507
    %620 = vmatpush1.bf16.msra.mxu0 %v506
    %621 = vmatprep.subr.bf16.mxu0 %v514
    %622 = vmatpush1.bf16.msra.mxu0 %v513
    %623 = vmatprep.subr.bf16.mxu0 0
    %624 = vmatpush1.bf16.msra.mxu0 0
    %625 = vmatprep.subr.bf16.mxu0 0
    %626 = vmatpush1.bf16.msra.mxu0 0
    %627 = vmatprep.subr.bf16.mxu0 0
    %628 = vmatpush1.bf16.msra.mxu0 0
    %629 = vmatprep.subr.bf16.mxu0 0
    %630 = vmatpush1.bf16.msra.mxu0 0
    %631 = vmatprep.subr.bf16.mxu0 0
    %632 = vmatpush1.bf16.msra.mxu0 0
    %633 = vmatprep.subr.bf16.mxu0 0
    %634 = vmatpush1.bf16.msra.mxu0 0
    %635 = vmatprep.mubr.bf16.mxu0 %v592
    %636 = vmatmul.mubr.bf16.gmra.mrb[0].mxu0 %v218
    %v637 = vpop.f32.mrb[0].mxu0
    %v638 = vadd.f32 %v165, %v637
    %v639 = vpop.f32.mrb[0].mxu0
    %v640 = vadd.f32 %v169, %v639
    %v641 = vpop.f32.mrb[0].mxu0
    %v642 = vadd.f32 %v165, %v641
    %v643 = vpop.f32.mrb[0].mxu0
    %v644 = vadd.f32 %v169, %v643
    %645 = vmatprep.mubr.bf16.mxu0 %v595
    %646 = vmatmul.mubr.bf16.gmra.mrb[0].mxu0 %v220
    %v647 = vpop.f32.mrb[0].mxu0
    %v648 = vadd.f32 %v165, %v647
    %v649 = vpop.f32.mrb[0].mxu0
    %v650 = vadd.f32 %v169, %v649
    %v651 = vpop.f32.mrb[0].mxu0
    %v652 = vadd.f32 %v165, %v651
    %v653 = vpop.f32.mrb[0].mxu0
    %v654 = vadd.f32 %v169, %v653
    %655 = vmatprep.mubr.bf16.mxu0 %v598
    %656 = vmatmul.mubr.bf16.gmra.mrb[0].mxu0 %v222
    %v657 = vpop.f32.mrb[0].mxu0
    %v658 = vadd.f32 %v165, %v657
    %v659 = vpop.f32.mrb[0].mxu0
    %v660 = vadd.f32 %v169, %v659
    %v661 = vpop.f32.mrb[0].mxu0
    %v662 = vadd.f32 %v165, %v661
    %v663 = vpop.f32.mrb[0].mxu0
    %v664 = vadd.f32 %v169, %v663
    %665 = vmatprep.mubr.bf16.mxu0 %v601
    %666 = vmatmul.mubr.bf16.gmra.mrb[0].mxu0 %v224
    %v667 = vpop.f32.mrb[0].mxu0
    %v668 = vadd.f32 %v165, %v667
    %v669 = vpop.f32.mrb[0].mxu0
    %v670 = vadd.f32 %v169, %v669
    %v671 = vpop.f32.mrb[0].mxu0
    %v672 = vpop.f32.mrb[0].mxu0
    %673 = vdwg.mxu0
    %674 = vmatprep.subr.bf16.mxu0 %v453
    %675 = vmatpush1.bf16.msra.mxu0 %v452
    %676 = vmatprep.subr.bf16.mxu0 %v460
    %677 = vmatpush1.bf16.msra.mxu0 %v459
    %678 = vmatprep.subr.bf16.mxu0 %v467
    %679 = vmatpush1.bf16.msra.mxu0 %v466
    %680 = vmatprep.subr.bf16.mxu0 %v474
    %681 = vmatpush1.bf16.msra.mxu0 %v473
    %682 = vmatprep.subr.bf16.mxu0 %v481
    %683 = vmatpush1.bf16.msra.mxu0 %v480
    %684 = vmatprep.subr.bf16.mxu0 %v488
    %685 = vmatpush1.bf16.msra.mxu0 %v487
    %686 = vmatprep.subr.bf16.mxu0 %v495
    %687 = vmatpush1.bf16.msra.mxu0 %v494
    %688 = vmatprep.subr.bf16.mxu0 %v502
    %689 = vmatpush1.bf16.msra.mxu0 %v501
    %690 = vmatprep.subr.bf16.mxu0 %v509
    %691 = vmatpush1.bf16.msra.mxu0 %v508
    %692 = vmatprep.subr.bf16.mxu0 %v516
    %693 = vmatpush1.bf16.msra.mxu0 %v515
    %694 = vmatprep.subr.bf16.mxu0 0
    %695 = vmatpush1.bf16.msra.mxu0 0
    %696 = vmatprep.subr.bf16.mxu0 0
    %697 = vmatpush1.bf16.msra.mxu0 0
    %698 = vmatprep.subr.bf16.mxu0 0
    %699 = vmatpush1.bf16.msra.mxu0 0
    %700 = vmatprep.subr.bf16.mxu0 0
    %701 = vmatpush1.bf16.msra.mxu0 0
    %702 = vmatprep.subr.bf16.mxu0 0
    %703 = vmatpush1.bf16.msra.mxu0 0
    %704 = vmatprep.subr.bf16.mxu0 0
    %705 = vmatpush1.bf16.msra.mxu0 0
    %706 = vmatprep.mubr.bf16.mxu0 %v592
    %707 = vmatmul.mubr.bf16.gmra.mrb[0].mxu0 %v218
    %v708 = vpop.f32.mrb[0].mxu0
    %v709 = vadd.f32 %v173, %v708
    %v710 = vpop.f32.mrb[0].mxu0
    %v711 = vadd.f32 %v177, %v710
    %v712 = vpop.f32.mrb[0].mxu0
    %v713 = vadd.f32 %v173, %v712
    %v714 = vpop.f32.mrb[0].mxu0
    %v715 = vadd.f32 %v177, %v714
    %716 = vmatprep.mubr.bf16.mxu0 %v595
    %717 = vmatmul.mubr.bf16.gmra.mrb[0].mxu0 %v220
    %v718 = vpop.f32.mrb[0].mxu0
    %v719 = vadd.f32 %v173, %v718
    %v720 = vpop.f32.mrb[0].mxu0
    %v721 = vadd.f32 %v177, %v720
    %v722 = vpop.f32.mrb[0].mxu0
    %v723 = vadd.f32 %v173, %v722
    %v724 = vpop.f32.mrb[0].mxu0
    %v725 = vadd.f32 %v177, %v724
    %726 = vmatprep.mubr.bf16.mxu0 %v598
    %727 = vmatmul.mubr.bf16.gmra.mrb[0].mxu0 %v222
    %v728 = vpop.f32.mrb[0].mxu0
    %v729 = vadd.f32 %v173, %v728
    %v730 = vpop.f32.mrb[0].mxu0
    %v731 = vadd.f32 %v177, %v730
    %v732 = vpop.f32.mrb[0].mxu0
    %v733 = vadd.f32 %v173, %v732
    %v734 = vpop.f32.mrb[0].mxu0
    %v735 = vadd.f32 %v177, %v734
    %736 = vmatprep.mubr.bf16.mxu0 %v601
    %737 = vmatmul.mubr.bf16.gmra.mrb[0].mxu0 %v224
    %v738 = vpop.f32.mrb[0].mxu0
    %v739 = vadd.f32 %v173, %v738
    %v740 = vpop.f32.mrb[0].mxu0
    %v741 = vadd.f32 %v177, %v740
    %v742 = vpop.f32.mrb[0].mxu0
    %v743 = vpop.f32.mrb[0].mxu0
    %744 = vdwg.mxu0
    %745 = vmatprep.subr.bf16.mxu0 %v455
    %746 = vmatpush1.bf16.msra.mxu0 %v454
    %747 = vmatprep.subr.bf16.mxu0 %v462
    %748 = vmatpush1.bf16.msra.mxu0 %v461
    %749 = vmatprep.subr.bf16.mxu0 %v469
    %750 = vmatpush1.bf16.msra.mxu0 %v468
    %751 = vmatprep.subr.bf16.mxu0 %v476
    %752 = vmatpush1.bf16.msra.mxu0 %v475
    %753 = vmatprep.subr.bf16.mxu0 %v483
    %754 = vmatpush1.bf16.msra.mxu0 %v482
    %755 = vmatprep.subr.bf16.mxu0 %v490
    %756 = vmatpush1.bf16.msra.mxu0 %v489
    %757 = vmatprep.subr.bf16.mxu0 %v497
    %758 = vmatpush1.bf16.msra.mxu0 %v496
    %759 = vmatprep.subr.bf16.mxu0 %v504
    %760 = vmatpush1.bf16.msra.mxu0 %v503
    %761 = vmatprep.subr.bf16.mxu0 %v511
    %762 = vmatpush1.bf16.msra.mxu0 %v510
    %763 = vmatprep.subr.bf16.mxu0 %v518
    %764 = vmatpush1.bf16.msra.mxu0 %v517
    %765 = vmatprep.subr.bf16.mxu0 0
    %766 = vmatpush1.bf16.msra.mxu0 0
    %767 = vmatprep.subr.bf16.mxu0 0
    %768 = vmatpush1.bf16.msra.mxu0 0
    %769 = vmatprep.subr.bf16.mxu0 0
    %770 = vmatpush1.bf16.msra.mxu0 0
    %771 = vmatprep.subr.bf16.mxu0 0
    %772 = vmatpush1.bf16.msra.mxu0 0
    %773 = vmatprep.subr.bf16.mxu0 0
    %774 = vmatpush1.bf16.msra.mxu0 0
    %775 = vmatprep.subr.bf16.mxu0 0
    %776 = vmatpush1.bf16.msra.mxu0 0
    %777 = vmatprep.mubr.bf16.mxu0 %v592
    %778 = vmatmul.mubr.bf16.gmra.mrb[0].mxu0 %v218
    %v779 = vpop.f32.mrb[0].mxu0
    %v780 = vadd.f32 %v181, %v779
    %v781 = vpop.f32.mrb[0].mxu0
    %v782 = vadd.f32 %v185, %v781
    %v783 = vpop.f32.mrb[0].mxu0
    %v784 = vadd.f32 %v181, %v783
    %v785 = vpop.f32.mrb[0].mxu0
    %v786 = vadd.f32 %v185, %v785
    %787 = vmatprep.mubr.bf16.mxu0 %v595
    %788 = vmatmul.mubr.bf16.gmra.mrb[0].mxu0 %v220
    %v789 = vpop.f32.mrb[0].mxu0
    %v790 = vadd.f32 %v181, %v789
    %v791 = vpop.f32.mrb[0].mxu0
    %v792 = vadd.f32 %v185, %v791
    %v793 = vpop.f32.mrb[0].mxu0
    %v794 = vadd.f32 %v181, %v793
    %v795 = vpop.f32.mrb[0].mxu0
    %v796 = vadd.f32 %v185, %v795
    %797 = vmatprep.mubr.bf16.mxu0 %v598
    %798 = vmatmul.mubr.bf16.gmra.mrb[0].mxu0 %v222
    %v799 = vpop.f32.mrb[0].mxu0
    %v800 = vadd.f32 %v181, %v799
    %v801 = vpop.f32.mrb[0].mxu0
    %v802 = vadd.f32 %v185, %v801
    %v803 = vpop.f32.mrb[0].mxu0
    %v804 = vadd.f32 %v181, %v803
    %v805 = vpop.f32.mrb[0].mxu0
    %v806 = vadd.f32 %v185, %v805
    %807 = vmatprep.mubr.bf16.mxu0 %v601
    %808 = vmatmul.mubr.bf16.gmra.mrb[0].mxu0 %v224
    %v809 = vpop.f32.mrb[0].mxu0
    %v810 = vadd.f32 %v181, %v809
    %v811 = vpop.f32.mrb[0].mxu0
    %v812 = vadd.f32 %v185, %v811
    %v813 = vpop.f32.mrb[0].mxu0
    %v814 = vpop.f32.mrb[0].mxu0
    %815 = vdwg.mxu0
    %816 = vmatprep.subr.bf16.mxu0 0
    %817 = vmatpush1.bf16.msra.mxu0 %v456
    %818 = vmatprep.subr.bf16.mxu0 0
    %819 = vmatpush1.bf16.msra.mxu0 %v463
    %820 = vmatprep.subr.bf16.mxu0 0
    %821 = vmatpush1.bf16.msra.mxu0 %v470
    %822 = vmatprep.subr.bf16.mxu0 0
    %823 = vmatpush1.bf16.msra.mxu0 %v477
    %824 = vmatprep.subr.bf16.mxu0 0
    %825 = vmatpush1.bf16.msra.mxu0 %v484
    %826 = vmatprep.subr.bf16.mxu0 0
    %827 = vmatpush1.bf16.msra.mxu0 %v491
    %828 = vmatprep.subr.bf16.mxu0 0
    %829 = vmatpush1.bf16.msra.mxu0 %v498
    %830 = vmatprep.subr.bf16.mxu0 0
    %831 = vmatpush1.bf16.msra.mxu0 %v505
    %832 = vmatprep.subr.bf16.mxu0 0
    %833 = vmatpush1.bf16.msra.mxu0 %v512
    %834 = vmatprep.subr.bf16.mxu0 0
    %835 = vmatpush1.bf16.msra.mxu0 %v519
    %836 = vmatprep.subr.bf16.mxu0 0
    %837 = vmatpush1.bf16.msra.mxu0 0
    %838 = vmatprep.subr.bf16.mxu0 0
    %839 = vmatpush1.bf16.msra.mxu0 0
    %840 = vmatprep.subr.bf16.mxu0 0
    %841 = vmatpush1.bf16.msra.mxu0 0
    %842 = vmatprep.subr.bf16.mxu0 0
    %843 = vmatpush1.bf16.msra.mxu0 0
    %844 = vmatprep.subr.bf16.mxu0 0
    %845 = vmatpush1.bf16.msra.mxu0 0
    %846 = vmatprep.subr.bf16.mxu0 0
    %847 = vmatpush1.bf16.msra.mxu0 0
    %848 = vmatprep.mubr.bf16.mxu0 %v592
    %849 = vmatmul.mubr.bf16.gmra.mrb[0].mxu0 %v218
    %v850 = vpop.f32.mrb[0].mxu0
    %v851 = vadd.f32 %v189, %v850
    %v852 = vpop.f32.mrb[0].mxu0
    %v853 = vpop.f32.mrb[0].mxu0
    %v854 = vadd.f32 %v189, %v853
    %v855 = vpop.f32.mrb[0].mxu0
    %856 = vmatprep.mubr.bf16.mxu0 %v595
    %857 = vmatmul.mubr.bf16.gmra.mrb[0].mxu0 %v220
    %v858 = vpop.f32.mrb[0].mxu0
    %v859 = vadd.f32 %v189, %v858
    %v860 = vpop.f32.mrb[0].mxu0
    %v861 = vpop.f32.mrb[0].mxu0
    %v862 = vadd.f32 %v189, %v861
    %v863 = vpop.f32.mrb[0].mxu0
    %864 = vmatprep.mubr.bf16.mxu0 %v598
    %865 = vmatmul.mubr.bf16.gmra.mrb[0].mxu0 %v222
    %v866 = vpop.f32.mrb[0].mxu0
    %v867 = vadd.f32 %v189, %v866
    %v868 = vpop.f32.mrb[0].mxu0
    %v869 = vpop.f32.mrb[0].mxu0
    %v870 = vadd.f32 %v189, %v869
    %v871 = vpop.f32.mrb[0].mxu0
    %872 = vmatprep.mubr.bf16.mxu0 %v601
    %873 = vmatmul.mubr.bf16.gmra.mrb[0].mxu0 %v224
    %v874 = vpop.f32.mrb[0].mxu0
    %v875 = vadd.f32 %v189, %v874
    %v876 = vpop.f32.mrb[0].mxu0
    %v877 = vpop.f32.mrb[0].mxu0
    %v878 = vpop.f32.mrb[0].mxu0
    %879 = vdwg.mxu0
    %v880 = vmax.f32 %v638, 0.0
    %v881 = vmax.f32 %v640, 0.0
    %v882 = vmax.f32 %v709, 0.0
    %v883 = vmax.f32 %v711, 0.0
    %v884 = vmax.f32 %v780, 0.0
    %v885 = vmax.f32 %v782, 0.0
    %v886 = vmax.f32 %v851, 0.0
    %v887 = vmax.f32 %v642, 0.0
    %v888 = vmax.f32 %v644, 0.0
    %v889 = vmax.f32 %v713, 0.0
    %v890 = vmax.f32 %v715, 0.0
    %v891 = vmax.f32 %v784, 0.0
    %v892 = vmax.f32 %v786, 0.0
    %v893 = vmax.f32 %v854, 0.0
    %v894 = vmax.f32 %v648, 0.0
    %v895 = vmax.f32 %v650, 0.0
    %v896 = vmax.f32 %v719, 0.0
    %v897 = vmax.f32 %v721, 0.0
    %v898 = vmax.f32 %v790, 0.0
    %v899 = vmax.f32 %v792, 0.0
    %v900 = vmax.f32 %v859, 0.0
    %v901 = vmax.f32 %v652, 0.0
    %v902 = vmax.f32 %v654, 0.0
    %v903 = vmax.f32 %v723, 0.0
    %v904 = vmax.f32 %v725, 0.0
    %v905 = vmax.f32 %v794, 0.0
    %v906 = vmax.f32 %v796, 0.0
    %v907 = vmax.f32 %v862, 0.0
    %v908 = vmax.f32 %v658, 0.0
    %v909 = vmax.f32 %v660, 0.0
    %v910 = vmax.f32 %v729, 0.0
    %v911 = vmax.f32 %v731, 0.0
    %v912 = vmax.f32 %v800, 0.0
    %v913 = vmax.f32 %v802, 0.0
    %v914 = vmax.f32 %v867, 0.0
    %v915 = vmax.f32 %v662, 0.0
    %v916 = vmax.f32 %v664, 0.0
    %v917 = vmax.f32 %v733, 0.0
    %v918 = vmax.f32 %v735, 0.0
    %v919 = vmax.f32 %v804, 0.0
    %v920 = vmax.f32 %v806, 0.0
    %v921 = vmax.f32 %v870, 0.0
    %v922 = vmax.f32 %v668, 0.0
    %v923 = vmax.f32 %v670, 0.0
    %v924 = vmax.f32 %v739, 0.0
    %v925 = vmax.f32 %v741, 0.0
    %v926 = vmax.f32 %v810, 0.0
    %v927 = vmax.f32 %v812, 0.0
    %v928 = vmax.f32 %v875, 0.0
    %929 = vst [vmem:[#allocation2] sm:$0xff] %v880
    %930 = vst [vmem:[#allocation2 + $0x8] sm:$0xff] %v881
    %931 = vst [vmem:[#allocation2 + $0x10] sm:$0xff] %v882
    %932 = vst [vmem:[#allocation2 + $0x18] sm:$0xff] %v883
    %933 = vst [vmem:[#allocation2 + $0x20] sm:$0xff] %v884
    %934 = vst [vmem:[#allocation2 + $0x28] sm:$0xff] %v885
    %935 = vst [vmem:[#allocation2 + $0x30] sm:$0xff] %v886
    %936 = vst [vmem:[#allocation2 + $0x38] sm:$0xff] %v887
    %937 = vst [vmem:[#allocation2 + $0x40] sm:$0xff] %v888
    %938 = vst [vmem:[#allocation2 + $0x48] sm:$0xff] %v889
    %939 = vst [vmem:[#allocation2 + $0x50] sm:$0xff] %v890
    %940 = vst [vmem:[#allocation2 + $0x58] sm:$0xff] %v891
    %941 = vst [vmem:[#allocation2 + $0x60] sm:$0xff] %v892
    %942 = vst [vmem:[#allocation2 + $0x68] sm:$0xff] %v893
    %943 = vst [vmem:[#allocation2 + $0x70] sm:$0xff] %v894
    %944 = vst [vmem:[#allocation2 + $0x78] sm:$0xff] %v895
    %945 = vst [vmem:[#allocation2 + $0x80] sm:$0xff] %v896
    %946 = vst [vmem:[#allocation2 + $0x88] sm:$0xff] %v897
    %947 = vst [vmem:[#allocation2 + $0x90] sm:$0xff] %v898
    %948 = vst [vmem:[#allocation2 + $0x98] sm:$0xff] %v899
    %949 = vst [vmem:[#allocation2 + $0xa0] sm:$0xff] %v900
    %950 = vst [vmem:[#allocation2 + $0xa8] sm:$0xff] %v901
    %951 = vst [vmem:[#allocation2 + $0xb0] sm:$0xff] %v902
    %952 = vst [vmem:[#allocation2 + $0xb8] sm:$0xff] %v903
    %953 = vst [vmem:[#allocation2 + $0xc0] sm:$0xff] %v904
    %954 = vst [vmem:[#allocation2 + $0xc8] sm:$0xff] %v905
    %955 = vst [vmem:[#allocation2 + $0xd0] sm:$0xff] %v906
    %956 = vst [vmem:[#allocation2 + $0xd8] sm:$0xff] %v907
    %957 = vst [vmem:[#allocation2 + $0xe0] sm:$0xff] %v908
    %958 = vst [vmem:[#allocation2 + $0xe8] sm:$0xff] %v909
    %959 = vst [vmem:[#allocation2 + $0xf0] sm:$0xff] %v910
    %960 = vst [vmem:[#allocation2 + $0xf8] sm:$0xff] %v911
    %961 = vst [vmem:[#allocation2 + $0x100] sm:$0xff] %v912
    %962 = vst [vmem:[#allocation2 + $0x108] sm:$0xff] %v913
    %963 = vst [vmem:[#allocation2 + $0x110] sm:$0xff] %v914
    %964 = vst [vmem:[#allocation2 + $0x118] sm:$0xff] %v915
    %965 = vst [vmem:[#allocation2 + $0x120] sm:$0xff] %v916
    %966 = vst [vmem:[#allocation2 + $0x128] sm:$0xff] %v917
    %967 = vst [vmem:[#allocation2 + $0x130] sm:$0xff] %v918
    %968 = vst [vmem:[#allocation2 + $0x138] sm:$0xff] %v919
    %969 = vst [vmem:[#allocation2 + $0x140] sm:$0xff] %v920
    %970 = vst [vmem:[#allocation2 + $0x148] sm:$0xff] %v921
    %971 = vst [vmem:[#allocation2 + $0x150] sm:$0xff] %v922
    %972 = vst [vmem:[#allocation2 + $0x158] sm:$0xff] %v923
    %973 = vst [vmem:[#allocation2 + $0x160] sm:$0xff] %v924
    %974 = vst [vmem:[#allocation2 + $0x168] sm:$0xff] %v925
    %975 = vst [vmem:[#allocation2 + $0x170] sm:$0xff] %v926
    %976 = vst [vmem:[#allocation2 + $0x178] sm:$0xff] %v927
    %977 = vst [vmem:[#allocation2 + $0x180] sm:$0xff] %v928
    %v978 = vld [vmem:[#allocation2] sm:$0xff]
    %v979 = vld [vmem:[#allocation2 + $0x8] sm:$0xff]
    %v980 = vld [vmem:[#allocation2 + $0x10] sm:$0xff]
    %v981 = vld [vmem:[#allocation2 + $0x18] sm:$0xff]
    %v982 = vld [vmem:[#allocation2 + $0x20] sm:$0xff]
    %v983 = vld [vmem:[#allocation2 + $0x28] sm:$0xff]
    %v984 = vld [vmem:[#allocation2 + $0x30] sm:$0xff]
    %v985 = vld [vmem:[#allocation2 + $0x38] sm:$0xff]
    %v986 = vld [vmem:[#allocation2 + $0x40] sm:$0xff]
    %v987 = vld [vmem:[#allocation2 + $0x48] sm:$0xff]
    %v988 = vld [vmem:[#allocation2 + $0x50] sm:$0xff]
    %v989 = vld [vmem:[#allocation2 + $0x58] sm:$0xff]
    %v990 = vld [vmem:[#allocation2 + $0x60] sm:$0xff]
    %v991 = vld [vmem:[#allocation2 + $0x68] sm:$0xff]
    %v992 = vld [vmem:[#allocation2 + $0x70] sm:$0xff]
    %v993 = vld [vmem:[#allocation2 + $0x78] sm:$0xff]
    %v994 = vld [vmem:[#allocation2 + $0x80] sm:$0xff]
    %v995 = vld [vmem:[#allocation2 + $0x88] sm:$0xff]
    %v996 = vld [vmem:[#allocation2 + $0x90] sm:$0xff]
    %v997 = vld [vmem:[#allocation2 + $0x98] sm:$0xff]
    %v998 = vld [vmem:[#allocation2 + $0xa0] sm:$0xff]
    %v999 = vld [vmem:[#allocation2 + $0xa8] sm:$0xf]
    %v1000 = vld [vmem:[#allocation2 + $0xb0] sm:$0xf]
    %v1001 = vld [vmem:[#allocation2 + $0xb8] sm:$0xf]
    %v1002 = vld [vmem:[#allocation2 + $0xc0] sm:$0xf]
    %v1003 = vld [vmem:[#allocation2 + $0xc8] sm:$0xf]
    %v1004 = vld [vmem:[#allocation2 + $0xd0] sm:$0xf]
    %v1005 = vld [vmem:[#allocation2 + $0xd8] sm:$0xf]
    %v1006 = vld [vmem:[#allocation2 + $0xa8] sm:$0xf0]
    %v1007 = vld [vmem:[#allocation2 + $0xb0] sm:$0xf0]
    %v1008 = vld [vmem:[#allocation2 + $0xb8] sm:$0xf0]
    %v1009 = vld [vmem:[#allocation2 + $0xc0] sm:$0xf0]
    %v1010 = vld [vmem:[#allocation2 + $0xc8] sm:$0xf0]
    %v1011 = vld [vmem:[#allocation2 + $0xd0] sm:$0xf0]
    %v1012 = vld [vmem:[#allocation2 + $0xd8] sm:$0xf0]
    %v1013 = vld [vmem:[#allocation2 + $0xe0] sm:$0xff]
    %v1014 = vld [vmem:[#allocation2 + $0xe8] sm:$0xff]
    %v1015 = vld [vmem:[#allocation2 + $0xf0] sm:$0xff]
    %v1016 = vld [vmem:[#allocation2 + $0xf8] sm:$0xff]
    %v1017 = vld [vmem:[#allocation2 + $0x100] sm:$0xff]
    %v1018 = vld [vmem:[#allocation2 + $0x108] sm:$0xff]
    %v1019 = vld [vmem:[#allocation2 + $0x110] sm:$0xff]
    %v1020 = vld [vmem:[#allocation2 + $0x118] sm:$0xff]
    %v1021 = vld [vmem:[#allocation2 + $0x120] sm:$0xff]
    %v1022 = vld [vmem:[#allocation2 + $0x128] sm:$0xff]
    %v1023 = vld [vmem:[#allocation2 + $0x130] sm:$0xff]
    %v1024 = vld [vmem:[#allocation2 + $0x138] sm:$0xff]
    %v1025 = vld [vmem:[#allocation2 + $0x140] sm:$0xff]
    %v1026 = vld [vmem:[#allocation2 + $0x148] sm:$0xff]
    %v1027 = vld [vmem:[#allocation2 + $0x150] sm:$0xff]
    %v1028 = vld [vmem:[#allocation2 + $0x158] sm:$0xff]
    %v1029 = vld [vmem:[#allocation2 + $0x160] sm:$0xff]
    %v1030 = vld [vmem:[#allocation2 + $0x168] sm:$0xff]
    %v1031 = vld [vmem:[#allocation2 + $0x170] sm:$0xff]
    %v1032 = vld [vmem:[#allocation2 + $0x178] sm:$0xff]
    %v1033 = vld [vmem:[#allocation2 + $0x180] sm:$0xff]
    %vm1062 = vcmask 1043456
    %v1063 = vrot.slane %v1006, 4
    %v1064 = vrot.slane %v1013, 4
    %v1065 = vsel %vm1062, %v1063, %v1064
    %v1066 = vrot.slane %v1007, 4
    %v1067 = vrot.slane %v1014, 4
    %v1068 = vsel %vm1062, %v1066, %v1067
    %v1069 = vrot.slane %v1008, 4
    %v1070 = vrot.slane %v1015, 4
    %v1071 = vsel %vm1062, %v1069, %v1070
    %v1072 = vrot.slane %v1009, 4
    %v1073 = vrot.slane %v1016, 4
    %v1074 = vsel %vm1062, %v1072, %v1073
    %v1075 = vrot.slane %v1010, 4
    %v1076 = vrot.slane %v1017, 4
    %v1077 = vsel %vm1062, %v1075, %v1076
    %v1078 = vrot.slane %v1011, 4
    %v1079 = vrot.slane %v1018, 4
    %v1080 = vsel %vm1062, %v1078, %v1079
    %v1081 = vrot.slane %v1012, 4
    %v1082 = vrot.slane %v1019, 4
    %v1083 = vsel %vm1062, %v1081, %v1082
    %v1084 = vrot.slane %v1020, 4
    %v1085 = vsel %vm1062, %v1064, %v1084
    %v1086 = vrot.slane %v1021, 4
    %v1087 = vsel %vm1062, %v1067, %v1086
    %v1088 = vrot.slane %v1022, 4
    %v1089 = vsel %vm1062, %v1070, %v1088
    %v1090 = vrot.slane %v1023, 4
    %v1091 = vsel %vm1062, %v1073, %v1090
    %v1092 = vrot.slane %v1024, 4
    %v1093 = vsel %vm1062, %v1076, %v1092
    %v1094 = vrot.slane %v1025, 4
    %v1095 = vsel %vm1062, %v1079, %v1094
    %v1096 = vrot.slane %v1026, 4
    %v1097 = vsel %vm1062, %v1082, %v1096
    %v1098 = vrot.slane %v1027, 4
    %v1099 = vsel %vm1062, %v1084, %v1098
    %v1100 = vrot.slane %v1028, 4
    %v1101 = vsel %vm1062, %v1086, %v1100
    %v1102 = vrot.slane %v1029, 4
    %v1103 = vsel %vm1062, %v1088, %v1102
    %v1104 = vrot.slane %v1030, 4
    %v1105 = vsel %vm1062, %v1090, %v1104
    %v1106 = vrot.slane %v1031, 4
    %v1107 = vsel %vm1062, %v1092, %v1106
    %v1108 = vrot.slane %v1032, 4
    %v1109 = vsel %vm1062, %v1094, %v1108
    %v1110 = vrot.slane %v1033, 4
    %v1111 = vsel %vm1062, %v1096, %v1110
    %v1140 = vmax.f32 %v978, %v1065
    %v1141 = vmax.f32 %v979, %v1068
    %v1142 = vmax.f32 %v980, %v1071
    %v1143 = vmax.f32 %v981, %v1074
    %v1144 = vmax.f32 %v982, %v1077
    %v1145 = vmax.f32 %v983, %v1080
    %v1146 = vmax.f32 %v984, %v1083
    %v1147 = vmax.f32 %v985, %v1085
    %v1148 = vmax.f32 %v986, %v1087
    %v1149 = vmax.f32 %v987, %v1089
    %v1150 = vmax.f32 %v988, %v1091
    %v1151 = vmax.f32 %v989, %v1093
    %v1152 = vmax.f32 %v990, %v1095
    %v1153 = vmax.f32 %v991, %v1097
    %v1154 = vmax.f32 %v992, %v1099
    %v1155 = vmax.f32 %v993, %v1101
    %v1156 = vmax.f32 %v994, %v1103
    %v1157 = vmax.f32 %v995, %v1105
    %v1158 = vmax.f32 %v996, %v1107
    %v1159 = vmax.f32 %v997, %v1109
    %v1160 = vmax.f32 %v998, %v1111
    %v1161 = vmax.f32 %v999, %v1098
    %v1162 = vmax.f32 %v1000, %v1100
    %v1163 = vmax.f32 %v1001, %v1102
    %v1164 = vmax.f32 %v1002, %v1104
    %v1165 = vmax.f32 %v1003, %v1106
    %v1166 = vmax.f32 %v1004, %v1108
    %v1167 = vmax.f32 %v1005, %v1110
    %1184 = vrot.lane.b32.xlu0 %v1143, 64
    %v1185 = vpop.permute.xlu0 %1184
    %1186 = vrot.lane.b32.xlu0 %v1144, 64
    %v1187 = vpop.permute.xlu0 %1186
    %1188 = vrot.lane.b32.xlu0 %v1145, 64
    %v1189 = vpop.permute.xlu0 %1188
    %1190 = vrot.lane.b32.xlu0 %v1146, 64
    %v1191 = vpop.permute.xlu0 %1190
    %1192 = vrot.lane.b32.xlu0 %v1150, 64
    %v1193 = vpop.permute.xlu0 %1192
    %1194 = vrot.lane.b32.xlu0 %v1151, 64
    %v1195 = vpop.permute.xlu0 %1194
    %1196 = vrot.lane.b32.xlu0 %v1152, 64
    %v1197 = vpop.permute.xlu0 %1196
    %1198 = vrot.lane.b32.xlu0 %v1153, 64
    %v1199 = vpop.permute.xlu0 %1198
    %1200 = vrot.lane.b32.xlu0 %v1157, 64
    %v1201 = vpop.permute.xlu0 %1200
    %1202 = vrot.lane.b32.xlu0 %v1158, 64
    %v1203 = vpop.permute.xlu0 %1202
    %1204 = vrot.lane.b32.xlu0 %v1159, 64
    %v1205 = vpop.permute.xlu0 %1204
    %1206 = vrot.lane.b32.xlu0 %v1160, 64
    %v1207 = vpop.permute.xlu0 %1206
    %1208 = vrot.lane.b32.xlu0 %v1164, 64
    %v1209 = vpop.permute.xlu0 %1208
    %1210 = vrot.lane.b32.xlu0 %v1165, 64
    %v1211 = vpop.permute.xlu0 %1210
    %1212 = vrot.lane.b32.xlu0 %v1166, 64
    %v1213 = vpop.permute.xlu0 %1212
    %1214 = vrot.lane.b32.xlu0 %v1167, 64
    %v1215 = vpop.permute.xlu0 %1214
    %vm1216 = vcmask 523264
    %v1217 = vsel %vm1216, %v1185, %v1187
    %v1218 = vsel %vm1216, %v1187, %v1189
    %v1219 = vsel %vm1216, %v1189, %v1191
    %v1220 = vsel %vm1216, %v1193, %v1195
    %v1221 = vsel %vm1216, %v1195, %v1197
    %v1222 = vsel %vm1216, %v1197, %v1199
    %v1223 = vsel %vm1216, %v1201, %v1203
    %v1224 = vsel %vm1216, %v1203, %v1205
    %v1225 = vsel %vm1216, %v1205, %v1207
    %v1226 = vsel %vm1216, %v1209, %v1211
    %v1227 = vsel %vm1216, %v1211, %v1213
    %v1228 = vsel %vm1216, %v1213, %v1215
    %v1245 = vmax.f32 %v1140, %v1217
    %v1246 = vmax.f32 %v1141, %v1218
    %v1247 = vmax.f32 %v1142, %v1219
    %v1248 = vmax.f32 %v1143, %v1191
    %v1249 = vmax.f32 %v1147, %v1220
    %v1250 = vmax.f32 %v1148, %v1221
    %v1251 = vmax.f32 %v1149, %v1222
    %v1252 = vmax.f32 %v1150, %v1199
    %v1253 = vmax.f32 %v1154, %v1223
    %v1254 = vmax.f32 %v1155, %v1224
    %v1255 = vmax.f32 %v1156, %v1225
    %v1256 = vmax.f32 %v1157, %v1207
    %v1257 = vmax.f32 %v1161, %v1226
    %v1258 = vmax.f32 %v1162, %v1227
    %v1259 = vmax.f32 %v1163, %v1228
    %v1260 = vmax.f32 %v1164, %v1215
    %v1261 = vpack.c.bf16 %v1249, %v1245
    %v1262 = vpack.c.bf16 %v1250, %v1246
    %v1263 = vpack.c.bf16 %v1251, %v1247
    %v1264 = vpack.c.bf16 %v1252, %v1248
    %v1265 = vpack.c.bf16 %v1257, %v1253
    %v1266 = vpack.c.bf16 %v1258, %v1254
    %v1267 = vpack.c.bf16 %v1259, %v1255
    %v1268 = vpack.c.bf16 %v1260, %v1256
    %v1277 = vunpack.c.l.b16 %v1261
    %v1278 = vunpack.c.l.b16 %v1262
    %v1279 = vunpack.c.l.b16 %v1263
    %v1280 = vunpack.c.l.b16 %v1264
    %v1281 = vunpack.c.h.b16 %v1261
    %v1282 = vunpack.c.h.b16 %v1262
    %v1283 = vunpack.c.h.b16 %v1263
    %v1284 = vunpack.c.h.b16 %v1264
    %v1285 = vunpack.c.l.b16 %v1265
    %v1286 = vunpack.c.l.b16 %v1266
    %v1287 = vunpack.c.l.b16 %v1267
    %v1288 = vunpack.c.l.b16 %v1268
    %v1289 = vunpack.c.h.b16 %v1265
    %v1290 = vunpack.c.h.b16 %v1266
    %v1291 = vunpack.c.h.b16 %v1267
    %v1292 = vunpack.c.h.b16 %v1268
    %v1293 = vpack.c.b16 %v1278, %v1277
    %v1294 = vpack.c.b16 %v1280, %v1279
    %v1295 = vpack.c.b16 %v1282, %v1281
    %v1296 = vpack.c.b16 %v1284, %v1283
    %v1297 = vpack.c.b16 %v1286, %v1285
    %v1298 = vpack.c.b16 %v1288, %v1287
    %v1299 = vpack.c.b16 %v1290, %v1289
    %v1300 = vpack.c.b16 %v1292, %v1291
    %1309 = vst [vmem:[#allocation3] sm:$0xff] %v1293
    %vm1310 = vcmask 523268
    %vm1311 = vmor %vm1310, %vm1062
    %1312 = vst.msk [vmem:[#allocation3 + $0x8] sm:$0xff] %vm1311, %v1294
    %1313 = vst [vmem:[#allocation3 + $0x10] sm:$0xff] %v1295
    %1314 = vst.msk [vmem:[#allocation3 + $0x18] sm:$0xff] %vm1311, %v1296
    %1315 = vst [vmem:[#allocation3 + $0x20] sm:$0xff] %v1297
    %1316 = vst.msk [vmem:[#allocation3 + $0x28] sm:$0xff] %vm1311, %v1298
    %1317 = vst [vmem:[#allocation3 + $0x30] sm:$0x33] %v1299
    %vm1318 = vcmask 1041408
    %vm1319 = vcmask 521220
    %vm1320 = vmor %vm1319, %vm1318
    %1321 = vst.msk [vmem:[#allocation3 + $0x38] sm:$0x33] %vm1320, %v1300
    %v1322 = vld [vmem:[#allocation3] sm:$0x11]
    %v1323 = vld [vmem:[#allocation3 + $0x8] sm:$0x11]
    %v1324 = vld [vmem:[#allocation9] sm:$0xf]
    %v1325 = vld [vmem:[#allocation9 + $0x4] sm:$0xf]
    %v1326 = vld [vmem:[#allocation9 + $0x8] sm:$0xf]
    %v1327 = vld [vmem:[#allocation9 + $0xc] sm:$0xf]
    %v1328 = vld [vmem:[#allocation9 + $0x10] sm:$0xf]
    %v1329 = vld [vmem:[#allocation9 + $0x14] sm:$0xf]
    %v1330 = vld [vmem:[#allocation9 + $0x18] sm:$0xf]
    %v1331 = vld [vmem:[#allocation9 + $0x1c] sm:$0xf]
    %v1332 = vld [vmem:[#allocation9 + $0x20] sm:$0xf]
    %v1333 = vld [vmem:[#allocation9 + $0x24] sm:$0xf]
    %v1334 = vld [vmem:[#allocation9 + $0x28] sm:$0xf]
    %v1335 = vld [vmem:[#allocation9 + $0x2c] sm:$0xf]
    %v1336 = vld [vmem:[#allocation9 + $0x30] sm:$0xf]
    %v1337 = vld [vmem:[#allocation9 + $0x34] sm:$0xf]
    %v1338 = vld [vmem:[#allocation9 + $0x38] sm:$0xf]
    %v1339 = vld [vmem:[#allocation9 + $0x3c] sm:$0xf]
    %v1340 = vld [vmem:[#allocation9 + $0x40] sm:$0xf]
    %v1341 = vld [vmem:[#allocation9 + $0x44] sm:$0xf]
    %v1342 = vld [vmem:[#allocation9 + $0x48] sm:$0xf]
    %v1343 = vld [vmem:[#allocation9 + $0x4c] sm:$0xf]
    %v1344 = vld [vmem:[#allocation9 + $0x50] sm:$0xf]
    %v1345 = vld [vmem:[#allocation9 + $0x54] sm:$0xf]
    %v1346 = vld [vmem:[#allocation9 + $0x58] sm:$0xf]
    %v1347 = vld [vmem:[#allocation9 + $0x5c] sm:$0xf]
    %v1348 = vld [vmem:[#allocation9 + $0x60] sm:$0xf]
    %v1349 = vld [vmem:[#allocation9 + $0x64] sm:$0xf]
    %v1350 = vld [vmem:[#allocation9 + $0x68] sm:$0xf]
    %v1351 = vld [vmem:[#allocation9 + $0x6c] sm:$0xf]
    %v1352 = vld [vmem:[#allocation9 + $0x70] sm:$0xf]
    %v1353 = vld [vmem:[#allocation9 + $0x74] sm:$0xf]
    %v1354 = vld [vmem:[#allocation9 + $0x78] sm:$0xf]
    %v1355 = vld [vmem:[#allocation9 + $0x7c] sm:$0xf]
    %v1356 = vld [vmem:[#allocation9 + $0x80] sm:$0xf]
    %v1357 = vld [vmem:[#allocation9 + $0x84] sm:$0xf]
    %v1358 = vld [vmem:[#allocation9 + $0x88] sm:$0xf]
    %v1359 = vld [vmem:[#allocation9 + $0x8c] sm:$0xf]
    %v1360 = vld [vmem:[#allocation9 + $0x90] sm:$0xf]
    %v1361 = vld [vmem:[#allocation9 + $0x94] sm:$0xf]
    %v1362 = vld [vmem:[#allocation9 + $0x98] sm:$0xf]
    %v1363 = vld [vmem:[#allocation9 + $0x9c] sm:$0xf]
    %v1364 = vld [vmem:[#allocation9 + $0xa0] sm:$0xf]
    %v1365 = vld [vmem:[#allocation9 + $0xa4] sm:$0xf]
    %v1366 = vld [vmem:[#allocation9 + $0xa8] sm:$0xf]
    %v1367 = vld [vmem:[#allocation9 + $0xac] sm:$0xf]
    %v1368 = vld [vmem:[#allocation9 + $0xb0] sm:$0xf]
    %v1369 = vld [vmem:[#allocation9 + $0xb4] sm:$0xf]
    %v1370 = vld [vmem:[#allocation9 + $0xb8] sm:$0xf]
    %v1371 = vld [vmem:[#allocation9 + $0xbc] sm:$0xf]
    %v1372 = vld [vmem:[#allocation9 + $0xc0] sm:$0xf]
    %v1373 = vld [vmem:[#allocation9 + $0xc4] sm:$0xf]
    %v1374 = vld [vmem:[#allocation9 + $0xc8] sm:$0xf]
    %v1375 = vld [vmem:[#allocation9 + $0xcc] sm:$0xf]
    %v1376 = vld [vmem:[#allocation9 + $0xd0] sm:$0xf]
    %v1377 = vld [vmem:[#allocation9 + $0xd4] sm:$0xf]
    %v1378 = vld [vmem:[#allocation9 + $0xd8] sm:$0xf]
    %v1379 = vld [vmem:[#allocation9 + $0xdc] sm:$0xf]
    %v1380 = vld [vmem:[#allocation3] sm:$0x22]
    %v1381 = vld [vmem:[#allocation3 + $0x8] sm:$0x22]
    %s1382 = scalar_lea.vmem [#allocation9], 224
    %v1383 = vld [vmem:[%s1382] sm:$0xf]
    %v1384 = vld [vmem:[%s1382 + $0x4] sm:$0xf]
    %v1385 = vld [vmem:[%s1382 + $0x8] sm:$0xf]
    %v1386 = vld [vmem:[%s1382 + $0xc] sm:$0xf]
    %v1387 = vld [vmem:[%s1382 + $0x10] sm:$0xf]
    %v1388 = vld [vmem:[%s1382 + $0x14] sm:$0xf]
    %v1389 = vld [vmem:[%s1382 + $0x18] sm:$0xf]
    %v1390 = vld [vmem:[%s1382 + $0x1c] sm:$0xf]
    %v1391 = vld [vmem:[%s1382 + $0x20] sm:$0xf]
    %v1392 = vld [vmem:[%s1382 + $0x24] sm:$0xf]
    %v1393 = vld [vmem:[%s1382 + $0x28] sm:$0xf]
    %v1394 = vld [vmem:[%s1382 + $0x2c] sm:$0xf]
    %v1395 = vld [vmem:[%s1382 + $0x30] sm:$0xf]
    %v1396 = vld [vmem:[%s1382 + $0x34] sm:$0xf]
    %v1397 = vld [vmem:[%s1382 + $0x38] sm:$0xf]
    %v1398 = vld [vmem:[%s1382 + $0x3c] sm:$0xf]
    %v1399 = vld [vmem:[%s1382 + $0x40] sm:$0xf]
    %v1400 = vld [vmem:[%s1382 + $0x44] sm:$0xf]
    %v1401 = vld [vmem:[%s1382 + $0x48] sm:$0xf]
    %v1402 = vld [vmem:[%s1382 + $0x4c] sm:$0xf]
    %v1403 = vld [vmem:[%s1382 + $0x50] sm:$0xf]
    %v1404 = vld [vmem:[%s1382 + $0x54] sm:$0xf]
    %v1405 = vld [vmem:[%s1382 + $0x58] sm:$0xf]
    %v1406 = vld [vmem:[%s1382 + $0x5c] sm:$0xf]
    %v1407 = vld [vmem:[%s1382 + $0x60] sm:$0xf]
    %v1408 = vld [vmem:[%s1382 + $0x64] sm:$0xf]
    %v1409 = vld [vmem:[%s1382 + $0x68] sm:$0xf]
    %v1410 = vld [vmem:[%s1382 + $0x6c] sm:$0xf]
    %v1411 = vld [vmem:[%s1382 + $0x70] sm:$0xf]
    %v1412 = vld [vmem:[%s1382 + $0x74] sm:$0xf]
    %v1413 = vld [vmem:[%s1382 + $0x78] sm:$0xf]
    %v1414 = vld [vmem:[%s1382 + $0x7c] sm:$0xf]
    %v1415 = vld [vmem:[%s1382 + $0x80] sm:$0xf]
    %v1416 = vld [vmem:[%s1382 + $0x84] sm:$0xf]
    %v1417 = vld [vmem:[%s1382 + $0x88] sm:$0xf]
    %v1418 = vld [vmem:[%s1382 + $0x8c] sm:$0xf]
    %v1419 = vld [vmem:[%s1382 + $0x90] sm:$0xf]
    %v1420 = vld [vmem:[%s1382 + $0x94] sm:$0xf]
    %v1421 = vld [vmem:[%s1382 + $0x98] sm:$0xf]
    %v1422 = vld [vmem:[%s1382 + $0x9c] sm:$0xf]
    %v1423 = vld [vmem:[%s1382 + $0xa0] sm:$0xf]
    %v1424 = vld [vmem:[%s1382 + $0xa4] sm:$0xf]
    %v1425 = vld [vmem:[%s1382 + $0xa8] sm:$0xf]
    %v1426 = vld [vmem:[%s1382 + $0xac] sm:$0xf]
    %v1427 = vld [vmem:[%s1382 + $0xb0] sm:$0xf]
    %v1428 = vld [vmem:[%s1382 + $0xb4] sm:$0xf]
    %v1429 = vld [vmem:[%s1382 + $0xb8] sm:$0xf]
    %v1430 = vld [vmem:[%s1382 + $0xbc] sm:$0xf]
    %v1431 = vld [vmem:[%s1382 + $0xc0] sm:$0xf]
    %v1432 = vld [vmem:[%s1382 + $0xc4] sm:$0xf]
    %v1433 = vld [vmem:[%s1382 + $0xc8] sm:$0xf]
    %v1434 = vld [vmem:[%s1382 + $0xcc] sm:$0xf]
    %v1435 = vld [vmem:[%s1382 + $0xd0] sm:$0xf]
    %v1436 = vld [vmem:[%s1382 + $0xd4] sm:$0xf]
    %v1437 = vld [vmem:[%s1382 + $0xd8] sm:$0xf]
    %v1438 = vld [vmem:[%s1382 + $0xdc] sm:$0xf]
    %v1441 = vunpack.c.l.b16 %v1380
    %v1442 = vunpack.c.h.b16 %v1380
    %v1443 = vunpack.c.l.b16 %v1381
    %v1444 = vunpack.c.h.b16 %v1381
    %v1445 = vpack.c.b16 %v1441, %v1441
    %v1446 = vpack.c.b16 %v1442, %v1442
    %v1447 = vpack.c.b16 %v1443, %v1443
    %v1448 = vpack.c.b16 %v1444, %v1444
    %v1449 = vrot.slane %v1445, 1
    %v1450 = vrot.slane %v1446, 1
    %v1451 = vrot.slane %v1447, 1
    %v1452 = vrot.slane %v1448, 1
    %v1512 = vunpack.c.l.b16 %v1383
    %v1513 = vunpack.c.l.b16 %v1384
    %v1514 = vunpack.c.l.b16 %v1385
    %v1515 = vunpack.c.l.b16 %v1386
    %v1516 = vunpack.c.l.b16 %v1387
    %v1517 = vunpack.c.l.b16 %v1388
    %v1518 = vunpack.c.l.b16 %v1389
    %v1519 = vunpack.c.l.b16 %v1390
    %v1520 = vunpack.c.l.b16 %v1391
    %v1521 = vunpack.c.l.b16 %v1392
    %v1522 = vunpack.c.l.b16 %v1393
    %v1523 = vunpack.c.l.b16 %v1394
    %v1524 = vunpack.c.l.b16 %v1395
    %v1525 = vunpack.c.l.b16 %v1396
    %v1526 = vunpack.c.l.b16 %v1397
    %v1527 = vunpack.c.l.b16 %v1398
    %v1528 = vunpack.c.l.b16 %v1399
    %v1529 = vunpack.c.l.b16 %v1400
    %v1530 = vunpack.c.l.b16 %v1401
    %v1531 = vunpack.c.l.b16 %v1402
    %v1532 = vunpack.c.l.b16 %v1403
    %v1533 = vunpack.c.l.b16 %v1404
    %v1534 = vunpack.c.l.b16 %v1405
    %v1535 = vunpack.c.l.b16 %v1406
    %v1536 = vunpack.c.l.b16 %v1407
    %v1537 = vunpack.c.l.b16 %v1408
    %v1538 = vunpack.c.l.b16 %v1409
    %v1539 = vunpack.c.l.b16 %v1410
    %v1540 = vunpack.c.l.b16 %v1411
    %v1541 = vunpack.c.l.b16 %v1412
    %v1542 = vunpack.c.l.b16 %v1413
    %v1543 = vunpack.c.l.b16 %v1414
    %v1544 = vunpack.c.l.b16 %v1415
    %v1545 = vunpack.c.l.b16 %v1416
    %v1546 = vunpack.c.l.b16 %v1417
    %v1547 = vunpack.c.l.b16 %v1418
    %v1548 = vunpack.c.l.b16 %v1419
    %v1549 = vunpack.c.l.b16 %v1420
    %v1550 = vunpack.c.l.b16 %v1421
    %v1551 = vunpack.c.l.b16 %v1422
    %v1552 = vunpack.c.l.b16 %v1423
    %v1553 = vunpack.c.l.b16 %v1424
    %v1554 = vunpack.c.l.b16 %v1425
    %v1555 = vunpack.c.l.b16 %v1426
    %v1556 = vunpack.c.l.b16 %v1427
    %v1557 = vunpack.c.l.b16 %v1428
    %v1558 = vunpack.c.l.b16 %v1429
    %v1559 = vunpack.c.l.b16 %v1430
    %v1560 = vunpack.c.l.b16 %v1431
    %v1561 = vunpack.c.l.b16 %v1432
    %v1562 = vunpack.c.l.b16 %v1433
    %v1563 = vunpack.c.l.b16 %v1434
    %v1564 = vunpack.c.l.b16 %v1435
    %v1565 = vunpack.c.l.b16 %v1436
    %v1566 = vunpack.c.l.b16 %v1437
    %v1567 = vunpack.c.l.b16 %v1438
    %v1568 = vpack.c.b16 %v1513, %v1512
    %v1569 = vpack.c.b16 %v1515, %v1514
    %v1570 = vpack.c.b16 %v1517, %v1516
    %v1571 = vpack.c.b16 %v1519, %v1518
    %v1572 = vpack.c.b16 %v1521, %v1520
    %v1573 = vpack.c.b16 %v1523, %v1522
    %v1574 = vpack.c.b16 %v1525, %v1524
    %v1575 = vpack.c.b16 %v1527, %v1526
    %v1576 = vpack.c.b16 %v1529, %v1528
    %v1577 = vpack.c.b16 %v1531, %v1530
    %v1578 = vpack.c.b16 %v1533, %v1532
    %v1579 = vpack.c.b16 %v1535, %v1534
    %v1580 = vpack.c.b16 %v1537, %v1536
    %v1581 = vpack.c.b16 %v1539, %v1538
    %v1582 = vpack.c.b16 %v1541, %v1540
    %v1583 = vpack.c.b16 %v1543, %v1542
    %v1584 = vpack.c.b16 %v1545, %v1544
    %v1585 = vpack.c.b16 %v1547, %v1546
    %v1586 = vpack.c.b16 %v1549, %v1548
    %v1587 = vpack.c.b16 %v1551, %v1550
    %v1588 = vpack.c.b16 %v1553, %v1552
    %v1589 = vpack.c.b16 %v1555, %v1554
    %v1590 = vpack.c.b16 %v1557, %v1556
    %v1591 = vpack.c.b16 %v1559, %v1558
    %v1592 = vpack.c.b16 %v1561, %v1560
    %v1593 = vpack.c.b16 %v1563, %v1562
    %v1594 = vpack.c.b16 %v1565, %v1564
    %v1595 = vpack.c.b16 %v1567, %v1566
    %v1625 = vsel %vm1216, %v1452, 0
    %1627 = vmatprep.subr.bf16.mxu0 0
    %1628 = vmatpush1.bf16.msra.mxu0 %v1568
    %1629 = vmatprep.subr.bf16.mxu0 0
    %1630 = vmatpush1.bf16.msra.mxu0 %v1569
    %1631 = vmatprep.subr.bf16.mxu0 0
    %1632 = vmatpush1.bf16.msra.mxu0 %v1570
    %1633 = vmatprep.subr.bf16.mxu0 0
    %1634 = vmatpush1.bf16.msra.mxu0 %v1571
    %1635 = vmatprep.subr.bf16.mxu0 0
    %1636 = vmatpush1.bf16.msra.mxu0 %v1572
    %1637 = vmatprep.subr.bf16.mxu0 0
    %1638 = vmatpush1.bf16.msra.mxu0 %v1573
    %1639 = vmatprep.subr.bf16.mxu0 0
    %1640 = vmatpush1.bf16.msra.mxu0 %v1574
    %1641 = vmatprep.subr.bf16.mxu0 0
    %1642 = vmatpush1.bf16.msra.mxu0 %v1575
    %1643 = vmatprep.subr.bf16.mxu0 0
    %1644 = vmatpush1.bf16.msra.mxu0 %v1576
    %1645 = vmatprep.subr.bf16.mxu0 0
    %1646 = vmatpush1.bf16.msra.mxu0 %v1577
    %1647 = vmatprep.subr.bf16.mxu0 0
    %1648 = vmatpush1.bf16.msra.mxu0 %v1578
    %1649 = vmatprep.subr.bf16.mxu0 0
    %1650 = vmatpush1.bf16.msra.mxu0 %v1579
    %1651 = vmatprep.subr.bf16.mxu0 0
    %1652 = vmatpush1.bf16.msra.mxu0 %v1580
    %1653 = vmatprep.subr.bf16.mxu0 0
    %1654 = vmatpush1.bf16.msra.mxu0 %v1581
    %1655 = vmatprep.subr.bf16.mxu0 0
    %1656 = vmatpush1.bf16.msra.mxu0 %v1582
    %1657 = vmatprep.subr.bf16.mxu0 0
    %1658 = vmatpush1.bf16.msra.mxu0 %v1583
    %1659 = vmatprep.mubr.bf16.mxu0 %v1450
    %1660 = vmatmul.mubr.bf16.gmra.mrb[0].mxu0 %v1449
    %v1661 = vpop.f32.mrb[0].mxu0
    %v1662 = vadd.f32 0.0, %v1661
    %v1663 = vpop.f32.mrb[0].mxu0
    %v1664 = vpop.f32.mrb[0].mxu0
    %v1665 = vpop.f32.mrb[0].mxu0
    %1666 = vdwg.mxu0
    %1667 = vmatprep.subr.bf16.mxu0 0
    %1668 = vmatpush1.bf16.msra.mxu0 %v1584
    %1669 = vmatprep.subr.bf16.mxu0 0
    %1670 = vmatpush1.bf16.msra.mxu0 %v1585
    %1671 = vmatprep.subr.bf16.mxu0 0
    %1672 = vmatpush1.bf16.msra.mxu0 %v1586
    %1673 = vmatprep.subr.bf16.mxu0 0
    %1674 = vmatpush1.bf16.msra.mxu0 %v1587
    %1675 = vmatprep.subr.bf16.mxu0 0
    %1676 = vmatpush1.bf16.msra.mxu0 %v1588
    %1677 = vmatprep.subr.bf16.mxu0 0
    %1678 = vmatpush1.bf16.msra.mxu0 %v1589
    %1679 = vmatprep.subr.bf16.mxu0 0
    %1680 = vmatpush1.bf16.msra.mxu0 %v1590
    %1681 = vmatprep.subr.bf16.mxu0 0
    %1682 = vmatpush1.bf16.msra.mxu0 %v1591
    %1683 = vmatprep.subr.bf16.mxu0 0
    %1684 = vmatpush1.bf16.msra.mxu0 %v1592
    %1685 = vmatprep.subr.bf16.mxu0 0
    %1686 = vmatpush1.bf16.msra.mxu0 %v1593
    %1687 = vmatprep.subr.bf16.mxu0 0
    %1688 = vmatpush1.bf16.msra.mxu0 %v1594
    %1689 = vmatprep.subr.bf16.mxu0 0
    %1690 = vmatpush1.bf16.msra.mxu0 %v1595
    %1691 = vmatprep.subr.bf16.mxu0 0
    %1692 = vmatpush1.bf16.msra.mxu0 0
    %1693 = vmatprep.subr.bf16.mxu0 0
    %1694 = vmatpush1.bf16.msra.mxu0 0
    %1695 = vmatprep.subr.bf16.mxu0 0
    %1696 = vmatpush1.bf16.msra.mxu0 0
    %1697 = vmatprep.subr.bf16.mxu0 0
    %1698 = vmatpush1.bf16.msra.mxu0 0
    %1699 = vmatprep.mubr.bf16.mxu0 %v1625
    %1700 = vmatmul.mubr.bf16.gmra.mrb[0].mxu0 %v1451
    %v1701 = vpop.f32.mrb[0].mxu0
    %v1702 = vadd.f32 %v1662, %v1701
    %v1703 = vpop.f32.mrb[0].mxu0
    %v1704 = vpop.f32.mrb[0].mxu0
    %v1705 = vpop.f32.mrb[0].mxu0
    %1706 = vdwg.mxu0
    %v1709 = vunpack.c.l.b16 %v1322
    %v1710 = vunpack.c.h.b16 %v1322
    %v1711 = vunpack.c.l.b16 %v1323
    %v1712 = vunpack.c.h.b16 %v1323
    %v1713 = vpack.c.b16 %v1709, %v1709
    %v1714 = vpack.c.b16 %v1710, %v1710
    %v1715 = vpack.c.b16 %v1711, %v1711
    %v1716 = vpack.c.b16 %v1712, %v1712
    %v1776 = vunpack.c.l.b16 %v1324
    %v1777 = vunpack.c.l.b16 %v1325
    %v1778 = vunpack.c.l.b16 %v1326
    %v1779 = vunpack.c.l.b16 %v1327
    %v1780 = vunpack.c.l.b16 %v1328
    %v1781 = vunpack.c.l.b16 %v1329
    %v1782 = vunpack.c.l.b16 %v1330
    %v1783 = vunpack.c.l.b16 %v1331
    %v1784 = vunpack.c.l.b16 %v1332
    %v1785 = vunpack.c.l.b16 %v1333
    %v1786 = vunpack.c.l.b16 %v1334
    %v1787 = vunpack.c.l.b16 %v1335
    %v1788 = vunpack.c.l.b16 %v1336
    %v1789 = vunpack.c.l.b16 %v1337
    %v1790 = vunpack.c.l.b16 %v1338
    %v1791 = vunpack.c.l.b16 %v1339
    %v1792 = vunpack.c.l.b16 %v1340
    %v1793 = vunpack.c.l.b16 %v1341
    %v1794 = vunpack.c.l.b16 %v1342
    %v1795 = vunpack.c.l.b16 %v1343
    %v1796 = vunpack.c.l.b16 %v1344
    %v1797 = vunpack.c.l.b16 %v1345
    %v1798 = vunpack.c.l.b16 %v1346
    %v1799 = vunpack.c.l.b16 %v1347
    %v1800 = vunpack.c.l.b16 %v1348
    %v1801 = vunpack.c.l.b16 %v1349
    %v1802 = vunpack.c.l.b16 %v1350
    %v1803 = vunpack.c.l.b16 %v1351
    %v1804 = vunpack.c.l.b16 %v1352
    %v1805 = vunpack.c.l.b16 %v1353
    %v1806 = vunpack.c.l.b16 %v1354
    %v1807 = vunpack.c.l.b16 %v1355
    %v1808 = vunpack.c.l.b16 %v1356
    %v1809 = vunpack.c.l.b16 %v1357
    %v1810 = vunpack.c.l.b16 %v1358
    %v1811 = vunpack.c.l.b16 %v1359
    %v1812 = vunpack.c.l.b16 %v1360
    %v1813 = vunpack.c.l.b16 %v1361
    %v1814 = vunpack.c.l.b16 %v1362
    %v1815 = vunpack.c.l.b16 %v1363
    %v1816 = vunpack.c.l.b16 %v1364
    %v1817 = vunpack.c.l.b16 %v1365
    %v1818 = vunpack.c.l.b16 %v1366
    %v1819 = vunpack.c.l.b16 %v1367
    %v1820 = vunpack.c.l.b16 %v1368
    %v1821 = vunpack.c.l.b16 %v1369
    %v1822 = vunpack.c.l.b16 %v1370
    %v1823 = vunpack.c.l.b16 %v1371
    %v1824 = vunpack.c.l.b16 %v1372
    %v1825 = vunpack.c.l.b16 %v1373
    %v1826 = vunpack.c.l.b16 %v1374
    %v1827 = vunpack.c.l.b16 %v1375
    %v1828 = vunpack.c.l.b16 %v1376
    %v1829 = vunpack.c.l.b16 %v1377
    %v1830 = vunpack.c.l.b16 %v1378
    %v1831 = vunpack.c.l.b16 %v1379
    %v1832 = vpack.c.b16 %v1777, %v1776
    %v1833 = vpack.c.b16 %v1779, %v1778
    %v1834 = vpack.c.b16 %v1781, %v1780
    %v1835 = vpack.c.b16 %v1783, %v1782
    %v1836 = vpack.c.b16 %v1785, %v1784
    %v1837 = vpack.c.b16 %v1787, %v1786
    %v1838 = vpack.c.b16 %v1789, %v1788
    %v1839 = vpack.c.b16 %v1791, %v1790
    %v1840 = vpack.c.b16 %v1793, %v1792
    %v1841 = vpack.c.b16 %v1795, %v1794
    %v1842 = vpack.c.b16 %v1797, %v1796
    %v1843 = vpack.c.b16 %v1799, %v1798
    %v1844 = vpack.c.b16 %v1801, %v1800
    %v1845 = vpack.c.b16 %v1803, %v1802
    %v1846 = vpack.c.b16 %v1805, %v1804
    %v1847 = vpack.c.b16 %v1807, %v1806
    %v1848 = vpack.c.b16 %v1809, %v1808
    %v1849 = vpack.c.b16 %v1811, %v1810
    %v1850 = vpack.c.b16 %v1813, %v1812
    %v1851 = vpack.c.b16 %v1815, %v1814
    %v1852 = vpack.c.b16 %v1817, %v1816
    %v1853 = vpack.c.b16 %v1819, %v1818
    %v1854 = vpack.c.b16 %v1821, %v1820
    %v1855 = vpack.c.b16 %v1823, %v1822
    %v1856 = vpack.c.b16 %v1825, %v1824
    %v1857 = vpack.c.b16 %v1827, %v1826
    %v1858 = vpack.c.b16 %v1829, %v1828
    %v1859 = vpack.c.b16 %v1831, %v1830
    %v1889 = vsel %vm1216, %v1716, 0
    %1891 = vmatprep.subr.bf16.mxu0 0
    %1892 = vmatpush1.bf16.msra.mxu0 %v1832
    %1893 = vmatprep.subr.bf16.mxu0 0
    %1894 = vmatpush1.bf16.msra.mxu0 %v1833
    %1895 = vmatprep.subr.bf16.mxu0 0
    %1896 = vmatpush1.bf16.msra.mxu0 %v1834
    %1897 = vmatprep.subr.bf16.mxu0 0
    %1898 = vmatpush1.bf16.msra.mxu0 %v1835
    %1899 = vmatprep.subr.bf16.mxu0 0
    %1900 = vmatpush1.bf16.msra.mxu0 %v1836
    %1901 = vmatprep.subr.bf16.mxu0 0
    %1902 = vmatpush1.bf16.msra.mxu0 %v1837
    %1903 = vmatprep.subr.bf16.mxu0 0
    %1904 = vmatpush1.bf16.msra.mxu0 %v1838
    %1905 = vmatprep.subr.bf16.mxu0 0
    %1906 = vmatpush1.bf16.msra.mxu0 %v1839
    %1907 = vmatprep.subr.bf16.mxu0 0
    %1908 = vmatpush1.bf16.msra.mxu0 %v1840
    %1909 = vmatprep.subr.bf16.mxu0 0
    %1910 = vmatpush1.bf16.msra.mxu0 %v1841
    %1911 = vmatprep.subr.bf16.mxu0 0
    %1912 = vmatpush1.bf16.msra.mxu0 %v1842
    %1913 = vmatprep.subr.bf16.mxu0 0
    %1914 = vmatpush1.bf16.msra.mxu0 %v1843
    %1915 = vmatprep.subr.bf16.mxu0 0
    %1916 = vmatpush1.bf16.msra.mxu0 %v1844
    %1917 = vmatprep.subr.bf16.mxu0 0
    %1918 = vmatpush1.bf16.msra.mxu0 %v1845
    %1919 = vmatprep.subr.bf16.mxu0 0
    %1920 = vmatpush1.bf16.msra.mxu0 %v1846
    %1921 = vmatprep.subr.bf16.mxu0 0
    %1922 = vmatpush1.bf16.msra.mxu0 %v1847
    %1923 = vmatprep.mubr.bf16.mxu0 %v1714
    %1924 = vmatmul.mubr.bf16.gmra.mrb[0].mxu0 %v1713
    %v1925 = vpop.f32.mrb[0].mxu0
    %v1926 = vadd.f32 %v1702, %v1925
    %v1927 = vpop.f32.mrb[0].mxu0
    %v1928 = vpop.f32.mrb[0].mxu0
    %v1929 = vpop.f32.mrb[0].mxu0
    %1930 = vdwg.mxu0
    %1931 = vmatprep.subr.bf16.mxu0 0
    %1932 = vmatpush1.bf16.msra.mxu0 %v1848
    %1933 = vmatprep.subr.bf16.mxu0 0
    %1934 = vmatpush1.bf16.msra.mxu0 %v1849
    %1935 = vmatprep.subr.bf16.mxu0 0
    %1936 = vmatpush1.bf16.msra.mxu0 %v1850
    %1937 = vmatprep.subr.bf16.mxu0 0
    %1938 = vmatpush1.bf16.msra.mxu0 %v1851
    %1939 = vmatprep.subr.bf16.mxu0 0
    %1940 = vmatpush1.bf16.msra.mxu0 %v1852
    %1941 = vmatprep.subr.bf16.mxu0 0
    %1942 = vmatpush1.bf16.msra.mxu0 %v1853
    %1943 = vmatprep.subr.bf16.mxu0 0
    %1944 = vmatpush1.bf16.msra.mxu0 %v1854
    %1945 = vmatprep.subr.bf16.mxu0 0
    %1946 = vmatpush1.bf16.msra.mxu0 %v1855
    %1947 = vmatprep.subr.bf16.mxu0 0
    %1948 = vmatpush1.bf16.msra.mxu0 %v1856
    %1949 = vmatprep.subr.bf16.mxu0 0
    %1950 = vmatpush1.bf16.msra.mxu0 %v1857
    %1951 = vmatprep.subr.bf16.mxu0 0
    %1952 = vmatpush1.bf16.msra.mxu0 %v1858
    %1953 = vmatprep.subr.bf16.mxu0 0
    %1954 = vmatpush1.bf16.msra.mxu0 %v1859
    %1955 = vmatprep.subr.bf16.mxu0 0
    %1956 = vmatpush1.bf16.msra.mxu0 0
    %1957 = vmatprep.subr.bf16.mxu0 0
    %1958 = vmatpush1.bf16.msra.mxu0 0
    %1959 = vmatprep.subr.bf16.mxu0 0
    %1960 = vmatpush1.bf16.msra.mxu0 0
    %1961 = vmatprep.subr.bf16.mxu0 0
    %1962 = vmatpush1.bf16.msra.mxu0 0
    %1963 = vmatprep.mubr.bf16.mxu0 %v1889
    %1964 = vmatmul.mubr.bf16.gmra.mrb[0].mxu0 %v1715
    %v1965 = vpop.f32.mrb[0].mxu0
    %v1966 = vadd.f32 %v1926, %v1965
    %v1967 = vpop.f32.mrb[0].mxu0
    %v1968 = vpop.f32.mrb[0].mxu0
    %v1969 = vpop.f32.mrb[0].mxu0
    %1970 = vdwg.mxu0
    %v1971 = vld [vmem:[#allocation3] sm:$0x44]
    %v1972 = vld [vmem:[#allocation3 + $0x8] sm:$0x44]
    %s1973 = scalar_lea.vmem [#allocation9], 448
    %v1974 = vld [vmem:[%s1973] sm:$0xf]
    %v1975 = vld [vmem:[%s1973 + $0x4] sm:$0xf]
    %v1976 = vld [vmem:[%s1973 + $0x8] sm:$0xf]
    %v1977 = vld [vmem:[%s1973 + $0xc] sm:$0xf]
    %v1978 = vld [vmem:[%s1973 + $0x10] sm:$0xf]
    %v1979 = vld [vmem:[%s1973 + $0x14] sm:$0xf]
    %v1980 = vld [vmem:[%s1973 + $0x18] sm:$0xf]
    %v1981 = vld [vmem:[%s1973 + $0x1c] sm:$0xf]
    %v1982 = vld [vmem:[%s1973 + $0x20] sm:$0xf]
    %v1983 = vld [vmem:[%s1973 + $0x24] sm:$0xf]
    %v1984 = vld [vmem:[%s1973 + $0x28] sm:$0xf]
    %v1985 = vld [vmem:[%s1973 + $0x2c] sm:$0xf]
    %v1986 = vld [vmem:[%s1973 + $0x30] sm:$0xf]
    %v1987 = vld [vmem:[%s1973 + $0x34] sm:$0xf]
    %v1988 = vld [vmem:[%s1973 + $0x38] sm:$0xf]
    %v1989 = vld [vmem:[%s1973 + $0x3c] sm:$0xf]
    %v1990 = vld [vmem:[%s1973 + $0x40] sm:$0xf]
    %v1991 = vld [vmem:[%s1973 + $0x44] sm:$0xf]
    %v1992 = vld [vmem:[%s1973 + $0x48] sm:$0xf]
    %v1993 = vld [vmem:[%s1973 + $0x4c] sm:$0xf]
    %v1994 = vld [vmem:[%s1973 + $0x50] sm:$0xf]
    %v1995 = vld [vmem:[%s1973 + $0x54] sm:$0xf]
    %v1996 = vld [vmem:[%s1973 + $0x58] sm:$0xf]
    %v1997 = vld [vmem:[%s1973 + $0x5c] sm:$0xf]
    %v1998 = vld [vmem:[%s1973 + $0x60] sm:$0xf]
    %v1999 = vld [vmem:[%s1973 + $0x64] sm:$0xf]
    %v2000 = vld [vmem:[%s1973 + $0x68] sm:$0xf]
    %v2001 = vld [vmem:[%s1973 + $0x6c] sm:$0xf]
    %v2002 = vld [vmem:[%s1973 + $0x70] sm:$0xf]
    %v2003 = vld [vmem:[%s1973 + $0x74] sm:$0xf]
    %v2004 = vld [vmem:[%s1973 + $0x78] sm:$0xf]
    %v2005 = vld [vmem:[%s1973 + $0x7c] sm:$0xf]
    %v2006 = vld [vmem:[%s1973 + $0x80] sm:$0xf]
    %v2007 = vld [vmem:[%s1973 + $0x84] sm:$0xf]
    %v2008 = vld [vmem:[%s1973 + $0x88] sm:$0xf]
    %v2009 = vld [vmem:[%s1973 + $0x8c] sm:$0xf]
    %v2010 = vld [vmem:[%s1973 + $0x90] sm:$0xf]
    %v2011 = vld [vmem:[%s1973 + $0x94] sm:$0xf]
    %v2012 = vld [vmem:[%s1973 + $0x98] sm:$0xf]
    %v2013 = vld [vmem:[%s1973 + $0x9c] sm:$0xf]
    %v2014 = vld [vmem:[%s1973 + $0xa0] sm:$0xf]
    %v2015 = vld [vmem:[%s1973 + $0xa4] sm:$0xf]
    %v2016 = vld [vmem:[%s1973 + $0xa8] sm:$0xf]
    %v2017 = vld [vmem:[%s1973 + $0xac] sm:$0xf]
    %v2018 = vld [vmem:[%s1973 + $0xb0] sm:$0xf]
    %v2019 = vld [vmem:[%s1973 + $0xb4] sm:$0xf]
    %v2020 = vld [vmem:[%s1973 + $0xb8] sm:$0xf]
    %v2021 = vld [vmem:[%s1973 + $0xbc] sm:$0xf]
    %v2022 = vld [vmem:[%s1973 + $0xc0] sm:$0xf]
    %v2023 = vld [vmem:[%s1973 + $0xc4] sm:$0xf]
    %v2024 = vld [vmem:[%s1973 + $0xc8] sm:$0xf]
    %v2025 = vld [vmem:[%s1973 + $0xcc] sm:$0xf]
    %v2026 = vld [vmem:[%s1973 + $0xd0] sm:$0xf]
    %v2027 = vld [vmem:[%s1973 + $0xd4] sm:$0xf]
    %v2028 = vld [vmem:[%s1973 + $0xd8] sm:$0xf]
    %v2029 = vld [vmem:[%s1973 + $0xdc] sm:$0xf]
    %v2032 = vunpack.c.l.b16 %v1971
    %v2033 = vunpack.c.h.b16 %v1971
    %v2034 = vunpack.c.l.b16 %v1972
    %v2035 = vunpack.c.h.b16 %v1972
    %v2036 = vpack.c.b16 %v2032, %v2032
    %v2037 = vpack.c.b16 %v2033, %v2033
    %v2038 = vpack.c.b16 %v2034, %v2034
    %v2039 = vpack.c.b16 %v2035, %v2035
    %v2040 = vrot.slane %v2036, 2
    %v2041 = vrot.slane %v2037, 2
    %v2042 = vrot.slane %v2038, 2
    %v2043 = vrot.slane %v2039, 2
    %v2103 = vunpack.c.l.b16 %v1974
    %v2104 = vunpack.c.l.b16 %v1975
    %v2105 = vunpack.c.l.b16 %v1976
    %v2106 = vunpack.c.l.b16 %v1977
    %v2107 = vunpack.c.l.b16 %v1978
    %v2108 = vunpack.c.l.b16 %v1979
    %v2109 = vunpack.c.l.b16 %v1980
    %v2110 = vunpack.c.l.b16 %v1981
    %v2111 = vunpack.c.l.b16 %v1982
    %v2112 = vunpack.c.l.b16 %v1983
    %v2113 = vunpack.c.l.b16 %v1984
    %v2114 = vunpack.c.l.b16 %v1985
    %v2115 = vunpack.c.l.b16 %v1986
    %v2116 = vunpack.c.l.b16 %v1987
    %v2117 = vunpack.c.l.b16 %v1988
    %v2118 = vunpack.c.l.b16 %v1989
    %v2119 = vunpack.c.l.b16 %v1990
    %v2120 = vunpack.c.l.b16 %v1991
    %v2121 = vunpack.c.l.b16 %v1992
    %v2122 = vunpack.c.l.b16 %v1993
    %v2123 = vunpack.c.l.b16 %v1994
    %v2124 = vunpack.c.l.b16 %v1995
    %v2125 = vunpack.c.l.b16 %v1996
    %v2126 = vunpack.c.l.b16 %v1997
    %v2127 = vunpack.c.l.b16 %v1998
    %v2128 = vunpack.c.l.b16 %v1999
    %v2129 = vunpack.c.l.b16 %v2000
    %v2130 = vunpack.c.l.b16 %v2001
    %v2131 = vunpack.c.l.b16 %v2002
    %v2132 = vunpack.c.l.b16 %v2003
    %v2133 = vunpack.c.l.b16 %v2004
    %v2134 = vunpack.c.l.b16 %v2005
    %v2135 = vunpack.c.l.b16 %v2006
    %v2136 = vunpack.c.l.b16 %v2007
    %v2137 = vunpack.c.l.b16 %v2008
    %v2138 = vunpack.c.l.b16 %v2009
    %v2139 = vunpack.c.l.b16 %v2010
    %v2140 = vunpack.c.l.b16 %v2011
    %v2141 = vunpack.c.l.b16 %v2012
    %v2142 = vunpack.c.l.b16 %v2013
    %v2143 = vunpack.c.l.b16 %v2014
    %v2144 = vunpack.c.l.b16 %v2015
    %v2145 = vunpack.c.l.b16 %v2016
    %v2146 = vunpack.c.l.b16 %v2017
    %v2147 = vunpack.c.l.b16 %v2018
    %v2148 = vunpack.c.l.b16 %v2019
    %v2149 = vunpack.c.l.b16 %v2020
    %v2150 = vunpack.c.l.b16 %v2021
    %v2151 = vunpack.c.l.b16 %v2022
    %v2152 = vunpack.c.l.b16 %v2023
    %v2153 = vunpack.c.l.b16 %v2024
    %v2154 = vunpack.c.l.b16 %v2025
    %v2155 = vunpack.c.l.b16 %v2026
    %v2156 = vunpack.c.l.b16 %v2027
    %v2157 = vunpack.c.l.b16 %v2028
    %v2158 = vunpack.c.l.b16 %v2029
    %v2159 = vpack.c.b16 %v2104, %v2103
    %v2160 = vpack.c.b16 %v2106, %v2105
    %v2161 = vpack.c.b16 %v2108, %v2107
    %v2162 = vpack.c.b16 %v2110, %v2109
    %v2163 = vpack.c.b16 %v2112, %v2111
    %v2164 = vpack.c.b16 %v2114, %v2113
    %v2165 = vpack.c.b16 %v2116, %v2115
    %v2166 = vpack.c.b16 %v2118, %v2117
    %v2167 = vpack.c.b16 %v2120, %v2119
    %v2168 = vpack.c.b16 %v2122, %v2121
    %v2169 = vpack.c.b16 %v2124, %v2123
    %v2170 = vpack.c.b16 %v2126, %v2125
    %v2171 = vpack.c.b16 %v2128, %v2127
    %v2172 = vpack.c.b16 %v2130, %v2129
    %v2173 = vpack.c.b16 %v2132, %v2131
    %v2174 = vpack.c.b16 %v2134, %v2133
    %v2175 = vpack.c.b16 %v2136, %v2135
    %v2176 = vpack.c.b16 %v2138, %v2137
    %v2177 = vpack.c.b16 %v2140, %v2139
    %v2178 = vpack.c.b16 %v2142, %v2141
    %v2179 = vpack.c.b16 %v2144, %v2143
    %v2180 = vpack.c.b16 %v2146, %v2145
    %v2181 = vpack.c.b16 %v2148, %v2147
    %v2182 = vpack.c.b16 %v2150, %v2149
    %v2183 = vpack.c.b16 %v2152, %v2151
    %v2184 = vpack.c.b16 %v2154, %v2153
    %v2185 = vpack.c.b16 %v2156, %v2155
    %v2186 = vpack.c.b16 %v2158, %v2157
    %v2216 = vsel %vm1216, %v2043, 0
    %2218 = vmatprep.subr.bf16.mxu0 0
    %2219 = vmatpush1.bf16.msra.mxu0 %v2159
    %2220 = vmatprep.subr.bf16.mxu0 0
    %2221 = vmatpush1.bf16.msra.mxu0 %v2160
    %2222 = vmatprep.subr.bf16.mxu0 0
    %2223 = vmatpush1.bf16.msra.mxu0 %v2161
    %2224 = vmatprep.subr.bf16.mxu0 0
    %2225 = vmatpush1.bf16.msra.mxu0 %v2162
    %2226 = vmatprep.subr.bf16.mxu0 0
    %2227 = vmatpush1.bf16.msra.mxu0 %v2163
    %2228 = vmatprep.subr.bf16.mxu0 0
    %2229 = vmatpush1.bf16.msra.mxu0 %v2164
    %2230 = vmatprep.subr.bf16.mxu0 0
    %2231 = vmatpush1.bf16.msra.mxu0 %v2165
    %2232 = vmatprep.subr.bf16.mxu0 0
    %2233 = vmatpush1.bf16.msra.mxu0 %v2166
    %2234 = vmatprep.subr.bf16.mxu0 0
    %2235 = vmatpush1.bf16.msra.mxu0 %v2167
    %2236 = vmatprep.subr.bf16.mxu0 0
    %2237 = vmatpush1.bf16.msra.mxu0 %v2168
    %2238 = vmatprep.subr.bf16.mxu0 0
    %2239 = vmatpush1.bf16.msra.mxu0 %v2169
    %2240 = vmatprep.subr.bf16.mxu0 0
    %2241 = vmatpush1.bf16.msra.mxu0 %v2170
    %2242 = vmatprep.subr.bf16.mxu0 0
    %2243 = vmatpush1.bf16.msra.mxu0 %v2171
    %2244 = vmatprep.subr.bf16.mxu0 0
    %2245 = vmatpush1.bf16.msra.mxu0 %v2172
    %2246 = vmatprep.subr.bf16.mxu0 0
    %2247 = vmatpush1.bf16.msra.mxu0 %v2173
    %2248 = vmatprep.subr.bf16.mxu0 0
    %2249 = vmatpush1.bf16.msra.mxu0 %v2174
    %2250 = vmatprep.mubr.bf16.mxu0 %v2041
    %2251 = vmatmul.mubr.bf16.gmra.mrb[0].mxu0 %v2040
    %v2252 = vpop.f32.mrb[0].mxu0
    %v2253 = vadd.f32 0.0, %v2252
    %v2254 = vpop.f32.mrb[0].mxu0
    %v2255 = vpop.f32.mrb[0].mxu0
    %v2256 = vpop.f32.mrb[0].mxu0
    %2257 = vdwg.mxu0
    %2258 = vmatprep.subr.bf16.mxu0 0
    %2259 = vmatpush1.bf16.msra.mxu0 %v2175
    %2260 = vmatprep.subr.bf16.mxu0 0
    %2261 = vmatpush1.bf16.msra.mxu0 %v2176
    %2262 = vmatprep.subr.bf16.mxu0 0
    %2263 = vmatpush1.bf16.msra.mxu0 %v2177
    %2264 = vmatprep.subr.bf16.mxu0 0
    %2265 = vmatpush1.bf16.msra.mxu0 %v2178
    %2266 = vmatprep.subr.bf16.mxu0 0
    %2267 = vmatpush1.bf16.msra.mxu0 %v2179
    %2268 = vmatprep.subr.bf16.mxu0 0
    %2269 = vmatpush1.bf16.msra.mxu0 %v2180
    %2270 = vmatprep.subr.bf16.mxu0 0
    %2271 = vmatpush1.bf16.msra.mxu0 %v2181
    %2272 = vmatprep.subr.bf16.mxu0 0
    %2273 = vmatpush1.bf16.msra.mxu0 %v2182
    %2274 = vmatprep.subr.bf16.mxu0 0
    %2275 = vmatpush1.bf16.msra.mxu0 %v2183
    %2276 = vmatprep.subr.bf16.mxu0 0
    %2277 = vmatpush1.bf16.msra.mxu0 %v2184
    %2278 = vmatprep.subr.bf16.mxu0 0
    %2279 = vmatpush1.bf16.msra.mxu0 %v2185
    %2280 = vmatprep.subr.bf16.mxu0 0
    %2281 = vmatpush1.bf16.msra.mxu0 %v2186
    %2282 = vmatprep.subr.bf16.mxu0 0
    %2283 = vmatpush1.bf16.msra.mxu0 0
    %2284 = vmatprep.subr.bf16.mxu0 0
    %2285 = vmatpush1.bf16.msra.mxu0 0
    %2286 = vmatprep.subr.bf16.mxu0 0
    %2287 = vmatpush1.bf16.msra.mxu0 0
    %2288 = vmatprep.subr.bf16.mxu0 0
    %2289 = vmatpush1.bf16.msra.mxu0 0
    %2290 = vmatprep.mubr.bf16.mxu0 %v2216
    %2291 = vmatmul.mubr.bf16.gmra.mrb[0].mxu0 %v2042
    %v2292 = vpop.f32.mrb[0].mxu0
    %v2293 = vadd.f32 %v2253, %v2292
    %v2294 = vpop.f32.mrb[0].mxu0
    %v2295 = vpop.f32.mrb[0].mxu0
    %v2296 = vpop.f32.mrb[0].mxu0
    %2297 = vdwg.mxu0
    %v2298 = vadd.f32 %v1966, %v2293
    %v2299 = vld [vmem:[#allocation3] sm:$0x88]
    %v2300 = vld [vmem:[#allocation3 + $0x8] sm:$0x88]
    %s2301 = scalar_lea.vmem [#allocation9], 672
    %v2302 = vld [vmem:[%s2301] sm:$0xf]
    %v2303 = vld [vmem:[%s2301 + $0x4] sm:$0xf]
    %v2304 = vld [vmem:[%s2301 + $0x8] sm:$0xf]
    %v2305 = vld [vmem:[%s2301 + $0xc] sm:$0xf]
    %v2306 = vld [vmem:[%s2301 + $0x10] sm:$0xf]
    %v2307 = vld [vmem:[%s2301 + $0x14] sm:$0xf]
    %v2308 = vld [vmem:[%s2301 + $0x18] sm:$0xf]
    %v2309 = vld [vmem:[%s2301 + $0x1c] sm:$0xf]
    %v2310 = vld [vmem:[%s2301 + $0x20] sm:$0xf]
    %v2311 = vld [vmem:[%s2301 + $0x24] sm:$0xf]
    %v2312 = vld [vmem:[%s2301 + $0x28] sm:$0xf]
    %v2313 = vld [vmem:[%s2301 + $0x2c] sm:$0xf]
    %v2314 = vld [vmem:[%s2301 + $0x30] sm:$0xf]
    %v2315 = vld [vmem:[%s2301 + $0x34] sm:$0xf]
    %v2316 = vld [vmem:[%s2301 + $0x38] sm:$0xf]
    %v2317 = vld [vmem:[%s2301 + $0x3c] sm:$0xf]
    %v2318 = vld [vmem:[%s2301 + $0x40] sm:$0xf]
    %v2319 = vld [vmem:[%s2301 + $0x44] sm:$0xf]
    %v2320 = vld [vmem:[%s2301 + $0x48] sm:$0xf]
    %v2321 = vld [vmem:[%s2301 + $0x4c] sm:$0xf]
    %v2322 = vld [vmem:[%s2301 + $0x50] sm:$0xf]
    %v2323 = vld [vmem:[%s2301 + $0x54] sm:$0xf]
    %v2324 = vld [vmem:[%s2301 + $0x58] sm:$0xf]
    %v2325 = vld [vmem:[%s2301 + $0x5c] sm:$0xf]
    %v2326 = vld [vmem:[%s2301 + $0x60] sm:$0xf]
    %v2327 = vld [vmem:[%s2301 + $0x64] sm:$0xf]
    %v2328 = vld [vmem:[%s2301 + $0x68] sm:$0xf]
    %v2329 = vld [vmem:[%s2301 + $0x6c] sm:$0xf]
    %v2330 = vld [vmem:[%s2301 + $0x70] sm:$0xf]
    %v2331 = vld [vmem:[%s2301 + $0x74] sm:$0xf]
    %v2332 = vld [vmem:[%s2301 + $0x78] sm:$0xf]
    %v2333 = vld [vmem:[%s2301 + $0x7c] sm:$0xf]
    %v2334 = vld [vmem:[%s2301 + $0x80] sm:$0xf]
    %v2335 = vld [vmem:[%s2301 + $0x84] sm:$0xf]
    %v2336 = vld [vmem:[%s2301 + $0x88] sm:$0xf]
    %v2337 = vld [vmem:[%s2301 + $0x8c] sm:$0xf]
    %v2338 = vld [vmem:[%s2301 + $0x90] sm:$0xf]
    %v2339 = vld [vmem:[%s2301 + $0x94] sm:$0xf]
    %v2340 = vld [vmem:[%s2301 + $0x98] sm:$0xf]
    %v2341 = vld [vmem:[%s2301 + $0x9c] sm:$0xf]
    %v2342 = vld [vmem:[%s2301 + $0xa0] sm:$0xf]
    %v2343 = vld [vmem:[%s2301 + $0xa4] sm:$0xf]
    %v2344 = vld [vmem:[%s2301 + $0xa8] sm:$0xf]
    %v2345 = vld [vmem:[%s2301 + $0xac] sm:$0xf]
    %v2346 = vld [vmem:[%s2301 + $0xb0] sm:$0xf]
    %v2347 = vld [vmem:[%s2301 + $0xb4] sm:$0xf]
    %v2348 = vld [vmem:[%s2301 + $0xb8] sm:$0xf]
    %v2349 = vld [vmem:[%s2301 + $0xbc] sm:$0xf]
    %v2350 = vld [vmem:[%s2301 + $0xc0] sm:$0xf]
    %v2351 = vld [vmem:[%s2301 + $0xc4] sm:$0xf]
    %v2352 = vld [vmem:[%s2301 + $0xc8] sm:$0xf]
    %v2353 = vld [vmem:[%s2301 + $0xcc] sm:$0xf]
    %v2354 = vld [vmem:[%s2301 + $0xd0] sm:$0xf]
    %v2355 = vld [vmem:[%s2301 + $0xd4] sm:$0xf]
    %v2356 = vld [vmem:[%s2301 + $0xd8] sm:$0xf]
    %v2357 = vld [vmem:[%s2301 + $0xdc] sm:$0xf]
    %v2360 = vunpack.c.l.b16 %v2299
    %v2361 = vunpack.c.h.b16 %v2299
    %v2362 = vunpack.c.l.b16 %v2300
    %v2363 = vunpack.c.h.b16 %v2300
    %v2364 = vpack.c.b16 %v2360, %v2360
    %v2365 = vpack.c.b16 %v2361, %v2361
    %v2366 = vpack.c.b16 %v2362, %v2362
    %v2367 = vpack.c.b16 %v2363, %v2363
    %v2368 = vrot.slane %v2364, 3
    %v2369 = vrot.slane %v2365, 3
    %v2370 = vrot.slane %v2366, 3
    %v2371 = vrot.slane %v2367, 3
    %v2431 = vunpack.c.l.b16 %v2302
    %v2432 = vunpack.c.l.b16 %v2303
    %v2433 = vunpack.c.l.b16 %v2304
    %v2434 = vunpack.c.l.b16 %v2305
    %v2435 = vunpack.c.l.b16 %v2306
    %v2436 = vunpack.c.l.b16 %v2307
    %v2437 = vunpack.c.l.b16 %v2308
    %v2438 = vunpack.c.l.b16 %v2309
    %v2439 = vunpack.c.l.b16 %v2310
    %v2440 = vunpack.c.l.b16 %v2311
    %v2441 = vunpack.c.l.b16 %v2312
    %v2442 = vunpack.c.l.b16 %v2313
    %v2443 = vunpack.c.l.b16 %v2314
    %v2444 = vunpack.c.l.b16 %v2315
    %v2445 = vunpack.c.l.b16 %v2316
    %v2446 = vunpack.c.l.b16 %v2317
    %v2447 = vunpack.c.l.b16 %v2318
    %v2448 = vunpack.c.l.b16 %v2319
    %v2449 = vunpack.c.l.b16 %v2320
    %v2450 = vunpack.c.l.b16 %v2321
    %v2451 = vunpack.c.l.b16 %v2322
    %v2452 = vunpack.c.l.b16 %v2323
    %v2453 = vunpack.c.l.b16 %v2324
    %v2454 = vunpack.c.l.b16 %v2325
    %v2455 = vunpack.c.l.b16 %v2326
    %v2456 = vunpack.c.l.b16 %v2327
    %v2457 = vunpack.c.l.b16 %v2328
    %v2458 = vunpack.c.l.b16 %v2329
    %v2459 = vunpack.c.l.b16 %v2330
    %v2460 = vunpack.c.l.b16 %v2331
    %v2461 = vunpack.c.l.b16 %v2332
    %v2462 = vunpack.c.l.b16 %v2333
    %v2463 = vunpack.c.l.b16 %v2334
    %v2464 = vunpack.c.l.b16 %v2335
    %v2465 = vunpack.c.l.b16 %v2336
    %v2466 = vunpack.c.l.b16 %v2337
    %v2467 = vunpack.c.l.b16 %v2338
    %v2468 = vunpack.c.l.b16 %v2339
    %v2469 = vunpack.c.l.b16 %v2340
    %v2470 = vunpack.c.l.b16 %v2341
    %v2471 = vunpack.c.l.b16 %v2342
    %v2472 = vunpack.c.l.b16 %v2343
    %v2473 = vunpack.c.l.b16 %v2344
    %v2474 = vunpack.c.l.b16 %v2345
    %v2475 = vunpack.c.l.b16 %v2346
    %v2476 = vunpack.c.l.b16 %v2347
    %v2477 = vunpack.c.l.b16 %v2348
    %v2478 = vunpack.c.l.b16 %v2349
    %v2479 = vunpack.c.l.b16 %v2350
    %v2480 = vunpack.c.l.b16 %v2351
    %v2481 = vunpack.c.l.b16 %v2352
    %v2482 = vunpack.c.l.b16 %v2353
    %v2483 = vunpack.c.l.b16 %v2354
    %v2484 = vunpack.c.l.b16 %v2355
    %v2485 = vunpack.c.l.b16 %v2356
    %v2486 = vunpack.c.l.b16 %v2357
    %v2487 = vpack.c.b16 %v2432, %v2431
    %v2488 = vpack.c.b16 %v2434, %v2433
    %v2489 = vpack.c.b16 %v2436, %v2435
    %v2490 = vpack.c.b16 %v2438, %v2437
    %v2491 = vpack.c.b16 %v2440, %v2439
    %v2492 = vpack.c.b16 %v2442, %v2441
    %v2493 = vpack.c.b16 %v2444, %v2443
    %v2494 = vpack.c.b16 %v2446, %v2445
    %v2495 = vpack.c.b16 %v2448, %v2447
    %v2496 = vpack.c.b16 %v2450, %v2449
    %v2497 = vpack.c.b16 %v2452, %v2451
    %v2498 = vpack.c.b16 %v2454, %v2453
    %v2499 = vpack.c.b16 %v2456, %v2455
    %v2500 = vpack.c.b16 %v2458, %v2457
    %v2501 = vpack.c.b16 %v2460, %v2459
    %v2502 = vpack.c.b16 %v2462, %v2461
    %v2503 = vpack.c.b16 %v2464, %v2463
    %v2504 = vpack.c.b16 %v2466, %v2465
    %v2505 = vpack.c.b16 %v2468, %v2467
    %v2506 = vpack.c.b16 %v2470, %v2469
    %v2507 = vpack.c.b16 %v2472, %v2471
    %v2508 = vpack.c.b16 %v2474, %v2473
    %v2509 = vpack.c.b16 %v2476, %v2475
    %v2510 = vpack.c.b16 %v2478, %v2477
    %v2511 = vpack.c.b16 %v2480, %v2479
    %v2512 = vpack.c.b16 %v2482, %v2481
    %v2513 = vpack.c.b16 %v2484, %v2483
    %v2514 = vpack.c.b16 %v2486, %v2485
    %v2544 = vsel %vm1216, %v2371, 0
    %2546 = vmatprep.subr.bf16.mxu0 0
    %2547 = vmatpush1.bf16.msra.mxu0 %v2487
    %2548 = vmatprep.subr.bf16.mxu0 0
    %2549 = vmatpush1.bf16.msra.mxu0 %v2488
    %2550 = vmatprep.subr.bf16.mxu0 0
    %2551 = vmatpush1.bf16.msra.mxu0 %v2489
    %2552 = vmatprep.subr.bf16.mxu0 0
    %2553 = vmatpush1.bf16.msra.mxu0 %v2490
    %2554 = vmatprep.subr.bf16.mxu0 0
    %2555 = vmatpush1.bf16.msra.mxu0 %v2491
    %2556 = vmatprep.subr.bf16.mxu0 0
    %2557 = vmatpush1.bf16.msra.mxu0 %v2492
    %2558 = vmatprep.subr.bf16.mxu0 0
    %2559 = vmatpush1.bf16.msra.mxu0 %v2493
    %2560 = vmatprep.subr.bf16.mxu0 0
    %2561 = vmatpush1.bf16.msra.mxu0 %v2494
    %2562 = vmatprep.subr.bf16.mxu0 0
    %2563 = vmatpush1.bf16.msra.mxu0 %v2495
    %2564 = vmatprep.subr.bf16.mxu0 0
    %2565 = vmatpush1.bf16.msra.mxu0 %v2496
    %2566 = vmatprep.subr.bf16.mxu0 0
    %2567 = vmatpush1.bf16.msra.mxu0 %v2497
    %2568 = vmatprep.subr.bf16.mxu0 0
    %2569 = vmatpush1.bf16.msra.mxu0 %v2498
    %2570 = vmatprep.subr.bf16.mxu0 0
    %2571 = vmatpush1.bf16.msra.mxu0 %v2499
    %2572 = vmatprep.subr.bf16.mxu0 0
    %2573 = vmatpush1.bf16.msra.mxu0 %v2500
    %2574 = vmatprep.subr.bf16.mxu0 0
    %2575 = vmatpush1.bf16.msra.mxu0 %v2501
    %2576 = vmatprep.subr.bf16.mxu0 0
    %2577 = vmatpush1.bf16.msra.mxu0 %v2502
    %2578 = vmatprep.mubr.bf16.mxu0 %v2369
    %2579 = vmatmul.mubr.bf16.gmra.mrb[0].mxu0 %v2368
    %v2580 = vpop.f32.mrb[0].mxu0
    %v2581 = vadd.f32 0.0, %v2580
    %v2582 = vpop.f32.mrb[0].mxu0
    %v2583 = vpop.f32.mrb[0].mxu0
    %v2584 = vpop.f32.mrb[0].mxu0
    %2585 = vdwg.mxu0
    %2586 = vmatprep.subr.bf16.mxu0 0
    %2587 = vmatpush1.bf16.msra.mxu0 %v2503
    %2588 = vmatprep.subr.bf16.mxu0 0
    %2589 = vmatpush1.bf16.msra.mxu0 %v2504
    %2590 = vmatprep.subr.bf16.mxu0 0
    %2591 = vmatpush1.bf16.msra.mxu0 %v2505
    %2592 = vmatprep.subr.bf16.mxu0 0
    %2593 = vmatpush1.bf16.msra.mxu0 %v2506
    %2594 = vmatprep.subr.bf16.mxu0 0
    %2595 = vmatpush1.bf16.msra.mxu0 %v2507
    %2596 = vmatprep.subr.bf16.mxu0 0
    %2597 = vmatpush1.bf16.msra.mxu0 %v2508
    %2598 = vmatprep.subr.bf16.mxu0 0
    %2599 = vmatpush1.bf16.msra.mxu0 %v2509
    %2600 = vmatprep.subr.bf16.mxu0 0
    %2601 = vmatpush1.bf16.msra.mxu0 %v2510
    %2602 = vmatprep.subr.bf16.mxu0 0
    %2603 = vmatpush1.bf16.msra.mxu0 %v2511
    %2604 = vmatprep.subr.bf16.mxu0 0
    %2605 = vmatpush1.bf16.msra.mxu0 %v2512
    %2606 = vmatprep.subr.bf16.mxu0 0
    %2607 = vmatpush1.bf16.msra.mxu0 %v2513
    %2608 = vmatprep.subr.bf16.mxu0 0
    %2609 = vmatpush1.bf16.msra.mxu0 %v2514
    %2610 = vmatprep.subr.bf16.mxu0 0
    %2611 = vmatpush1.bf16.msra.mxu0 0
    %2612 = vmatprep.subr.bf16.mxu0 0
    %2613 = vmatpush1.bf16.msra.mxu0 0
    %2614 = vmatprep.subr.bf16.mxu0 0
    %2615 = vmatpush1.bf16.msra.mxu0 0
    %2616 = vmatprep.subr.bf16.mxu0 0
    %2617 = vmatpush1.bf16.msra.mxu0 0
    %2618 = vmatprep.mubr.bf16.mxu0 %v2544
    %2619 = vmatmul.mubr.bf16.gmra.mrb[0].mxu0 %v2370
    %v2620 = vpop.f32.mrb[0].mxu0
    %v2621 = vadd.f32 %v2581, %v2620
    %v2622 = vpop.f32.mrb[0].mxu0
    %v2623 = vpop.f32.mrb[0].mxu0
    %v2624 = vpop.f32.mrb[0].mxu0
    %2625 = vdwg.mxu0
    %v2626 = vadd.f32 %v2298, %v2621
    %v2627 = vld [vmem:[#allocation3 + $0x10] sm:$0x11]
    %v2628 = vld [vmem:[#allocation3 + $0x18] sm:$0x11]
    %s2629 = scalar_lea.vmem [#allocation9], 896
    %v2630 = vld [vmem:[%s2629] sm:$0xf]
    %v2631 = vld [vmem:[%s2629 + $0x4] sm:$0xf]
    %v2632 = vld [vmem:[%s2629 + $0x8] sm:$0xf]
    %v2633 = vld [vmem:[%s2629 + $0xc] sm:$0xf]
    %v2634 = vld [vmem:[%s2629 + $0x10] sm:$0xf]
    %v2635 = vld [vmem:[%s2629 + $0x14] sm:$0xf]
    %v2636 = vld [vmem:[%s2629 + $0x18] sm:$0xf]
    %v2637 = vld [vmem:[%s2629 + $0x1c] sm:$0xf]
    %v2638 = vld [vmem:[%s2629 + $0x20] sm:$0xf]
    %v2639 = vld [vmem:[%s2629 + $0x24] sm:$0xf]
    %v2640 = vld [vmem:[%s2629 + $0x28] sm:$0xf]
    %v2641 = vld [vmem:[%s2629 + $0x2c] sm:$0xf]
    %v2642 = vld [vmem:[%s2629 + $0x30] sm:$0xf]
    %v2643 = vld [vmem:[%s2629 + $0x34] sm:$0xf]
    %v2644 = vld [vmem:[%s2629 + $0x38] sm:$0xf]
    %v2645 = vld [vmem:[%s2629 + $0x3c] sm:$0xf]
    %v2646 = vld [vmem:[%s2629 + $0x40] sm:$0xf]
    %v2647 = vld [vmem:[%s2629 + $0x44] sm:$0xf]
    %v2648 = vld [vmem:[%s2629 + $0x48] sm:$0xf]
    %v2649 = vld [vmem:[%s2629 + $0x4c] sm:$0xf]
    %v2650 = vld [vmem:[%s2629 + $0x50] sm:$0xf]
    %v2651 = vld [vmem:[%s2629 + $0x54] sm:$0xf]
    %v2652 = vld [vmem:[%s2629 + $0x58] sm:$0xf]
    %v2653 = vld [vmem:[%s2629 + $0x5c] sm:$0xf]
    %v2654 = vld [vmem:[%s2629 + $0x60] sm:$0xf]
    %v2655 = vld [vmem:[%s2629 + $0x64] sm:$0xf]
    %v2656 = vld [vmem:[%s2629 + $0x68] sm:$0xf]
    %v2657 = vld [vmem:[%s2629 + $0x6c] sm:$0xf]
    %v2658 = vld [vmem:[%s2629 + $0x70] sm:$0xf]
    %v2659 = vld [vmem:[%s2629 + $0x74] sm:$0xf]
    %v2660 = vld [vmem:[%s2629 + $0x78] sm:$0xf]
    %v2661 = vld [vmem:[%s2629 + $0x7c] sm:$0xf]
    %v2662 = vld [vmem:[%s2629 + $0x80] sm:$0xf]
    %v2663 = vld [vmem:[%s2629 + $0x84] sm:$0xf]
    %v2664 = vld [vmem:[%s2629 + $0x88] sm:$0xf]
    %v2665 = vld [vmem:[%s2629 + $0x8c] sm:$0xf]
    %v2666 = vld [vmem:[%s2629 + $0x90] sm:$0xf]
    %v2667 = vld [vmem:[%s2629 + $0x94] sm:$0xf]
    %v2668 = vld [vmem:[%s2629 + $0x98] sm:$0xf]
    %v2669 = vld [vmem:[%s2629 + $0x9c] sm:$0xf]
    %v2670 = vld [vmem:[%s2629 + $0xa0] sm:$0xf]
    %v2671 = vld [vmem:[%s2629 + $0xa4] sm:$0xf]
    %v2672 = vld [vmem:[%s2629 + $0xa8] sm:$0xf]
    %v2673 = vld [vmem:[%s2629 + $0xac] sm:$0xf]
    %v2674 = vld [vmem:[%s2629 + $0xb0] sm:$0xf]
    %v2675 = vld [vmem:[%s2629 + $0xb4] sm:$0xf]
    %v2676 = vld [vmem:[%s2629 + $0xb8] sm:$0xf]
    %v2677 = vld [vmem:[%s2629 + $0xbc] sm:$0xf]
    %v2678 = vld [vmem:[%s2629 + $0xc0] sm:$0xf]
    %v2679 = vld [vmem:[%s2629 + $0xc4] sm:$0xf]
    %v2680 = vld [vmem:[%s2629 + $0xc8] sm:$0xf]
    %v2681 = vld [vmem:[%s2629 + $0xcc] sm:$0xf]
    %v2682 = vld [vmem:[%s2629 + $0xd0] sm:$0xf]
    %v2683 = vld [vmem:[%s2629 + $0xd4] sm:$0xf]
    %v2684 = vld [vmem:[%s2629 + $0xd8] sm:$0xf]
    %v2685 = vld [vmem:[%s2629 + $0xdc] sm:$0xf]
    %v2688 = vunpack.c.l.b16 %v2627
    %v2689 = vunpack.c.h.b16 %v2627
    %v2690 = vunpack.c.l.b16 %v2628
    %v2691 = vunpack.c.h.b16 %v2628
    %v2692 = vpack.c.b16 %v2688, %v2688
    %v2693 = vpack.c.b16 %v2689, %v2689
    %v2694 = vpack.c.b16 %v2690, %v2690
    %v2695 = vpack.c.b16 %v2691, %v2691
    %v2755 = vunpack.c.l.b16 %v2630
    %v2756 = vunpack.c.l.b16 %v2631
    %v2757 = vunpack.c.l.b16 %v2632
    %v2758 = vunpack.c.l.b16 %v2633
    %v2759 = vunpack.c.l.b16 %v2634
    %v2760 = vunpack.c.l.b16 %v2635
    %v2761 = vunpack.c.l.b16 %v2636
    %v2762 = vunpack.c.l.b16 %v2637
    %v2763 = vunpack.c.l.b16 %v2638
    %v2764 = vunpack.c.l.b16 %v2639
    %v2765 = vunpack.c.l.b16 %v2640
    %v2766 = vunpack.c.l.b16 %v2641
    %v2767 = vunpack.c.l.b16 %v2642
    %v2768 = vunpack.c.l.b16 %v2643
    %v2769 = vunpack.c.l.b16 %v2644
    %v2770 = vunpack.c.l.b16 %v2645
    %v2771 = vunpack.c.l.b16 %v2646
    %v2772 = vunpack.c.l.b16 %v2647
    %v2773 = vunpack.c.l.b16 %v2648
    %v2774 = vunpack.c.l.b16 %v2649
    %v2775 = vunpack.c.l.b16 %v2650
    %v2776 = vunpack.c.l.b16 %v2651
    %v2777 = vunpack.c.l.b16 %v2652
    %v2778 = vunpack.c.l.b16 %v2653
    %v2779 = vunpack.c.l.b16 %v2654
    %v2780 = vunpack.c.l.b16 %v2655
    %v2781 = vunpack.c.l.b16 %v2656
    %v2782 = vunpack.c.l.b16 %v2657
    %v2783 = vunpack.c.l.b16 %v2658
    %v2784 = vunpack.c.l.b16 %v2659
    %v2785 = vunpack.c.l.b16 %v2660
    %v2786 = vunpack.c.l.b16 %v2661
    %v2787 = vunpack.c.l.b16 %v2662
    %v2788 = vunpack.c.l.b16 %v2663
    %v2789 = vunpack.c.l.b16 %v2664
    %v2790 = vunpack.c.l.b16 %v2665
    %v2791 = vunpack.c.l.b16 %v2666
    %v2792 = vunpack.c.l.b16 %v2667
    %v2793 = vunpack.c.l.b16 %v2668
    %v2794 = vunpack.c.l.b16 %v2669
    %v2795 = vunpack.c.l.b16 %v2670
    %v2796 = vunpack.c.l.b16 %v2671
    %v2797 = vunpack.c.l.b16 %v2672
    %v2798 = vunpack.c.l.b16 %v2673
    %v2799 = vunpack.c.l.b16 %v2674
    %v2800 = vunpack.c.l.b16 %v2675
    %v2801 = vunpack.c.l.b16 %v2676
    %v2802 = vunpack.c.l.b16 %v2677
    %v2803 = vunpack.c.l.b16 %v2678
    %v2804 = vunpack.c.l.b16 %v2679
    %v2805 = vunpack.c.l.b16 %v2680
    %v2806 = vunpack.c.l.b16 %v2681
    %v2807 = vunpack.c.l.b16 %v2682
    %v2808 = vunpack.c.l.b16 %v2683
    %v2809 = vunpack.c.l.b16 %v2684
    %v2810 = vunpack.c.l.b16 %v2685
    %v2811 = vpack.c.b16 %v2756, %v2755
    %v2812 = vpack.c.b16 %v2758, %v2757
    %v2813 = vpack.c.b16 %v2760, %v2759
    %v2814 = vpack.c.b16 %v2762, %v2761
    %v2815 = vpack.c.b16 %v2764, %v2763
    %v2816 = vpack.c.b16 %v2766, %v2765
    %v2817 = vpack.c.b16 %v2768, %v2767
    %v2818 = vpack.c.b16 %v2770, %v2769
    %v2819 = vpack.c.b16 %v2772, %v2771
    %v2820 = vpack.c.b16 %v2774, %v2773
    %v2821 = vpack.c.b16 %v2776, %v2775
    %v2822 = vpack.c.b16 %v2778, %v2777
    %v2823 = vpack.c.b16 %v2780, %v2779
    %v2824 = vpack.c.b16 %v2782, %v2781
    %v2825 = vpack.c.b16 %v2784, %v2783
    %v2826 = vpack.c.b16 %v2786, %v2785
    %v2827 = vpack.c.b16 %v2788, %v2787
    %v2828 = vpack.c.b16 %v2790, %v2789
    %v2829 = vpack.c.b16 %v2792, %v2791
    %v2830 = vpack.c.b16 %v2794, %v2793
    %v2831 = vpack.c.b16 %v2796, %v2795
    %v2832 = vpack.c.b16 %v2798, %v2797
    %v2833 = vpack.c.b16 %v2800, %v2799
    %v2834 = vpack.c.b16 %v2802, %v2801
    %v2835 = vpack.c.b16 %v2804, %v2803
    %v2836 = vpack.c.b16 %v2806, %v2805
    %v2837 = vpack.c.b16 %v2808, %v2807
    %v2838 = vpack.c.b16 %v2810, %v2809
    %v2868 = vsel %vm1216, %v2695, 0
    %2870 = vmatprep.subr.bf16.mxu0 0
    %2871 = vmatpush1.bf16.msra.mxu0 %v2811
    %2872 = vmatprep.subr.bf16.mxu0 0
    %2873 = vmatpush1.bf16.msra.mxu0 %v2812
    %2874 = vmatprep.subr.bf16.mxu0 0
    %2875 = vmatpush1.bf16.msra.mxu0 %v2813
    %2876 = vmatprep.subr.bf16.mxu0 0
    %2877 = vmatpush1.bf16.msra.mxu0 %v2814
    %2878 = vmatprep.subr.bf16.mxu0 0
    %2879 = vmatpush1.bf16.msra.mxu0 %v2815
    %2880 = vmatprep.subr.bf16.mxu0 0
    %2881 = vmatpush1.bf16.msra.mxu0 %v2816
    %2882 = vmatprep.subr.bf16.mxu0 0
    %2883 = vmatpush1.bf16.msra.mxu0 %v2817
    %2884 = vmatprep.subr.bf16.mxu0 0
    %2885 = vmatpush1.bf16.msra.mxu0 %v2818
    %2886 = vmatprep.subr.bf16.mxu0 0
    %2887 = vmatpush1.bf16.msra.mxu0 %v2819
    %2888 = vmatprep.subr.bf16.mxu0 0
    %2889 = vmatpush1.bf16.msra.mxu0 %v2820
    %2890 = vmatprep.subr.bf16.mxu0 0
    %2891 = vmatpush1.bf16.msra.mxu0 %v2821
    %2892 = vmatprep.subr.bf16.mxu0 0
    %2893 = vmatpush1.bf16.msra.mxu0 %v2822
    %2894 = vmatprep.subr.bf16.mxu0 0
    %2895 = vmatpush1.bf16.msra.mxu0 %v2823
    %2896 = vmatprep.subr.bf16.mxu0 0
    %2897 = vmatpush1.bf16.msra.mxu0 %v2824
    %2898 = vmatprep.subr.bf16.mxu0 0
    %2899 = vmatpush1.bf16.msra.mxu0 %v2825
    %2900 = vmatprep.subr.bf16.mxu0 0
    %2901 = vmatpush1.bf16.msra.mxu0 %v2826
    %2902 = vmatprep.mubr.bf16.mxu0 %v2693
    %2903 = vmatmul.mubr.bf16.gmra.mrb[0].mxu0 %v2692
    %v2904 = vpop.f32.mrb[0].mxu0
    %v2905 = vadd.f32 0.0, %v2904
    %v2906 = vpop.f32.mrb[0].mxu0
    %v2907 = vpop.f32.mrb[0].mxu0
    %v2908 = vpop.f32.mrb[0].mxu0
    %2909 = vdwg.mxu0
    %2910 = vmatprep.subr.bf16.mxu0 0
    %2911 = vmatpush1.bf16.msra.mxu0 %v2827
    %2912 = vmatprep.subr.bf16.mxu0 0
    %2913 = vmatpush1.bf16.msra.mxu0 %v2828
    %2914 = vmatprep.subr.bf16.mxu0 0
    %2915 = vmatpush1.bf16.msra.mxu0 %v2829
    %2916 = vmatprep.subr.bf16.mxu0 0
    %2917 = vmatpush1.bf16.msra.mxu0 %v2830
    %2918 = vmatprep.subr.bf16.mxu0 0
    %2919 = vmatpush1.bf16.msra.mxu0 %v2831
    %2920 = vmatprep.subr.bf16.mxu0 0
    %2921 = vmatpush1.bf16.msra.mxu0 %v2832
    %2922 = vmatprep.subr.bf16.mxu0 0
    %2923 = vmatpush1.bf16.msra.mxu0 %v2833
    %2924 = vmatprep.subr.bf16.mxu0 0
    %2925 = vmatpush1.bf16.msra.mxu0 %v2834
    %2926 = vmatprep.subr.bf16.mxu0 0
    %2927 = vmatpush1.bf16.msra.mxu0 %v2835
    %2928 = vmatprep.subr.bf16.mxu0 0
    %2929 = vmatpush1.bf16.msra.mxu0 %v2836
    %2930 = vmatprep.subr.bf16.mxu0 0
    %2931 = vmatpush1.bf16.msra.mxu0 %v2837
    %2932 = vmatprep.subr.bf16.mxu0 0
    %2933 = vmatpush1.bf16.msra.mxu0 %v2838
    %2934 = vmatprep.subr.bf16.mxu0 0
    %2935 = vmatpush1.bf16.msra.mxu0 0
    %2936 = vmatprep.subr.bf16.mxu0 0
    %2937 = vmatpush1.bf16.msra.mxu0 0
    %2938 = vmatprep.subr.bf16.mxu0 0
    %2939 = vmatpush1.bf16.msra.mxu0 0
    %2940 = vmatprep.subr.bf16.mxu0 0
    %2941 = vmatpush1.bf16.msra.mxu0 0
    %2942 = vmatprep.mubr.bf16.mxu0 %v2868
    %2943 = vmatmul.mubr.bf16.gmra.mrb[0].mxu0 %v2694
    %v2944 = vpop.f32.mrb[0].mxu0
    %v2945 = vadd.f32 %v2905, %v2944
    %v2946 = vpop.f32.mrb[0].mxu0
    %v2947 = vpop.f32.mrb[0].mxu0
    %v2948 = vpop.f32.mrb[0].mxu0
    %2949 = vdwg.mxu0
    %v2950 = vadd.f32 %v2626, %v2945
    %v2951 = vld [vmem:[#allocation3 + $0x10] sm:$0x22]
    %v2952 = vld [vmem:[#allocation3 + $0x18] sm:$0x22]
    %s2953 = scalar_lea.vmem [#allocation9], 1120
    %v2954 = vld [vmem:[%s2953] sm:$0xf]
    %v2955 = vld [vmem:[%s2953 + $0x4] sm:$0xf]
    %v2956 = vld [vmem:[%s2953 + $0x8] sm:$0xf]
    %v2957 = vld [vmem:[%s2953 + $0xc] sm:$0xf]
    %v2958 = vld [vmem:[%s2953 + $0x10] sm:$0xf]
    %v2959 = vld [vmem:[%s2953 + $0x14] sm:$0xf]
    %v2960 = vld [vmem:[%s2953 + $0x18] sm:$0xf]
    %v2961 = vld [vmem:[%s2953 + $0x1c] sm:$0xf]
    %v2962 = vld [vmem:[%s2953 + $0x20] sm:$0xf]
    %v2963 = vld [vmem:[%s2953 + $0x24] sm:$0xf]
    %v2964 = vld [vmem:[%s2953 + $0x28] sm:$0xf]
    %v2965 = vld [vmem:[%s2953 + $0x2c] sm:$0xf]
    %v2966 = vld [vmem:[%s2953 + $0x30] sm:$0xf]
    %v2967 = vld [vmem:[%s2953 + $0x34] sm:$0xf]
    %v2968 = vld [vmem:[%s2953 + $0x38] sm:$0xf]
    %v2969 = vld [vmem:[%s2953 + $0x3c] sm:$0xf]
    %v2970 = vld [vmem:[%s2953 + $0x40] sm:$0xf]
    %v2971 = vld [vmem:[%s2953 + $0x44] sm:$0xf]
    %v2972 = vld [vmem:[%s2953 + $0x48] sm:$0xf]
    %v2973 = vld [vmem:[%s2953 + $0x4c] sm:$0xf]
    %v2974 = vld [vmem:[%s2953 + $0x50] sm:$0xf]
    %v2975 = vld [vmem:[%s2953 + $0x54] sm:$0xf]
    %v2976 = vld [vmem:[%s2953 + $0x58] sm:$0xf]
    %v2977 = vld [vmem:[%s2953 + $0x5c] sm:$0xf]
    %v2978 = vld [vmem:[%s2953 + $0x60] sm:$0xf]
    %v2979 = vld [vmem:[%s2953 + $0x64] sm:$0xf]
    %v2980 = vld [vmem:[%s2953 + $0x68] sm:$0xf]
    %v2981 = vld [vmem:[%s2953 + $0x6c] sm:$0xf]
    %v2982 = vld [vmem:[%s2953 + $0x70] sm:$0xf]
    %v2983 = vld [vmem:[%s2953 + $0x74] sm:$0xf]
    %v2984 = vld [vmem:[%s2953 + $0x78] sm:$0xf]
    %v2985 = vld [vmem:[%s2953 + $0x7c] sm:$0xf]
    %v2986 = vld [vmem:[%s2953 + $0x80] sm:$0xf]
    %v2987 = vld [vmem:[%s2953 + $0x84] sm:$0xf]
    %v2988 = vld [vmem:[%s2953 + $0x88] sm:$0xf]
    %v2989 = vld [vmem:[%s2953 + $0x8c] sm:$0xf]
    %v2990 = vld [vmem:[%s2953 + $0x90] sm:$0xf]
    %v2991 = vld [vmem:[%s2953 + $0x94] sm:$0xf]
    %v2992 = vld [vmem:[%s2953 + $0x98] sm:$0xf]
    %v2993 = vld [vmem:[%s2953 + $0x9c] sm:$0xf]
    %v2994 = vld [vmem:[%s2953 + $0xa0] sm:$0xf]
    %v2995 = vld [vmem:[%s2953 + $0xa4] sm:$0xf]
    %v2996 = vld [vmem:[%s2953 + $0xa8] sm:$0xf]
    %v2997 = vld [vmem:[%s2953 + $0xac] sm:$0xf]
    %v2998 = vld [vmem:[%s2953 + $0xb0] sm:$0xf]
    %v2999 = vld [vmem:[%s2953 + $0xb4] sm:$0xf]
    %v3000 = vld [vmem:[%s2953 + $0xb8] sm:$0xf]
    %v3001 = vld [vmem:[%s2953 + $0xbc] sm:$0xf]
    %v3002 = vld [vmem:[%s2953 + $0xc0] sm:$0xf]
    %v3003 = vld [vmem:[%s2953 + $0xc4] sm:$0xf]
    %v3004 = vld [vmem:[%s2953 + $0xc8] sm:$0xf]
    %v3005 = vld [vmem:[%s2953 + $0xcc] sm:$0xf]
    %v3006 = vld [vmem:[%s2953 + $0xd0] sm:$0xf]
    %v3007 = vld [vmem:[%s2953 + $0xd4] sm:$0xf]
    %v3008 = vld [vmem:[%s2953 + $0xd8] sm:$0xf]
    %v3009 = vld [vmem:[%s2953 + $0xdc] sm:$0xf]
    %v3012 = vunpack.c.l.b16 %v2951
    %v3013 = vunpack.c.h.b16 %v2951
    %v3014 = vunpack.c.l.b16 %v2952
    %v3015 = vunpack.c.h.b16 %v2952
    %v3016 = vpack.c.b16 %v3012, %v3012
    %v3017 = vpack.c.b16 %v3013, %v3013
    %v3018 = vpack.c.b16 %v3014, %v3014
    %v3019 = vpack.c.b16 %v3015, %v3015
    %v3020 = vrot.slane %v3016, 1
    %v3021 = vrot.slane %v3017, 1
    %v3022 = vrot.slane %v3018, 1
    %v3023 = vrot.slane %v3019, 1
    %v3083 = vunpack.c.l.b16 %v2954
    %v3084 = vunpack.c.l.b16 %v2955
    %v3085 = vunpack.c.l.b16 %v2956
    %v3086 = vunpack.c.l.b16 %v2957
    %v3087 = vunpack.c.l.b16 %v2958
    %v3088 = vunpack.c.l.b16 %v2959
    %v3089 = vunpack.c.l.b16 %v2960
    %v3090 = vunpack.c.l.b16 %v2961
    %v3091 = vunpack.c.l.b16 %v2962
    %v3092 = vunpack.c.l.b16 %v2963
    %v3093 = vunpack.c.l.b16 %v2964
    %v3094 = vunpack.c.l.b16 %v2965
    %v3095 = vunpack.c.l.b16 %v2966
    %v3096 = vunpack.c.l.b16 %v2967
    %v3097 = vunpack.c.l.b16 %v2968
    %v3098 = vunpack.c.l.b16 %v2969
    %v3099 = vunpack.c.l.b16 %v2970
    %v3100 = vunpack.c.l.b16 %v2971
    %v3101 = vunpack.c.l.b16 %v2972
    %v3102 = vunpack.c.l.b16 %v2973
    %v3103 = vunpack.c.l.b16 %v2974
    %v3104 = vunpack.c.l.b16 %v2975
    %v3105 = vunpack.c.l.b16 %v2976
    %v3106 = vunpack.c.l.b16 %v2977
    %v3107 = vunpack.c.l.b16 %v2978
    %v3108 = vunpack.c.l.b16 %v2979
    %v3109 = vunpack.c.l.b16 %v2980
    %v3110 = vunpack.c.l.b16 %v2981
    %v3111 = vunpack.c.l.b16 %v2982
    %v3112 = vunpack.c.l.b16 %v2983
    %v3113 = vunpack.c.l.b16 %v2984
    %v3114 = vunpack.c.l.b16 %v2985
    %v3115 = vunpack.c.l.b16 %v2986
    %v3116 = vunpack.c.l.b16 %v2987
    %v3117 = vunpack.c.l.b16 %v2988
    %v3118 = vunpack.c.l.b16 %v2989
    %v3119 = vunpack.c.l.b16 %v2990
    %v3120 = vunpack.c.l.b16 %v2991
    %v3121 = vunpack.c.l.b16 %v2992
    %v3122 = vunpack.c.l.b16 %v2993
    %v3123 = vunpack.c.l.b16 %v2994
    %v3124 = vunpack.c.l.b16 %v2995
    %v3125 = vunpack.c.l.b16 %v2996
    %v3126 = vunpack.c.l.b16 %v2997
    %v3127 = vunpack.c.l.b16 %v2998
    %v3128 = vunpack.c.l.b16 %v2999
    %v3129 = vunpack.c.l.b16 %v3000
    %v3130 = vunpack.c.l.b16 %v3001
    %v3131 = vunpack.c.l.b16 %v3002
    %v3132 = vunpack.c.l.b16 %v3003
    %v3133 = vunpack.c.l.b16 %v3004
    %v3134 = vunpack.c.l.b16 %v3005
    %v3135 = vunpack.c.l.b16 %v3006
    %v3136 = vunpack.c.l.b16 %v3007
    %v3137 = vunpack.c.l.b16 %v3008
    %v3138 = vunpack.c.l.b16 %v3009
    %v3139 = vpack.c.b16 %v3084, %v3083
    %v3140 = vpack.c.b16 %v3086, %v3085
    %v3141 = vpack.c.b16 %v3088, %v3087
    %v3142 = vpack.c.b16 %v3090, %v3089
    %v3143 = vpack.c.b16 %v3092, %v3091
    %v3144 = vpack.c.b16 %v3094, %v3093
    %v3145 = vpack.c.b16 %v3096, %v3095
    %v3146 = vpack.c.b16 %v3098, %v3097
    %v3147 = vpack.c.b16 %v3100, %v3099
    %v3148 = vpack.c.b16 %v3102, %v3101
    %v3149 = vpack.c.b16 %v3104, %v3103
    %v3150 = vpack.c.b16 %v3106, %v3105
    %v3151 = vpack.c.b16 %v3108, %v3107
    %v3152 = vpack.c.b16 %v3110, %v3109
    %v3153 = vpack.c.b16 %v3112, %v3111
    %v3154 = vpack.c.b16 %v3114, %v3113
    %v3155 = vpack.c.b16 %v3116, %v3115
    %v3156 = vpack.c.b16 %v3118, %v3117
    %v3157 = vpack.c.b16 %v3120, %v3119
    %v3158 = vpack.c.b16 %v3122, %v3121
    %v3159 = vpack.c.b16 %v3124, %v3123
    %v3160 = vpack.c.b16 %v3126, %v3125
    %v3161 = vpack.c.b16 %v3128, %v3127
    %v3162 = vpack.c.b16 %v3130, %v3129
    %v3163 = vpack.c.b16 %v3132, %v3131
    %v3164 = vpack.c.b16 %v3134, %v3133
    %v3165 = vpack.c.b16 %v3136, %v3135
    %v3166 = vpack.c.b16 %v3138, %v3137
    %v3196 = vsel %vm1216, %v3023, 0
    %3198 = vmatprep.subr.bf16.mxu0 0
    %3199 = vmatpush1.bf16.msra.mxu0 %v3139
    %3200 = vmatprep.subr.bf16.mxu0 0
    %3201 = vmatpush1.bf16.msra.mxu0 %v3140
    %3202 = vmatprep.subr.bf16.mxu0 0
    %3203 = vmatpush1.bf16.msra.mxu0 %v3141
    %3204 = vmatprep.subr.bf16.mxu0 0
    %3205 = vmatpush1.bf16.msra.mxu0 %v3142
    %3206 = vmatprep.subr.bf16.mxu0 0
    %3207 = vmatpush1.bf16.msra.mxu0 %v3143
    %3208 = vmatprep.subr.bf16.mxu0 0
    %3209 = vmatpush1.bf16.msra.mxu0 %v3144
    %3210 = vmatprep.subr.bf16.mxu0 0
    %3211 = vmatpush1.bf16.msra.mxu0 %v3145
    %3212 = vmatprep.subr.bf16.mxu0 0
    %3213 = vmatpush1.bf16.msra.mxu0 %v3146
    %3214 = vmatprep.subr.bf16.mxu0 0
    %3215 = vmatpush1.bf16.msra.mxu0 %v3147
    %3216 = vmatprep.subr.bf16.mxu0 0
    %3217 = vmatpush1.bf16.msra.mxu0 %v3148
    %3218 = vmatprep.subr.bf16.mxu0 0
    %3219 = vmatpush1.bf16.msra.mxu0 %v3149
    %3220 = vmatprep.subr.bf16.mxu0 0
    %3221 = vmatpush1.bf16.msra.mxu0 %v3150
    %3222 = vmatprep.subr.bf16.mxu0 0
    %3223 = vmatpush1.bf16.msra.mxu0 %v3151
    %3224 = vmatprep.subr.bf16.mxu0 0
    %3225 = vmatpush1.bf16.msra.mxu0 %v3152
    %3226 = vmatprep.subr.bf16.mxu0 0
    %3227 = vmatpush1.bf16.msra.mxu0 %v3153
    %3228 = vmatprep.subr.bf16.mxu0 0
    %3229 = vmatpush1.bf16.msra.mxu0 %v3154
    %3230 = vmatprep.mubr.bf16.mxu0 %v3021
    %3231 = vmatmul.mubr.bf16.gmra.mrb[0].mxu0 %v3020
    %v3232 = vpop.f32.mrb[0].mxu0
    %v3233 = vadd.f32 0.0, %v3232
    %v3234 = vpop.f32.mrb[0].mxu0
    %v3235 = vpop.f32.mrb[0].mxu0
    %v3236 = vpop.f32.mrb[0].mxu0
    %3237 = vdwg.mxu0
    %3238 = vmatprep.subr.bf16.mxu0 0
    %3239 = vmatpush1.bf16.msra.mxu0 %v3155
    %3240 = vmatprep.subr.bf16.mxu0 0
    %3241 = vmatpush1.bf16.msra.mxu0 %v3156
    %3242 = vmatprep.subr.bf16.mxu0 0
    %3243 = vmatpush1.bf16.msra.mxu0 %v3157
    %3244 = vmatprep.subr.bf16.mxu0 0
    %3245 = vmatpush1.bf16.msra.mxu0 %v3158
    %3246 = vmatprep.subr.bf16.mxu0 0
    %3247 = vmatpush1.bf16.msra.mxu0 %v3159
    %3248 = vmatprep.subr.bf16.mxu0 0
    %3249 = vmatpush1.bf16.msra.mxu0 %v3160
    %3250 = vmatprep.subr.bf16.mxu0 0
    %3251 = vmatpush1.bf16.msra.mxu0 %v3161
    %3252 = vmatprep.subr.bf16.mxu0 0
    %3253 = vmatpush1.bf16.msra.mxu0 %v3162
    %3254 = vmatprep.subr.bf16.mxu0 0
    %3255 = vmatpush1.bf16.msra.mxu0 %v3163
    %3256 = vmatprep.subr.bf16.mxu0 0
    %3257 = vmatpush1.bf16.msra.mxu0 %v3164
    %3258 = vmatprep.subr.bf16.mxu0 0
    %3259 = vmatpush1.bf16.msra.mxu0 %v3165
    %3260 = vmatprep.subr.bf16.mxu0 0
    %3261 = vmatpush1.bf16.msra.mxu0 %v3166
    %3262 = vmatprep.subr.bf16.mxu0 0
    %3263 = vmatpush1.bf16.msra.mxu0 0
    %3264 = vmatprep.subr.bf16.mxu0 0
    %3265 = vmatpush1.bf16.msra.mxu0 0
    %3266 = vmatprep.subr.bf16.mxu0 0
    %3267 = vmatpush1.bf16.msra.mxu0 0
    %3268 = vmatprep.subr.bf16.mxu0 0
    %3269 = vmatpush1.bf16.msra.mxu0 0
    %3270 = vmatprep.mubr.bf16.mxu0 %v3196
    %3271 = vmatmul.mubr.bf16.gmra.mrb[0].mxu0 %v3022
    %v3272 = vpop.f32.mrb[0].mxu0
    %v3273 = vadd.f32 %v3233, %v3272
    %v3274 = vpop.f32.mrb[0].mxu0
    %v3275 = vpop.f32.mrb[0].mxu0
    %v3276 = vpop.f32.mrb[0].mxu0
    %3277 = vdwg.mxu0
    %v3278 = vadd.f32 %v2950, %v3273
    %v3279 = vld [vmem:[#allocation3 + $0x10] sm:$0x44]
    %v3280 = vld [vmem:[#allocation3 + $0x18] sm:$0x44]
    %s3281 = scalar_lea.vmem [#allocation9], 1344
    %v3282 = vld [vmem:[%s3281] sm:$0xf]
    %v3283 = vld [vmem:[%s3281 + $0x4] sm:$0xf]
    %v3284 = vld [vmem:[%s3281 + $0x8] sm:$0xf]
    %v3285 = vld [vmem:[%s3281 + $0xc] sm:$0xf]
    %v3286 = vld [vmem:[%s3281 + $0x10] sm:$0xf]
    %v3287 = vld [vmem:[%s3281 + $0x14] sm:$0xf]
    %v3288 = vld [vmem:[%s3281 + $0x18] sm:$0xf]
    %v3289 = vld [vmem:[%s3281 + $0x1c] sm:$0xf]
    %v3290 = vld [vmem:[%s3281 + $0x20] sm:$0xf]
    %v3291 = vld [vmem:[%s3281 + $0x24] sm:$0xf]
    %v3292 = vld [vmem:[%s3281 + $0x28] sm:$0xf]
    %v3293 = vld [vmem:[%s3281 + $0x2c] sm:$0xf]
    %v3294 = vld [vmem:[%s3281 + $0x30] sm:$0xf]
    %v3295 = vld [vmem:[%s3281 + $0x34] sm:$0xf]
    %v3296 = vld [vmem:[%s3281 + $0x38] sm:$0xf]
    %v3297 = vld [vmem:[%s3281 + $0x3c] sm:$0xf]
    %v3298 = vld [vmem:[%s3281 + $0x40] sm:$0xf]
    %v3299 = vld [vmem:[%s3281 + $0x44] sm:$0xf]
    %v3300 = vld [vmem:[%s3281 + $0x48] sm:$0xf]
    %v3301 = vld [vmem:[%s3281 + $0x4c] sm:$0xf]
    %v3302 = vld [vmem:[%s3281 + $0x50] sm:$0xf]
    %v3303 = vld [vmem:[%s3281 + $0x54] sm:$0xf]
    %v3304 = vld [vmem:[%s3281 + $0x58] sm:$0xf]
    %v3305 = vld [vmem:[%s3281 + $0x5c] sm:$0xf]
    %v3306 = vld [vmem:[%s3281 + $0x60] sm:$0xf]
    %v3307 = vld [vmem:[%s3281 + $0x64] sm:$0xf]
    %v3308 = vld [vmem:[%s3281 + $0x68] sm:$0xf]
    %v3309 = vld [vmem:[%s3281 + $0x6c] sm:$0xf]
    %v3310 = vld [vmem:[%s3281 + $0x70] sm:$0xf]
    %v3311 = vld [vmem:[%s3281 + $0x74] sm:$0xf]
    %v3312 = vld [vmem:[%s3281 + $0x78] sm:$0xf]
    %v3313 = vld [vmem:[%s3281 + $0x7c] sm:$0xf]
    %v3314 = vld [vmem:[%s3281 + $0x80] sm:$0xf]
    %v3315 = vld [vmem:[%s3281 + $0x84] sm:$0xf]
    %v3316 = vld [vmem:[%s3281 + $0x88] sm:$0xf]
    %v3317 = vld [vmem:[%s3281 + $0x8c] sm:$0xf]
    %v3318 = vld [vmem:[%s3281 + $0x90] sm:$0xf]
    %v3319 = vld [vmem:[%s3281 + $0x94] sm:$0xf]
    %v3320 = vld [vmem:[%s3281 + $0x98] sm:$0xf]
    %v3321 = vld [vmem:[%s3281 + $0x9c] sm:$0xf]
    %v3322 = vld [vmem:[%s3281 + $0xa0] sm:$0xf]
    %v3323 = vld [vmem:[%s3281 + $0xa4] sm:$0xf]
    %v3324 = vld [vmem:[%s3281 + $0xa8] sm:$0xf]
    %v3325 = vld [vmem:[%s3281 + $0xac] sm:$0xf]
    %v3326 = vld [vmem:[%s3281 + $0xb0] sm:$0xf]
    %v3327 = vld [vmem:[%s3281 + $0xb4] sm:$0xf]
    %v3328 = vld [vmem:[%s3281 + $0xb8] sm:$0xf]
    %v3329 = vld [vmem:[%s3281 + $0xbc] sm:$0xf]
    %v3330 = vld [vmem:[%s3281 + $0xc0] sm:$0xf]
    %v3331 = vld [vmem:[%s3281 + $0xc4] sm:$0xf]
    %v3332 = vld [vmem:[%s3281 + $0xc8] sm:$0xf]
    %v3333 = vld [vmem:[%s3281 + $0xcc] sm:$0xf]
    %v3334 = vld [vmem:[%s3281 + $0xd0] sm:$0xf]
    %v3335 = vld [vmem:[%s3281 + $0xd4] sm:$0xf]
    %v3336 = vld [vmem:[%s3281 + $0xd8] sm:$0xf]
    %v3337 = vld [vmem:[%s3281 + $0xdc] sm:$0xf]
    %v3340 = vunpack.c.l.b16 %v3279
    %v3341 = vunpack.c.h.b16 %v3279
    %v3342 = vunpack.c.l.b16 %v3280
    %v3343 = vunpack.c.h.b16 %v3280
    %v3344 = vpack.c.b16 %v3340, %v3340
    %v3345 = vpack.c.b16 %v3341, %v3341
    %v3346 = vpack.c.b16 %v3342, %v3342
    %v3347 = vpack.c.b16 %v3343, %v3343
    %v3348 = vrot.slane %v3344, 2
    %v3349 = vrot.slane %v3345, 2
    %v3350 = vrot.slane %v3346, 2
    %v3351 = vrot.slane %v3347, 2
    %v3411 = vunpack.c.l.b16 %v3282
    %v3412 = vunpack.c.l.b16 %v3283
    %v3413 = vunpack.c.l.b16 %v3284
    %v3414 = vunpack.c.l.b16 %v3285
    %v3415 = vunpack.c.l.b16 %v3286
    %v3416 = vunpack.c.l.b16 %v3287
    %v3417 = vunpack.c.l.b16 %v3288
    %v3418 = vunpack.c.l.b16 %v3289
    %v3419 = vunpack.c.l.b16 %v3290
    %v3420 = vunpack.c.l.b16 %v3291
    %v3421 = vunpack.c.l.b16 %v3292
    %v3422 = vunpack.c.l.b16 %v3293
    %v3423 = vunpack.c.l.b16 %v3294
    %v3424 = vunpack.c.l.b16 %v3295
    %v3425 = vunpack.c.l.b16 %v3296
    %v3426 = vunpack.c.l.b16 %v3297
    %v3427 = vunpack.c.l.b16 %v3298
    %v3428 = vunpack.c.l.b16 %v3299
    %v3429 = vunpack.c.l.b16 %v3300
    %v3430 = vunpack.c.l.b16 %v3301
    %v3431 = vunpack.c.l.b16 %v3302
    %v3432 = vunpack.c.l.b16 %v3303
    %v3433 = vunpack.c.l.b16 %v3304
    %v3434 = vunpack.c.l.b16 %v3305
    %v3435 = vunpack.c.l.b16 %v3306
    %v3436 = vunpack.c.l.b16 %v3307
    %v3437 = vunpack.c.l.b16 %v3308
    %v3438 = vunpack.c.l.b16 %v3309
    %v3439 = vunpack.c.l.b16 %v3310
    %v3440 = vunpack.c.l.b16 %v3311
    %v3441 = vunpack.c.l.b16 %v3312
    %v3442 = vunpack.c.l.b16 %v3313
    %v3443 = vunpack.c.l.b16 %v3314
    %v3444 = vunpack.c.l.b16 %v3315
    %v3445 = vunpack.c.l.b16 %v3316
    %v3446 = vunpack.c.l.b16 %v3317
    %v3447 = vunpack.c.l.b16 %v3318
    %v3448 = vunpack.c.l.b16 %v3319
    %v3449 = vunpack.c.l.b16 %v3320
    %v3450 = vunpack.c.l.b16 %v3321
    %v3451 = vunpack.c.l.b16 %v3322
    %v3452 = vunpack.c.l.b16 %v3323
    %v3453 = vunpack.c.l.b16 %v3324
    %v3454 = vunpack.c.l.b16 %v3325
    %v3455 = vunpack.c.l.b16 %v3326
    %v3456 = vunpack.c.l.b16 %v3327
    %v3457 = vunpack.c.l.b16 %v3328
    %v3458 = vunpack.c.l.b16 %v3329
    %v3459 = vunpack.c.l.b16 %v3330
    %v3460 = vunpack.c.l.b16 %v3331
    %v3461 = vunpack.c.l.b16 %v3332
    %v3462 = vunpack.c.l.b16 %v3333
    %v3463 = vunpack.c.l.b16 %v3334
    %v3464 = vunpack.c.l.b16 %v3335
    %v3465 = vunpack.c.l.b16 %v3336
    %v3466 = vunpack.c.l.b16 %v3337
    %v3467 = vpack.c.b16 %v3412, %v3411
    %v3468 = vpack.c.b16 %v3414, %v3413
    %v3469 = vpack.c.b16 %v3416, %v3415
    %v3470 = vpack.c.b16 %v3418, %v3417
    %v3471 = vpack.c.b16 %v3420, %v3419
    %v3472 = vpack.c.b16 %v3422, %v3421
    %v3473 = vpack.c.b16 %v3424, %v3423
    %v3474 = vpack.c.b16 %v3426, %v3425
    %v3475 = vpack.c.b16 %v3428, %v3427
    %v3476 = vpack.c.b16 %v3430, %v3429
    %v3477 = vpack.c.b16 %v3432, %v3431
    %v3478 = vpack.c.b16 %v3434, %v3433
    %v3479 = vpack.c.b16 %v3436, %v3435
    %v3480 = vpack.c.b16 %v3438, %v3437
    %v3481 = vpack.c.b16 %v3440, %v3439
    %v3482 = vpack.c.b16 %v3442, %v3441
    %v3483 = vpack.c.b16 %v3444, %v3443
    %v3484 = vpack.c.b16 %v3446, %v3445
    %v3485 = vpack.c.b16 %v3448, %v3447
    %v3486 = vpack.c.b16 %v3450, %v3449
    %v3487 = vpack.c.b16 %v3452, %v3451
    %v3488 = vpack.c.b16 %v3454, %v3453
    %v3489 = vpack.c.b16 %v3456, %v3455
    %v3490 = vpack.c.b16 %v3458, %v3457
    %v3491 = vpack.c.b16 %v3460, %v3459
    %v3492 = vpack.c.b16 %v3462, %v3461
    %v3493 = vpack.c.b16 %v3464, %v3463
    %v3494 = vpack.c.b16 %v3466, %v3465
    %v3524 = vsel %vm1216, %v3351, 0
    %3526 = vmatprep.subr.bf16.mxu0 0
    %3527 = vmatpush1.bf16.msra.mxu0 %v3467
    %3528 = vmatprep.subr.bf16.mxu0 0
    %3529 = vmatpush1.bf16.msra.mxu0 %v3468
    %3530 = vmatprep.subr.bf16.mxu0 0
    %3531 = vmatpush1.bf16.msra.mxu0 %v3469
    %3532 = vmatprep.subr.bf16.mxu0 0
    %3533 = vmatpush1.bf16.msra.mxu0 %v3470
    %3534 = vmatprep.subr.bf16.mxu0 0
    %3535 = vmatpush1.bf16.msra.mxu0 %v3471
    %3536 = vmatprep.subr.bf16.mxu0 0
    %3537 = vmatpush1.bf16.msra.mxu0 %v3472
    %3538 = vmatprep.subr.bf16.mxu0 0
    %3539 = vmatpush1.bf16.msra.mxu0 %v3473
    %3540 = vmatprep.subr.bf16.mxu0 0
    %3541 = vmatpush1.bf16.msra.mxu0 %v3474
    %3542 = vmatprep.subr.bf16.mxu0 0
    %3543 = vmatpush1.bf16.msra.mxu0 %v3475
    %3544 = vmatprep.subr.bf16.mxu0 0
    %3545 = vmatpush1.bf16.msra.mxu0 %v3476
    %3546 = vmatprep.subr.bf16.mxu0 0
    %3547 = vmatpush1.bf16.msra.mxu0 %v3477
    %3548 = vmatprep.subr.bf16.mxu0 0
    %3549 = vmatpush1.bf16.msra.mxu0 %v3478
    %3550 = vmatprep.subr.bf16.mxu0 0
    %3551 = vmatpush1.bf16.msra.mxu0 %v3479
    %3552 = vmatprep.subr.bf16.mxu0 0
    %3553 = vmatpush1.bf16.msra.mxu0 %v3480
    %3554 = vmatprep.subr.bf16.mxu0 0
    %3555 = vmatpush1.bf16.msra.mxu0 %v3481
    %3556 = vmatprep.subr.bf16.mxu0 0
    %3557 = vmatpush1.bf16.msra.mxu0 %v3482
    %3558 = vmatprep.mubr.bf16.mxu0 %v3349
    %3559 = vmatmul.mubr.bf16.gmra.mrb[0].mxu0 %v3348
    %v3560 = vpop.f32.mrb[0].mxu0
    %v3561 = vadd.f32 0.0, %v3560
    %v3562 = vpop.f32.mrb[0].mxu0
    %v3563 = vpop.f32.mrb[0].mxu0
    %v3564 = vpop.f32.mrb[0].mxu0
    %3565 = vdwg.mxu0
    %3566 = vmatprep.subr.bf16.mxu0 0
    %3567 = vmatpush1.bf16.msra.mxu0 %v3483
    %3568 = vmatprep.subr.bf16.mxu0 0
    %3569 = vmatpush1.bf16.msra.mxu0 %v3484
    %3570 = vmatprep.subr.bf16.mxu0 0
    %3571 = vmatpush1.bf16.msra.mxu0 %v3485
    %3572 = vmatprep.subr.bf16.mxu0 0
    %3573 = vmatpush1.bf16.msra.mxu0 %v3486
    %3574 = vmatprep.subr.bf16.mxu0 0
    %3575 = vmatpush1.bf16.msra.mxu0 %v3487
    %3576 = vmatprep.subr.bf16.mxu0 0
    %3577 = vmatpush1.bf16.msra.mxu0 %v3488
    %3578 = vmatprep.subr.bf16.mxu0 0
    %3579 = vmatpush1.bf16.msra.mxu0 %v3489
    %3580 = vmatprep.subr.bf16.mxu0 0
    %3581 = vmatpush1.bf16.msra.mxu0 %v3490
    %3582 = vmatprep.subr.bf16.mxu0 0
    %3583 = vmatpush1.bf16.msra.mxu0 %v3491
    %3584 = vmatprep.subr.bf16.mxu0 0
    %3585 = vmatpush1.bf16.msra.mxu0 %v3492
    %3586 = vmatprep.subr.bf16.mxu0 0
    %3587 = vmatpush1.bf16.msra.mxu0 %v3493
    %3588 = vmatprep.subr.bf16.mxu0 0
    %3589 = vmatpush1.bf16.msra.mxu0 %v3494
    %3590 = vmatprep.subr.bf16.mxu0 0
    %3591 = vmatpush1.bf16.msra.mxu0 0
    %3592 = vmatprep.subr.bf16.mxu0 0
    %3593 = vmatpush1.bf16.msra.mxu0 0
    %3594 = vmatprep.subr.bf16.mxu0 0
    %3595 = vmatpush1.bf16.msra.mxu0 0
    %3596 = vmatprep.subr.bf16.mxu0 0
    %3597 = vmatpush1.bf16.msra.mxu0 0
    %3598 = vmatprep.mubr.bf16.mxu0 %v3524
    %3599 = vmatmul.mubr.bf16.gmra.mrb[0].mxu0 %v3350
    %v3600 = vpop.f32.mrb[0].mxu0
    %v3601 = vadd.f32 %v3561, %v3600
    %v3602 = vpop.f32.mrb[0].mxu0
    %v3603 = vpop.f32.mrb[0].mxu0
    %v3604 = vpop.f32.mrb[0].mxu0
    %3605 = vdwg.mxu0
    %v3606 = vadd.f32 %v3278, %v3601
    %v3607 = vld [vmem:[#allocation3 + $0x10] sm:$0x88]
    %v3608 = vld [vmem:[#allocation3 + $0x18] sm:$0x88]
    %s3609 = scalar_lea.vmem [#allocation9], 1568
    %v3610 = vld [vmem:[%s3609] sm:$0xf]
    %v3611 = vld [vmem:[%s3609 + $0x4] sm:$0xf]
    %v3612 = vld [vmem:[%s3609 + $0x8] sm:$0xf]
    %v3613 = vld [vmem:[%s3609 + $0xc] sm:$0xf]
    %v3614 = vld [vmem:[%s3609 + $0x10] sm:$0xf]
    %v3615 = vld [vmem:[%s3609 + $0x14] sm:$0xf]
    %v3616 = vld [vmem:[%s3609 + $0x18] sm:$0xf]
    %v3617 = vld [vmem:[%s3609 + $0x1c] sm:$0xf]
    %v3618 = vld [vmem:[%s3609 + $0x20] sm:$0xf]
    %v3619 = vld [vmem:[%s3609 + $0x24] sm:$0xf]
    %v3620 = vld [vmem:[%s3609 + $0x28] sm:$0xf]
    %v3621 = vld [vmem:[%s3609 + $0x2c] sm:$0xf]
    %v3622 = vld [vmem:[%s3609 + $0x30] sm:$0xf]
    %v3623 = vld [vmem:[%s3609 + $0x34] sm:$0xf]
    %v3624 = vld [vmem:[%s3609 + $0x38] sm:$0xf]
    %v3625 = vld [vmem:[%s3609 + $0x3c] sm:$0xf]
    %v3626 = vld [vmem:[%s3609 + $0x40] sm:$0xf]
    %v3627 = vld [vmem:[%s3609 + $0x44] sm:$0xf]
    %v3628 = vld [vmem:[%s3609 + $0x48] sm:$0xf]
    %v3629 = vld [vmem:[%s3609 + $0x4c] sm:$0xf]
    %v3630 = vld [vmem:[%s3609 + $0x50] sm:$0xf]
    %v3631 = vld [vmem:[%s3609 + $0x54] sm:$0xf]
    %v3632 = vld [vmem:[%s3609 + $0x58] sm:$0xf]
    %v3633 = vld [vmem:[%s3609 + $0x5c] sm:$0xf]
    %v3634 = vld [vmem:[%s3609 + $0x60] sm:$0xf]
    %v3635 = vld [vmem:[%s3609 + $0x64] sm:$0xf]
    %v3636 = vld [vmem:[%s3609 + $0x68] sm:$0xf]
    %v3637 = vld [vmem:[%s3609 + $0x6c] sm:$0xf]
    %v3638 = vld [vmem:[%s3609 + $0x70] sm:$0xf]
    %v3639 = vld [vmem:[%s3609 + $0x74] sm:$0xf]
    %v3640 = vld [vmem:[%s3609 + $0x78] sm:$0xf]
    %v3641 = vld [vmem:[%s3609 + $0x7c] sm:$0xf]
    %v3642 = vld [vmem:[%s3609 + $0x80] sm:$0xf]
    %v3643 = vld [vmem:[%s3609 + $0x84] sm:$0xf]
    %v3644 = vld [vmem:[%s3609 + $0x88] sm:$0xf]
    %v3645 = vld [vmem:[%s3609 + $0x8c] sm:$0xf]
    %v3646 = vld [vmem:[%s3609 + $0x90] sm:$0xf]
    %v3647 = vld [vmem:[%s3609 + $0x94] sm:$0xf]
    %v3648 = vld [vmem:[%s3609 + $0x98] sm:$0xf]
    %v3649 = vld [vmem:[%s3609 + $0x9c] sm:$0xf]
    %v3650 = vld [vmem:[%s3609 + $0xa0] sm:$0xf]
    %v3651 = vld [vmem:[%s3609 + $0xa4] sm:$0xf]
    %v3652 = vld [vmem:[%s3609 + $0xa8] sm:$0xf]
    %v3653 = vld [vmem:[%s3609 + $0xac] sm:$0xf]
    %v3654 = vld [vmem:[%s3609 + $0xb0] sm:$0xf]
    %v3655 = vld [vmem:[%s3609 + $0xb4] sm:$0xf]
    %v3656 = vld [vmem:[%s3609 + $0xb8] sm:$0xf]
    %v3657 = vld [vmem:[%s3609 + $0xbc] sm:$0xf]
    %v3658 = vld [vmem:[%s3609 + $0xc0] sm:$0xf]
    %v3659 = vld [vmem:[%s3609 + $0xc4] sm:$0xf]
    %v3660 = vld [vmem:[%s3609 + $0xc8] sm:$0xf]
    %v3661 = vld [vmem:[%s3609 + $0xcc] sm:$0xf]
    %v3662 = vld [vmem:[%s3609 + $0xd0] sm:$0xf]
    %v3663 = vld [vmem:[%s3609 + $0xd4] sm:$0xf]
    %v3664 = vld [vmem:[%s3609 + $0xd8] sm:$0xf]
    %v3665 = vld [vmem:[%s3609 + $0xdc] sm:$0xf]
    %v3668 = vunpack.c.l.b16 %v3607
    %v3669 = vunpack.c.h.b16 %v3607
    %v3670 = vunpack.c.l.b16 %v3608
    %v3671 = vunpack.c.h.b16 %v3608
    %v3672 = vpack.c.b16 %v3668, %v3668
    %v3673 = vpack.c.b16 %v3669, %v3669
    %v3674 = vpack.c.b16 %v3670, %v3670
    %v3675 = vpack.c.b16 %v3671, %v3671
    %v3676 = vrot.slane %v3672, 3
    %v3677 = vrot.slane %v3673, 3
    %v3678 = vrot.slane %v3674, 3
    %v3679 = vrot.slane %v3675, 3
    %v3739 = vunpack.c.l.b16 %v3610
    %v3740 = vunpack.c.l.b16 %v3611
    %v3741 = vunpack.c.l.b16 %v3612
    %v3742 = vunpack.c.l.b16 %v3613
    %v3743 = vunpack.c.l.b16 %v3614
    %v3744 = vunpack.c.l.b16 %v3615
    %v3745 = vunpack.c.l.b16 %v3616
    %v3746 = vunpack.c.l.b16 %v3617
    %v3747 = vunpack.c.l.b16 %v3618
    %v3748 = vunpack.c.l.b16 %v3619
    %v3749 = vunpack.c.l.b16 %v3620
    %v3750 = vunpack.c.l.b16 %v3621
    %v3751 = vunpack.c.l.b16 %v3622
    %v3752 = vunpack.c.l.b16 %v3623
    %v3753 = vunpack.c.l.b16 %v3624
    %v3754 = vunpack.c.l.b16 %v3625
    %v3755 = vunpack.c.l.b16 %v3626
    %v3756 = vunpack.c.l.b16 %v3627
    %v3757 = vunpack.c.l.b16 %v3628
    %v3758 = vunpack.c.l.b16 %v3629
    %v3759 = vunpack.c.l.b16 %v3630
    %v3760 = vunpack.c.l.b16 %v3631
    %v3761 = vunpack.c.l.b16 %v3632
    %v3762 = vunpack.c.l.b16 %v3633
    %v3763 = vunpack.c.l.b16 %v3634
    %v3764 = vunpack.c.l.b16 %v3635
    %v3765 = vunpack.c.l.b16 %v3636
    %v3766 = vunpack.c.l.b16 %v3637
    %v3767 = vunpack.c.l.b16 %v3638
    %v3768 = vunpack.c.l.b16 %v3639
    %v3769 = vunpack.c.l.b16 %v3640
    %v3770 = vunpack.c.l.b16 %v3641
    %v3771 = vunpack.c.l.b16 %v3642
    %v3772 = vunpack.c.l.b16 %v3643
    %v3773 = vunpack.c.l.b16 %v3644
    %v3774 = vunpack.c.l.b16 %v3645
    %v3775 = vunpack.c.l.b16 %v3646
    %v3776 = vunpack.c.l.b16 %v3647
    %v3777 = vunpack.c.l.b16 %v3648
    %v3778 = vunpack.c.l.b16 %v3649
    %v3779 = vunpack.c.l.b16 %v3650
    %v3780 = vunpack.c.l.b16 %v3651
    %v3781 = vunpack.c.l.b16 %v3652
    %v3782 = vunpack.c.l.b16 %v3653
    %v3783 = vunpack.c.l.b16 %v3654
    %v3784 = vunpack.c.l.b16 %v3655
    %v3785 = vunpack.c.l.b16 %v3656
    %v3786 = vunpack.c.l.b16 %v3657
    %v3787 = vunpack.c.l.b16 %v3658
    %v3788 = vunpack.c.l.b16 %v3659
    %v3789 = vunpack.c.l.b16 %v3660
    %v3790 = vunpack.c.l.b16 %v3661
    %v3791 = vunpack.c.l.b16 %v3662
    %v3792 = vunpack.c.l.b16 %v3663
    %v3793 = vunpack.c.l.b16 %v3664
    %v3794 = vunpack.c.l.b16 %v3665
    %v3795 = vpack.c.b16 %v3740, %v3739
    %v3796 = vpack.c.b16 %v3742, %v3741
    %v3797 = vpack.c.b16 %v3744, %v3743
    %v3798 = vpack.c.b16 %v3746, %v3745
    %v3799 = vpack.c.b16 %v3748, %v3747
    %v3800 = vpack.c.b16 %v3750, %v3749
    %v3801 = vpack.c.b16 %v3752, %v3751
    %v3802 = vpack.c.b16 %v3754, %v3753
    %v3803 = vpack.c.b16 %v3756, %v3755
    %v3804 = vpack.c.b16 %v3758, %v3757
    %v3805 = vpack.c.b16 %v3760, %v3759
    %v3806 = vpack.c.b16 %v3762, %v3761
    %v3807 = vpack.c.b16 %v3764, %v3763
    %v3808 = vpack.c.b16 %v3766, %v3765
    %v3809 = vpack.c.b16 %v3768, %v3767
    %v3810 = vpack.c.b16 %v3770, %v3769
    %v3811 = vpack.c.b16 %v3772, %v3771
    %v3812 = vpack.c.b16 %v3774, %v3773
    %v3813 = vpack.c.b16 %v3776, %v3775
    %v3814 = vpack.c.b16 %v3778, %v3777
    %v3815 = vpack.c.b16 %v3780, %v3779
    %v3816 = vpack.c.b16 %v3782, %v3781
    %v3817 = vpack.c.b16 %v3784, %v3783
    %v3818 = vpack.c.b16 %v3786, %v3785
    %v3819 = vpack.c.b16 %v3788, %v3787
    %v3820 = vpack.c.b16 %v3790, %v3789
    %v3821 = vpack.c.b16 %v3792, %v3791
    %v3822 = vpack.c.b16 %v3794, %v3793
    %v3852 = vsel %vm1216, %v3679, 0
    %3854 = vmatprep.subr.bf16.mxu0 0
    %3855 = vmatpush1.bf16.msra.mxu0 %v3795
    %3856 = vmatprep.subr.bf16.mxu0 0
    %3857 = vmatpush1.bf16.msra.mxu0 %v3796
    %3858 = vmatprep.subr.bf16.mxu0 0
    %3859 = vmatpush1.bf16.msra.mxu0 %v3797
    %3860 = vmatprep.subr.bf16.mxu0 0
    %3861 = vmatpush1.bf16.msra.mxu0 %v3798
    %3862 = vmatprep.subr.bf16.mxu0 0
    %3863 = vmatpush1.bf16.msra.mxu0 %v3799
    %3864 = vmatprep.subr.bf16.mxu0 0
    %3865 = vmatpush1.bf16.msra.mxu0 %v3800
    %3866 = vmatprep.subr.bf16.mxu0 0
    %3867 = vmatpush1.bf16.msra.mxu0 %v3801
    %3868 = vmatprep.subr.bf16.mxu0 0
    %3869 = vmatpush1.bf16.msra.mxu0 %v3802
    %3870 = vmatprep.subr.bf16.mxu0 0
    %3871 = vmatpush1.bf16.msra.mxu0 %v3803
    %3872 = vmatprep.subr.bf16.mxu0 0
    %3873 = vmatpush1.bf16.msra.mxu0 %v3804
    %3874 = vmatprep.subr.bf16.mxu0 0
    %3875 = vmatpush1.bf16.msra.mxu0 %v3805
    %3876 = vmatprep.subr.bf16.mxu0 0
    %3877 = vmatpush1.bf16.msra.mxu0 %v3806
    %3878 = vmatprep.subr.bf16.mxu0 0
    %3879 = vmatpush1.bf16.msra.mxu0 %v3807
    %3880 = vmatprep.subr.bf16.mxu0 0
    %3881 = vmatpush1.bf16.msra.mxu0 %v3808
    %3882 = vmatprep.subr.bf16.mxu0 0
    %3883 = vmatpush1.bf16.msra.mxu0 %v3809
    %3884 = vmatprep.subr.bf16.mxu0 0
    %3885 = vmatpush1.bf16.msra.mxu0 %v3810
    %3886 = vmatprep.mubr.bf16.mxu0 %v3677
    %3887 = vmatmul.mubr.bf16.gmra.mrb[0].mxu0 %v3676
    %v3888 = vpop.f32.mrb[0].mxu0
    %v3889 = vadd.f32 0.0, %v3888
    %v3890 = vpop.f32.mrb[0].mxu0
    %v3891 = vpop.f32.mrb[0].mxu0
    %v3892 = vpop.f32.mrb[0].mxu0
    %3893 = vdwg.mxu0
    %3894 = vmatprep.subr.bf16.mxu0 0
    %3895 = vmatpush1.bf16.msra.mxu0 %v3811
    %3896 = vmatprep.subr.bf16.mxu0 0
    %3897 = vmatpush1.bf16.msra.mxu0 %v3812
    %3898 = vmatprep.subr.bf16.mxu0 0
    %3899 = vmatpush1.bf16.msra.mxu0 %v3813
    %3900 = vmatprep.subr.bf16.mxu0 0
    %3901 = vmatpush1.bf16.msra.mxu0 %v3814
    %3902 = vmatprep.subr.bf16.mxu0 0
    %3903 = vmatpush1.bf16.msra.mxu0 %v3815
    %3904 = vmatprep.subr.bf16.mxu0 0
    %3905 = vmatpush1.bf16.msra.mxu0 %v3816
    %3906 = vmatprep.subr.bf16.mxu0 0
    %3907 = vmatpush1.bf16.msra.mxu0 %v3817
    %3908 = vmatprep.subr.bf16.mxu0 0
    %3909 = vmatpush1.bf16.msra.mxu0 %v3818
    %3910 = vmatprep.subr.bf16.mxu0 0
    %3911 = vmatpush1.bf16.msra.mxu0 %v3819
    %3912 = vmatprep.subr.bf16.mxu0 0
    %3913 = vmatpush1.bf16.msra.mxu0 %v3820
    %3914 = vmatprep.subr.bf16.mxu0 0
    %3915 = vmatpush1.bf16.msra.mxu0 %v3821
    %3916 = vmatprep.subr.bf16.mxu0 0
    %3917 = vmatpush1.bf16.msra.mxu0 %v3822
    %3918 = vmatprep.subr.bf16.mxu0 0
    %3919 = vmatpush1.bf16.msra.mxu0 0
    %3920 = vmatprep.subr.bf16.mxu0 0
    %3921 = vmatpush1.bf16.msra.mxu0 0
    %3922 = vmatprep.subr.bf16.mxu0 0
    %3923 = vmatpush1.bf16.msra.mxu0 0
    %3924 = vmatprep.subr.bf16.mxu0 0
    %3925 = vmatpush1.bf16.msra.mxu0 0
    %3926 = vmatprep.mubr.bf16.mxu0 %v3852
    %3927 = vmatmul.mubr.bf16.gmra.mrb[0].mxu0 %v3678
    %v3928 = vpop.f32.mrb[0].mxu0
    %v3929 = vadd.f32 %v3889, %v3928
    %v3930 = vpop.f32.mrb[0].mxu0
    %v3931 = vpop.f32.mrb[0].mxu0
    %v3932 = vpop.f32.mrb[0].mxu0
    %3933 = vdwg.mxu0
    %v3934 = vadd.f32 %v3606, %v3929
    %v3935 = vld [vmem:[#allocation3 + $0x20] sm:$0x11]
    %v3936 = vld [vmem:[#allocation3 + $0x28] sm:$0x11]
    %s3937 = scalar_lea.vmem [#allocation9], 1792
    %v3938 = vld [vmem:[%s3937] sm:$0xf]
    %v3939 = vld [vmem:[%s3937 + $0x4] sm:$0xf]
    %v3940 = vld [vmem:[%s3937 + $0x8] sm:$0xf]
    %v3941 = vld [vmem:[%s3937 + $0xc] sm:$0xf]
    %v3942 = vld [vmem:[%s3937 + $0x10] sm:$0xf]
    %v3943 = vld [vmem:[%s3937 + $0x14] sm:$0xf]
    %v3944 = vld [vmem:[%s3937 + $0x18] sm:$0xf]
    %v3945 = vld [vmem:[%s3937 + $0x1c] sm:$0xf]
    %v3946 = vld [vmem:[%s3937 + $0x20] sm:$0xf]
    %v3947 = vld [vmem:[%s3937 + $0x24] sm:$0xf]
    %v3948 = vld [vmem:[%s3937 + $0x28] sm:$0xf]
    %v3949 = vld [vmem:[%s3937 + $0x2c] sm:$0xf]
    %v3950 = vld [vmem:[%s3937 + $0x30] sm:$0xf]
    %v3951 = vld [vmem:[%s3937 + $0x34] sm:$0xf]
    %v3952 = vld [vmem:[%s3937 + $0x38] sm:$0xf]
    %v3953 = vld [vmem:[%s3937 + $0x3c] sm:$0xf]
    %v3954 = vld [vmem:[%s3937 + $0x40] sm:$0xf]
    %v3955 = vld [vmem:[%s3937 + $0x44] sm:$0xf]
    %v3956 = vld [vmem:[%s3937 + $0x48] sm:$0xf]
    %v3957 = vld [vmem:[%s3937 + $0x4c] sm:$0xf]
    %v3958 = vld [vmem:[%s3937 + $0x50] sm:$0xf]
    %v3959 = vld [vmem:[%s3937 + $0x54] sm:$0xf]
    %v3960 = vld [vmem:[%s3937 + $0x58] sm:$0xf]
    %v3961 = vld [vmem:[%s3937 + $0x5c] sm:$0xf]
    %v3962 = vld [vmem:[%s3937 + $0x60] sm:$0xf]
    %v3963 = vld [vmem:[%s3937 + $0x64] sm:$0xf]
    %v3964 = vld [vmem:[%s3937 + $0x68] sm:$0xf]
    %v3965 = vld [vmem:[%s3937 + $0x6c] sm:$0xf]
    %v3966 = vld [vmem:[%s3937 + $0x70] sm:$0xf]
    %v3967 = vld [vmem:[%s3937 + $0x74] sm:$0xf]
    %v3968 = vld [vmem:[%s3937 + $0x78] sm:$0xf]
    %v3969 = vld [vmem:[%s3937 + $0x7c] sm:$0xf]
    %v3970 = vld [vmem:[%s3937 + $0x80] sm:$0xf]
    %v3971 = vld [vmem:[%s3937 + $0x84] sm:$0xf]
    %v3972 = vld [vmem:[%s3937 + $0x88] sm:$0xf]
    %v3973 = vld [vmem:[%s3937 + $0x8c] sm:$0xf]
    %v3974 = vld [vmem:[%s3937 + $0x90] sm:$0xf]
    %v3975 = vld [vmem:[%s3937 + $0x94] sm:$0xf]
    %v3976 = vld [vmem:[%s3937 + $0x98] sm:$0xf]
    %v3977 = vld [vmem:[%s3937 + $0x9c] sm:$0xf]
    %v3978 = vld [vmem:[%s3937 + $0xa0] sm:$0xf]
    %v3979 = vld [vmem:[%s3937 + $0xa4] sm:$0xf]
    %v3980 = vld [vmem:[%s3937 + $0xa8] sm:$0xf]
    %v3981 = vld [vmem:[%s3937 + $0xac] sm:$0xf]
    %v3982 = vld [vmem:[%s3937 + $0xb0] sm:$0xf]
    %v3983 = vld [vmem:[%s3937 + $0xb4] sm:$0xf]
    %v3984 = vld [vmem:[%s3937 + $0xb8] sm:$0xf]
    %v3985 = vld [vmem:[%s3937 + $0xbc] sm:$0xf]
    %v3986 = vld [vmem:[%s3937 + $0xc0] sm:$0xf]
    %v3987 = vld [vmem:[%s3937 + $0xc4] sm:$0xf]
    %v3988 = vld [vmem:[%s3937 + $0xc8] sm:$0xf]
    %v3989 = vld [vmem:[%s3937 + $0xcc] sm:$0xf]
    %v3990 = vld [vmem:[%s3937 + $0xd0] sm:$0xf]
    %v3991 = vld [vmem:[%s3937 + $0xd4] sm:$0xf]
    %v3992 = vld [vmem:[%s3937 + $0xd8] sm:$0xf]
    %v3993 = vld [vmem:[%s3937 + $0xdc] sm:$0xf]
    %v3996 = vunpack.c.l.b16 %v3935
    %v3997 = vunpack.c.h.b16 %v3935
    %v3998 = vunpack.c.l.b16 %v3936
    %v3999 = vunpack.c.h.b16 %v3936
    %v4000 = vpack.c.b16 %v3996, %v3996
    %v4001 = vpack.c.b16 %v3997, %v3997
    %v4002 = vpack.c.b16 %v3998, %v3998
    %v4003 = vpack.c.b16 %v3999, %v3999
    %v4063 = vunpack.c.l.b16 %v3938
    %v4064 = vunpack.c.l.b16 %v3939
    %v4065 = vunpack.c.l.b16 %v3940
    %v4066 = vunpack.c.l.b16 %v3941
    %v4067 = vunpack.c.l.b16 %v3942
    %v4068 = vunpack.c.l.b16 %v3943
    %v4069 = vunpack.c.l.b16 %v3944
    %v4070 = vunpack.c.l.b16 %v3945
    %v4071 = vunpack.c.l.b16 %v3946
    %v4072 = vunpack.c.l.b16 %v3947
    %v4073 = vunpack.c.l.b16 %v3948
    %v4074 = vunpack.c.l.b16 %v3949
    %v4075 = vunpack.c.l.b16 %v3950
    %v4076 = vunpack.c.l.b16 %v3951
    %v4077 = vunpack.c.l.b16 %v3952
    %v4078 = vunpack.c.l.b16 %v3953
    %v4079 = vunpack.c.l.b16 %v3954
    %v4080 = vunpack.c.l.b16 %v3955
    %v4081 = vunpack.c.l.b16 %v3956
    %v4082 = vunpack.c.l.b16 %v3957
    %v4083 = vunpack.c.l.b16 %v3958
    %v4084 = vunpack.c.l.b16 %v3959
    %v4085 = vunpack.c.l.b16 %v3960
    %v4086 = vunpack.c.l.b16 %v3961
    %v4087 = vunpack.c.l.b16 %v3962
    %v4088 = vunpack.c.l.b16 %v3963
    %v4089 = vunpack.c.l.b16 %v3964
    %v4090 = vunpack.c.l.b16 %v3965
    %v4091 = vunpack.c.l.b16 %v3966
    %v4092 = vunpack.c.l.b16 %v3967
    %v4093 = vunpack.c.l.b16 %v3968
    %v4094 = vunpack.c.l.b16 %v3969
    %v4095 = vunpack.c.l.b16 %v3970
    %v4096 = vunpack.c.l.b16 %v3971
    %v4097 = vunpack.c.l.b16 %v3972
    %v4098 = vunpack.c.l.b16 %v3973
    %v4099 = vunpack.c.l.b16 %v3974
    %v4100 = vunpack.c.l.b16 %v3975
    %v4101 = vunpack.c.l.b16 %v3976
    %v4102 = vunpack.c.l.b16 %v3977
    %v4103 = vunpack.c.l.b16 %v3978
    %v4104 = vunpack.c.l.b16 %v3979
    %v4105 = vunpack.c.l.b16 %v3980
    %v4106 = vunpack.c.l.b16 %v3981
    %v4107 = vunpack.c.l.b16 %v3982
    %v4108 = vunpack.c.l.b16 %v3983
    %v4109 = vunpack.c.l.b16 %v3984
    %v4110 = vunpack.c.l.b16 %v3985
    %v4111 = vunpack.c.l.b16 %v3986
    %v4112 = vunpack.c.l.b16 %v3987
    %v4113 = vunpack.c.l.b16 %v3988
    %v4114 = vunpack.c.l.b16 %v3989
    %v4115 = vunpack.c.l.b16 %v3990
    %v4116 = vunpack.c.l.b16 %v3991
    %v4117 = vunpack.c.l.b16 %v3992
    %v4118 = vunpack.c.l.b16 %v3993
    %v4119 = vpack.c.b16 %v4064, %v4063
    %v4120 = vpack.c.b16 %v4066, %v4065
    %v4121 = vpack.c.b16 %v4068, %v4067
    %v4122 = vpack.c.b16 %v4070, %v4069
    %v4123 = vpack.c.b16 %v4072, %v4071
    %v4124 = vpack.c.b16 %v4074, %v4073
    %v4125 = vpack.c.b16 %v4076, %v4075
    %v4126 = vpack.c.b16 %v4078, %v4077
    %v4127 = vpack.c.b16 %v4080, %v4079
    %v4128 = vpack.c.b16 %v4082, %v4081
    %v4129 = vpack.c.b16 %v4084, %v4083
    %v4130 = vpack.c.b16 %v4086, %v4085
    %v4131 = vpack.c.b16 %v4088, %v4087
    %v4132 = vpack.c.b16 %v4090, %v4089
    %v4133 = vpack.c.b16 %v4092, %v4091
    %v4134 = vpack.c.b16 %v4094, %v4093
    %v4135 = vpack.c.b16 %v4096, %v4095
    %v4136 = vpack.c.b16 %v4098, %v4097
    %v4137 = vpack.c.b16 %v4100, %v4099
    %v4138 = vpack.c.b16 %v4102, %v4101
    %v4139 = vpack.c.b16 %v4104, %v4103
    %v4140 = vpack.c.b16 %v4106, %v4105
    %v4141 = vpack.c.b16 %v4108, %v4107
    %v4142 = vpack.c.b16 %v4110, %v4109
    %v4143 = vpack.c.b16 %v4112, %v4111
    %v4144 = vpack.c.b16 %v4114, %v4113
    %v4145 = vpack.c.b16 %v4116, %v4115
    %v4146 = vpack.c.b16 %v4118, %v4117
    %v4176 = vsel %vm1216, %v4003, 0
    %4178 = vmatprep.subr.bf16.mxu0 0
    %4179 = vmatpush1.bf16.msra.mxu0 %v4119
    %4180 = vmatprep.subr.bf16.mxu0 0
    %4181 = vmatpush1.bf16.msra.mxu0 %v4120
    %4182 = vmatprep.subr.bf16.mxu0 0
    %4183 = vmatpush1.bf16.msra.mxu0 %v4121
    %4184 = vmatprep.subr.bf16.mxu0 0
    %4185 = vmatpush1.bf16.msra.mxu0 %v4122
    %4186 = vmatprep.subr.bf16.mxu0 0
    %4187 = vmatpush1.bf16.msra.mxu0 %v4123
    %4188 = vmatprep.subr.bf16.mxu0 0
    %4189 = vmatpush1.bf16.msra.mxu0 %v4124
    %4190 = vmatprep.subr.bf16.mxu0 0
    %4191 = vmatpush1.bf16.msra.mxu0 %v4125
    %4192 = vmatprep.subr.bf16.mxu0 0
    %4193 = vmatpush1.bf16.msra.mxu0 %v4126
    %4194 = vmatprep.subr.bf16.mxu0 0
    %4195 = vmatpush1.bf16.msra.mxu0 %v4127
    %4196 = vmatprep.subr.bf16.mxu0 0
    %4197 = vmatpush1.bf16.msra.mxu0 %v4128
    %4198 = vmatprep.subr.bf16.mxu0 0
    %4199 = vmatpush1.bf16.msra.mxu0 %v4129
    %4200 = vmatprep.subr.bf16.mxu0 0
    %4201 = vmatpush1.bf16.msra.mxu0 %v4130
    %4202 = vmatprep.subr.bf16.mxu0 0
    %4203 = vmatpush1.bf16.msra.mxu0 %v4131
    %4204 = vmatprep.subr.bf16.mxu0 0
    %4205 = vmatpush1.bf16.msra.mxu0 %v4132
    %4206 = vmatprep.subr.bf16.mxu0 0
    %4207 = vmatpush1.bf16.msra.mxu0 %v4133
    %4208 = vmatprep.subr.bf16.mxu0 0
    %4209 = vmatpush1.bf16.msra.mxu0 %v4134
    %4210 = vmatprep.mubr.bf16.mxu0 %v4001
    %4211 = vmatmul.mubr.bf16.gmra.mrb[0].mxu0 %v4000
    %v4212 = vpop.f32.mrb[0].mxu0
    %v4213 = vadd.f32 0.0, %v4212
    %v4214 = vpop.f32.mrb[0].mxu0
    %v4215 = vpop.f32.mrb[0].mxu0
    %v4216 = vpop.f32.mrb[0].mxu0
    %4217 = vdwg.mxu0
    %4218 = vmatprep.subr.bf16.mxu0 0
    %4219 = vmatpush1.bf16.msra.mxu0 %v4135
    %4220 = vmatprep.subr.bf16.mxu0 0
    %4221 = vmatpush1.bf16.msra.mxu0 %v4136
    %4222 = vmatprep.subr.bf16.mxu0 0
    %4223 = vmatpush1.bf16.msra.mxu0 %v4137
    %4224 = vmatprep.subr.bf16.mxu0 0
    %4225 = vmatpush1.bf16.msra.mxu0 %v4138
    %4226 = vmatprep.subr.bf16.mxu0 0
    %4227 = vmatpush1.bf16.msra.mxu0 %v4139
    %4228 = vmatprep.subr.bf16.mxu0 0
    %4229 = vmatpush1.bf16.msra.mxu0 %v4140
    %4230 = vmatprep.subr.bf16.mxu0 0
    %4231 = vmatpush1.bf16.msra.mxu0 %v4141
    %4232 = vmatprep.subr.bf16.mxu0 0
    %4233 = vmatpush1.bf16.msra.mxu0 %v4142
    %4234 = vmatprep.subr.bf16.mxu0 0
    %4235 = vmatpush1.bf16.msra.mxu0 %v4143
    %4236 = vmatprep.subr.bf16.mxu0 0
    %4237 = vmatpush1.bf16.msra.mxu0 %v4144
    %4238 = vmatprep.subr.bf16.mxu0 0
    %4239 = vmatpush1.bf16.msra.mxu0 %v4145
    %4240 = vmatprep.subr.bf16.mxu0 0
    %4241 = vmatpush1.bf16.msra.mxu0 %v4146
    %4242 = vmatprep.subr.bf16.mxu0 0
    %4243 = vmatpush1.bf16.msra.mxu0 0
    %4244 = vmatprep.subr.bf16.mxu0 0
    %4245 = vmatpush1.bf16.msra.mxu0 0
    %4246 = vmatprep.subr.bf16.mxu0 0
    %4247 = vmatpush1.bf16.msra.mxu0 0
    %4248 = vmatprep.subr.bf16.mxu0 0
    %4249 = vmatpush1.bf16.msra.mxu0 0
    %4250 = vmatprep.mubr.bf16.mxu0 %v4176
    %4251 = vmatmul.mubr.bf16.gmra.mrb[0].mxu0 %v4002
    %v4252 = vpop.f32.mrb[0].mxu0
    %v4253 = vadd.f32 %v4213, %v4252
    %v4254 = vpop.f32.mrb[0].mxu0
    %v4255 = vpop.f32.mrb[0].mxu0
    %v4256 = vpop.f32.mrb[0].mxu0
    %4257 = vdwg.mxu0
    %v4258 = vadd.f32 %v3934, %v4253
    %v4259 = vld [vmem:[#allocation3 + $0x20] sm:$0x22]
    %v4260 = vld [vmem:[#allocation3 + $0x28] sm:$0x22]
    %s4261 = scalar_lea.vmem [#allocation9], 2016
    %v4262 = vld [vmem:[%s4261] sm:$0xf]
    %v4263 = vld [vmem:[%s4261 + $0x4] sm:$0xf]
    %v4264 = vld [vmem:[%s4261 + $0x8] sm:$0xf]
    %v4265 = vld [vmem:[%s4261 + $0xc] sm:$0xf]
    %v4266 = vld [vmem:[%s4261 + $0x10] sm:$0xf]
    %v4267 = vld [vmem:[%s4261 + $0x14] sm:$0xf]
    %v4268 = vld [vmem:[%s4261 + $0x18] sm:$0xf]
    %v4269 = vld [vmem:[%s4261 + $0x1c] sm:$0xf]
    %v4270 = vld [vmem:[%s4261 + $0x20] sm:$0xf]
    %v4271 = vld [vmem:[%s4261 + $0x24] sm:$0xf]
    %v4272 = vld [vmem:[%s4261 + $0x28] sm:$0xf]
    %v4273 = vld [vmem:[%s4261 + $0x2c] sm:$0xf]
    %v4274 = vld [vmem:[%s4261 + $0x30] sm:$0xf]
    %v4275 = vld [vmem:[%s4261 + $0x34] sm:$0xf]
    %v4276 = vld [vmem:[%s4261 + $0x38] sm:$0xf]
    %v4277 = vld [vmem:[%s4261 + $0x3c] sm:$0xf]
    %v4278 = vld [vmem:[%s4261 + $0x40] sm:$0xf]
    %v4279 = vld [vmem:[%s4261 + $0x44] sm:$0xf]
    %v4280 = vld [vmem:[%s4261 + $0x48] sm:$0xf]
    %v4281 = vld [vmem:[%s4261 + $0x4c] sm:$0xf]
    %v4282 = vld [vmem:[%s4261 + $0x50] sm:$0xf]
    %v4283 = vld [vmem:[%s4261 + $0x54] sm:$0xf]
    %v4284 = vld [vmem:[%s4261 + $0x58] sm:$0xf]
    %v4285 = vld [vmem:[%s4261 + $0x5c] sm:$0xf]
    %v4286 = vld [vmem:[%s4261 + $0x60] sm:$0xf]
    %v4287 = vld [vmem:[%s4261 + $0x64] sm:$0xf]
    %v4288 = vld [vmem:[%s4261 + $0x68] sm:$0xf]
    %v4289 = vld [vmem:[%s4261 + $0x6c] sm:$0xf]
    %v4290 = vld [vmem:[%s4261 + $0x70] sm:$0xf]
    %v4291 = vld [vmem:[%s4261 + $0x74] sm:$0xf]
    %v4292 = vld [vmem:[%s4261 + $0x78] sm:$0xf]
    %v4293 = vld [vmem:[%s4261 + $0x7c] sm:$0xf]
    %v4294 = vld [vmem:[%s4261 + $0x80] sm:$0xf]
    %v4295 = vld [vmem:[%s4261 + $0x84] sm:$0xf]
    %v4296 = vld [vmem:[%s4261 + $0x88] sm:$0xf]
    %v4297 = vld [vmem:[%s4261 + $0x8c] sm:$0xf]
    %v4298 = vld [vmem:[%s4261 + $0x90] sm:$0xf]
    %v4299 = vld [vmem:[%s4261 + $0x94] sm:$0xf]
    %v4300 = vld [vmem:[%s4261 + $0x98] sm:$0xf]
    %v4301 = vld [vmem:[%s4261 + $0x9c] sm:$0xf]
    %v4302 = vld [vmem:[%s4261 + $0xa0] sm:$0xf]
    %v4303 = vld [vmem:[%s4261 + $0xa4] sm:$0xf]
    %v4304 = vld [vmem:[%s4261 + $0xa8] sm:$0xf]
    %v4305 = vld [vmem:[%s4261 + $0xac] sm:$0xf]
    %v4306 = vld [vmem:[%s4261 + $0xb0] sm:$0xf]
    %v4307 = vld [vmem:[%s4261 + $0xb4] sm:$0xf]
    %v4308 = vld [vmem:[%s4261 + $0xb8] sm:$0xf]
    %v4309 = vld [vmem:[%s4261 + $0xbc] sm:$0xf]
    %v4310 = vld [vmem:[%s4261 + $0xc0] sm:$0xf]
    %v4311 = vld [vmem:[%s4261 + $0xc4] sm:$0xf]
    %v4312 = vld [vmem:[%s4261 + $0xc8] sm:$0xf]
    %v4313 = vld [vmem:[%s4261 + $0xcc] sm:$0xf]
    %v4314 = vld [vmem:[%s4261 + $0xd0] sm:$0xf]
    %v4315 = vld [vmem:[%s4261 + $0xd4] sm:$0xf]
    %v4316 = vld [vmem:[%s4261 + $0xd8] sm:$0xf]
    %v4317 = vld [vmem:[%s4261 + $0xdc] sm:$0xf]
    %v4320 = vunpack.c.l.b16 %v4259
    %v4321 = vunpack.c.h.b16 %v4259
    %v4322 = vunpack.c.l.b16 %v4260
    %v4323 = vunpack.c.h.b16 %v4260
    %v4324 = vpack.c.b16 %v4320, %v4320
    %v4325 = vpack.c.b16 %v4321, %v4321
    %v4326 = vpack.c.b16 %v4322, %v4322
    %v4327 = vpack.c.b16 %v4323, %v4323
    %v4328 = vrot.slane %v4324, 1
    %v4329 = vrot.slane %v4325, 1
    %v4330 = vrot.slane %v4326, 1
    %v4331 = vrot.slane %v4327, 1
    %v4391 = vunpack.c.l.b16 %v4262
    %v4392 = vunpack.c.l.b16 %v4263
    %v4393 = vunpack.c.l.b16 %v4264
    %v4394 = vunpack.c.l.b16 %v4265
    %v4395 = vunpack.c.l.b16 %v4266
    %v4396 = vunpack.c.l.b16 %v4267
    %v4397 = vunpack.c.l.b16 %v4268
    %v4398 = vunpack.c.l.b16 %v4269
    %v4399 = vunpack.c.l.b16 %v4270
    %v4400 = vunpack.c.l.b16 %v4271
    %v4401 = vunpack.c.l.b16 %v4272
    %v4402 = vunpack.c.l.b16 %v4273
    %v4403 = vunpack.c.l.b16 %v4274
    %v4404 = vunpack.c.l.b16 %v4275
    %v4405 = vunpack.c.l.b16 %v4276
    %v4406 = vunpack.c.l.b16 %v4277
    %v4407 = vunpack.c.l.b16 %v4278
    %v4408 = vunpack.c.l.b16 %v4279
    %v4409 = vunpack.c.l.b16 %v4280
    %v4410 = vunpack.c.l.b16 %v4281
    %v4411 = vunpack.c.l.b16 %v4282
    %v4412 = vunpack.c.l.b16 %v4283
    %v4413 = vunpack.c.l.b16 %v4284
    %v4414 = vunpack.c.l.b16 %v4285
    %v4415 = vunpack.c.l.b16 %v4286
    %v4416 = vunpack.c.l.b16 %v4287
    %v4417 = vunpack.c.l.b16 %v4288
    %v4418 = vunpack.c.l.b16 %v4289
    %v4419 = vunpack.c.l.b16 %v4290
    %v4420 = vunpack.c.l.b16 %v4291
    %v4421 = vunpack.c.l.b16 %v4292
    %v4422 = vunpack.c.l.b16 %v4293
    %v4423 = vunpack.c.l.b16 %v4294
    %v4424 = vunpack.c.l.b16 %v4295
    %v4425 = vunpack.c.l.b16 %v4296
    %v4426 = vunpack.c.l.b16 %v4297
    %v4427 = vunpack.c.l.b16 %v4298
    %v4428 = vunpack.c.l.b16 %v4299
    %v4429 = vunpack.c.l.b16 %v4300
    %v4430 = vunpack.c.l.b16 %v4301
    %v4431 = vunpack.c.l.b16 %v4302
    %v4432 = vunpack.c.l.b16 %v4303
    %v4433 = vunpack.c.l.b16 %v4304
    %v4434 = vunpack.c.l.b16 %v4305
    %v4435 = vunpack.c.l.b16 %v4306
    %v4436 = vunpack.c.l.b16 %v4307
    %v4437 = vunpack.c.l.b16 %v4308
    %v4438 = vunpack.c.l.b16 %v4309
    %v4439 = vunpack.c.l.b16 %v4310
    %v4440 = vunpack.c.l.b16 %v4311
    %v4441 = vunpack.c.l.b16 %v4312
    %v4442 = vunpack.c.l.b16 %v4313
    %v4443 = vunpack.c.l.b16 %v4314
    %v4444 = vunpack.c.l.b16 %v4315
    %v4445 = vunpack.c.l.b16 %v4316
    %v4446 = vunpack.c.l.b16 %v4317
    %v4447 = vpack.c.b16 %v4392, %v4391
    %v4448 = vpack.c.b16 %v4394, %v4393
    %v4449 = vpack.c.b16 %v4396, %v4395
    %v4450 = vpack.c.b16 %v4398, %v4397
    %v4451 = vpack.c.b16 %v4400, %v4399
    %v4452 = vpack.c.b16 %v4402, %v4401
    %v4453 = vpack.c.b16 %v4404, %v4403
    %v4454 = vpack.c.b16 %v4406, %v4405
    %v4455 = vpack.c.b16 %v4408, %v4407
    %v4456 = vpack.c.b16 %v4410, %v4409
    %v4457 = vpack.c.b16 %v4412, %v4411
    %v4458 = vpack.c.b16 %v4414, %v4413
    %v4459 = vpack.c.b16 %v4416, %v4415
    %v4460 = vpack.c.b16 %v4418, %v4417
    %v4461 = vpack.c.b16 %v4420, %v4419
    %v4462 = vpack.c.b16 %v4422, %v4421
    %v4463 = vpack.c.b16 %v4424, %v4423
    %v4464 = vpack.c.b16 %v4426, %v4425
    %v4465 = vpack.c.b16 %v4428, %v4427
    %v4466 = vpack.c.b16 %v4430, %v4429
    %v4467 = vpack.c.b16 %v4432, %v4431
    %v4468 = vpack.c.b16 %v4434, %v4433
    %v4469 = vpack.c.b16 %v4436, %v4435
    %v4470 = vpack.c.b16 %v4438, %v4437
    %v4471 = vpack.c.b16 %v4440, %v4439
    %v4472 = vpack.c.b16 %v4442, %v4441
    %v4473 = vpack.c.b16 %v4444, %v4443
    %v4474 = vpack.c.b16 %v4446, %v4445
    %v4504 = vsel %vm1216, %v4331, 0
    %4506 = vmatprep.subr.bf16.mxu0 0
    %4507 = vmatpush1.bf16.msra.mxu0 %v4447
    %4508 = vmatprep.subr.bf16.mxu0 0
    %4509 = vmatpush1.bf16.msra.mxu0 %v4448
    %4510 = vmatprep.subr.bf16.mxu0 0
    %4511 = vmatpush1.bf16.msra.mxu0 %v4449
    %4512 = vmatprep.subr.bf16.mxu0 0
    %4513 = vmatpush1.bf16.msra.mxu0 %v4450
    %4514 = vmatprep.subr.bf16.mxu0 0
    %4515 = vmatpush1.bf16.msra.mxu0 %v4451
    %4516 = vmatprep.subr.bf16.mxu0 0
    %4517 = vmatpush1.bf16.msra.mxu0 %v4452
    %4518 = vmatprep.subr.bf16.mxu0 0
    %4519 = vmatpush1.bf16.msra.mxu0 %v4453
    %4520 = vmatprep.subr.bf16.mxu0 0
    %4521 = vmatpush1.bf16.msra.mxu0 %v4454
    %4522 = vmatprep.subr.bf16.mxu0 0
    %4523 = vmatpush1.bf16.msra.mxu0 %v4455
    %4524 = vmatprep.subr.bf16.mxu0 0
    %4525 = vmatpush1.bf16.msra.mxu0 %v4456
    %4526 = vmatprep.subr.bf16.mxu0 0
    %4527 = vmatpush1.bf16.msra.mxu0 %v4457
    %4528 = vmatprep.subr.bf16.mxu0 0
    %4529 = vmatpush1.bf16.msra.mxu0 %v4458
    %4530 = vmatprep.subr.bf16.mxu0 0
    %4531 = vmatpush1.bf16.msra.mxu0 %v4459
    %4532 = vmatprep.subr.bf16.mxu0 0
    %4533 = vmatpush1.bf16.msra.mxu0 %v4460
    %4534 = vmatprep.subr.bf16.mxu0 0
    %4535 = vmatpush1.bf16.msra.mxu0 %v4461
    %4536 = vmatprep.subr.bf16.mxu0 0
    %4537 = vmatpush1.bf16.msra.mxu0 %v4462
    %4538 = vmatprep.mubr.bf16.mxu0 %v4329
    %4539 = vmatmul.mubr.bf16.gmra.mrb[0].mxu0 %v4328
    %v4540 = vpop.f32.mrb[0].mxu0
    %v4541 = vadd.f32 0.0, %v4540
    %v4542 = vpop.f32.mrb[0].mxu0
    %v4543 = vpop.f32.mrb[0].mxu0
    %v4544 = vpop.f32.mrb[0].mxu0
    %4545 = vdwg.mxu0
    %4546 = vmatprep.subr.bf16.mxu0 0
    %4547 = vmatpush1.bf16.msra.mxu0 %v4463
    %4548 = vmatprep.subr.bf16.mxu0 0
    %4549 = vmatpush1.bf16.msra.mxu0 %v4464
    %4550 = vmatprep.subr.bf16.mxu0 0
    %4551 = vmatpush1.bf16.msra.mxu0 %v4465
    %4552 = vmatprep.subr.bf16.mxu0 0
    %4553 = vmatpush1.bf16.msra.mxu0 %v4466
    %4554 = vmatprep.subr.bf16.mxu0 0
    %4555 = vmatpush1.bf16.msra.mxu0 %v4467
    %4556 = vmatprep.subr.bf16.mxu0 0
    %4557 = vmatpush1.bf16.msra.mxu0 %v4468
    %4558 = vmatprep.subr.bf16.mxu0 0
    %4559 = vmatpush1.bf16.msra.mxu0 %v4469
    %4560 = vmatprep.subr.bf16.mxu0 0
    %4561 = vmatpush1.bf16.msra.mxu0 %v4470
    %4562 = vmatprep.subr.bf16.mxu0 0
    %4563 = vmatpush1.bf16.msra.mxu0 %v4471
    %4564 = vmatprep.subr.bf16.mxu0 0
    %4565 = vmatpush1.bf16.msra.mxu0 %v4472
    %4566 = vmatprep.subr.bf16.mxu0 0
    %4567 = vmatpush1.bf16.msra.mxu0 %v4473
    %4568 = vmatprep.subr.bf16.mxu0 0
    %4569 = vmatpush1.bf16.msra.mxu0 %v4474
    %4570 = vmatprep.subr.bf16.mxu0 0
    %4571 = vmatpush1.bf16.msra.mxu0 0
    %4572 = vmatprep.subr.bf16.mxu0 0
    %4573 = vmatpush1.bf16.msra.mxu0 0
    %4574 = vmatprep.subr.bf16.mxu0 0
    %4575 = vmatpush1.bf16.msra.mxu0 0
    %4576 = vmatprep.subr.bf16.mxu0 0
    %4577 = vmatpush1.bf16.msra.mxu0 0
    %4578 = vmatprep.mubr.bf16.mxu0 %v4504
    %4579 = vmatmul.mubr.bf16.gmra.mrb[0].mxu0 %v4330
    %v4580 = vpop.f32.mrb[0].mxu0
    %v4581 = vadd.f32 %v4541, %v4580
    %v4582 = vpop.f32.mrb[0].mxu0
    %v4583 = vpop.f32.mrb[0].mxu0
    %v4584 = vpop.f32.mrb[0].mxu0
    %4585 = vdwg.mxu0
    %v4586 = vadd.f32 %v4258, %v4581
    %v4587 = vld [vmem:[#allocation3 + $0x20] sm:$0x44]
    %v4588 = vld [vmem:[#allocation3 + $0x28] sm:$0x44]
    %s4589 = scalar_lea.vmem [#allocation9], 2240
    %v4590 = vld [vmem:[%s4589] sm:$0xf]
    %v4591 = vld [vmem:[%s4589 + $0x4] sm:$0xf]
    %v4592 = vld [vmem:[%s4589 + $0x8] sm:$0xf]
    %v4593 = vld [vmem:[%s4589 + $0xc] sm:$0xf]
    %v4594 = vld [vmem:[%s4589 + $0x10] sm:$0xf]
    %v4595 = vld [vmem:[%s4589 + $0x14] sm:$0xf]
    %v4596 = vld [vmem:[%s4589 + $0x18] sm:$0xf]
    %v4597 = vld [vmem:[%s4589 + $0x1c] sm:$0xf]
    %v4598 = vld [vmem:[%s4589 + $0x20] sm:$0xf]
    %v4599 = vld [vmem:[%s4589 + $0x24] sm:$0xf]
    %v4600 = vld [vmem:[%s4589 + $0x28] sm:$0xf]
    %v4601 = vld [vmem:[%s4589 + $0x2c] sm:$0xf]
    %v4602 = vld [vmem:[%s4589 + $0x30] sm:$0xf]
    %v4603 = vld [vmem:[%s4589 + $0x34] sm:$0xf]
    %v4604 = vld [vmem:[%s4589 + $0x38] sm:$0xf]
    %v4605 = vld [vmem:[%s4589 + $0x3c] sm:$0xf]
    %v4606 = vld [vmem:[%s4589 + $0x40] sm:$0xf]
    %v4607 = vld [vmem:[%s4589 + $0x44] sm:$0xf]
    %v4608 = vld [vmem:[%s4589 + $0x48] sm:$0xf]
    %v4609 = vld [vmem:[%s4589 + $0x4c] sm:$0xf]
    %v4610 = vld [vmem:[%s4589 + $0x50] sm:$0xf]
    %v4611 = vld [vmem:[%s4589 + $0x54] sm:$0xf]
    %v4612 = vld [vmem:[%s4589 + $0x58] sm:$0xf]
    %v4613 = vld [vmem:[%s4589 + $0x5c] sm:$0xf]
    %v4614 = vld [vmem:[%s4589 + $0x60] sm:$0xf]
    %v4615 = vld [vmem:[%s4589 + $0x64] sm:$0xf]
    %v4616 = vld [vmem:[%s4589 + $0x68] sm:$0xf]
    %v4617 = vld [vmem:[%s4589 + $0x6c] sm:$0xf]
    %v4618 = vld [vmem:[%s4589 + $0x70] sm:$0xf]
    %v4619 = vld [vmem:[%s4589 + $0x74] sm:$0xf]
    %v4620 = vld [vmem:[%s4589 + $0x78] sm:$0xf]
    %v4621 = vld [vmem:[%s4589 + $0x7c] sm:$0xf]
    %v4622 = vld [vmem:[%s4589 + $0x80] sm:$0xf]
    %v4623 = vld [vmem:[%s4589 + $0x84] sm:$0xf]
    %v4624 = vld [vmem:[%s4589 + $0x88] sm:$0xf]
    %v4625 = vld [vmem:[%s4589 + $0x8c] sm:$0xf]
    %v4626 = vld [vmem:[%s4589 + $0x90] sm:$0xf]
    %v4627 = vld [vmem:[%s4589 + $0x94] sm:$0xf]
    %v4628 = vld [vmem:[%s4589 + $0x98] sm:$0xf]
    %v4629 = vld [vmem:[%s4589 + $0x9c] sm:$0xf]
    %v4630 = vld [vmem:[%s4589 + $0xa0] sm:$0xf]
    %v4631 = vld [vmem:[%s4589 + $0xa4] sm:$0xf]
    %v4632 = vld [vmem:[%s4589 + $0xa8] sm:$0xf]
    %v4633 = vld [vmem:[%s4589 + $0xac] sm:$0xf]
    %v4634 = vld [vmem:[%s4589 + $0xb0] sm:$0xf]
    %v4635 = vld [vmem:[%s4589 + $0xb4] sm:$0xf]
    %v4636 = vld [vmem:[%s4589 + $0xb8] sm:$0xf]
    %v4637 = vld [vmem:[%s4589 + $0xbc] sm:$0xf]
    %v4638 = vld [vmem:[%s4589 + $0xc0] sm:$0xf]
    %v4639 = vld [vmem:[%s4589 + $0xc4] sm:$0xf]
    %v4640 = vld [vmem:[%s4589 + $0xc8] sm:$0xf]
    %v4641 = vld [vmem:[%s4589 + $0xcc] sm:$0xf]
    %v4642 = vld [vmem:[%s4589 + $0xd0] sm:$0xf]
    %v4643 = vld [vmem:[%s4589 + $0xd4] sm:$0xf]
    %v4644 = vld [vmem:[%s4589 + $0xd8] sm:$0xf]
    %v4645 = vld [vmem:[%s4589 + $0xdc] sm:$0xf]
    %v4648 = vunpack.c.l.b16 %v4587
    %v4649 = vunpack.c.h.b16 %v4587
    %v4650 = vunpack.c.l.b16 %v4588
    %v4651 = vunpack.c.h.b16 %v4588
    %v4652 = vpack.c.b16 %v4648, %v4648
    %v4653 = vpack.c.b16 %v4649, %v4649
    %v4654 = vpack.c.b16 %v4650, %v4650
    %v4655 = vpack.c.b16 %v4651, %v4651
    %v4656 = vrot.slane %v4652, 2
    %v4657 = vrot.slane %v4653, 2
    %v4658 = vrot.slane %v4654, 2
    %v4659 = vrot.slane %v4655, 2
    %v4719 = vunpack.c.l.b16 %v4590
    %v4720 = vunpack.c.l.b16 %v4591
    %v4721 = vunpack.c.l.b16 %v4592
    %v4722 = vunpack.c.l.b16 %v4593
    %v4723 = vunpack.c.l.b16 %v4594
    %v4724 = vunpack.c.l.b16 %v4595
    %v4725 = vunpack.c.l.b16 %v4596
    %v4726 = vunpack.c.l.b16 %v4597
    %v4727 = vunpack.c.l.b16 %v4598
    %v4728 = vunpack.c.l.b16 %v4599
    %v4729 = vunpack.c.l.b16 %v4600
    %v4730 = vunpack.c.l.b16 %v4601
    %v4731 = vunpack.c.l.b16 %v4602
    %v4732 = vunpack.c.l.b16 %v4603
    %v4733 = vunpack.c.l.b16 %v4604
    %v4734 = vunpack.c.l.b16 %v4605
    %v4735 = vunpack.c.l.b16 %v4606
    %v4736 = vunpack.c.l.b16 %v4607
    %v4737 = vunpack.c.l.b16 %v4608
    %v4738 = vunpack.c.l.b16 %v4609
    %v4739 = vunpack.c.l.b16 %v4610
    %v4740 = vunpack.c.l.b16 %v4611
    %v4741 = vunpack.c.l.b16 %v4612
    %v4742 = vunpack.c.l.b16 %v4613
    %v4743 = vunpack.c.l.b16 %v4614
    %v4744 = vunpack.c.l.b16 %v4615
    %v4745 = vunpack.c.l.b16 %v4616
    %v4746 = vunpack.c.l.b16 %v4617
    %v4747 = vunpack.c.l.b16 %v4618
    %v4748 = vunpack.c.l.b16 %v4619
    %v4749 = vunpack.c.l.b16 %v4620
    %v4750 = vunpack.c.l.b16 %v4621
    %v4751 = vunpack.c.l.b16 %v4622
    %v4752 = vunpack.c.l.b16 %v4623
    %v4753 = vunpack.c.l.b16 %v4624
    %v4754 = vunpack.c.l.b16 %v4625
    %v4755 = vunpack.c.l.b16 %v4626
    %v4756 = vunpack.c.l.b16 %v4627
    %v4757 = vunpack.c.l.b16 %v4628
    %v4758 = vunpack.c.l.b16 %v4629
    %v4759 = vunpack.c.l.b16 %v4630
    %v4760 = vunpack.c.l.b16 %v4631
    %v4761 = vunpack.c.l.b16 %v4632
    %v4762 = vunpack.c.l.b16 %v4633
    %v4763 = vunpack.c.l.b16 %v4634
    %v4764 = vunpack.c.l.b16 %v4635
    %v4765 = vunpack.c.l.b16 %v4636
    %v4766 = vunpack.c.l.b16 %v4637
    %v4767 = vunpack.c.l.b16 %v4638
    %v4768 = vunpack.c.l.b16 %v4639
    %v4769 = vunpack.c.l.b16 %v4640
    %v4770 = vunpack.c.l.b16 %v4641
    %v4771 = vunpack.c.l.b16 %v4642
    %v4772 = vunpack.c.l.b16 %v4643
    %v4773 = vunpack.c.l.b16 %v4644
    %v4774 = vunpack.c.l.b16 %v4645
    %v4775 = vpack.c.b16 %v4720, %v4719
    %v4776 = vpack.c.b16 %v4722, %v4721
    %v4777 = vpack.c.b16 %v4724, %v4723
    %v4778 = vpack.c.b16 %v4726, %v4725
    %v4779 = vpack.c.b16 %v4728, %v4727
    %v4780 = vpack.c.b16 %v4730, %v4729
    %v4781 = vpack.c.b16 %v4732, %v4731
    %v4782 = vpack.c.b16 %v4734, %v4733
    %v4783 = vpack.c.b16 %v4736, %v4735
    %v4784 = vpack.c.b16 %v4738, %v4737
    %v4785 = vpack.c.b16 %v4740, %v4739
    %v4786 = vpack.c.b16 %v4742, %v4741
    %v4787 = vpack.c.b16 %v4744, %v4743
    %v4788 = vpack.c.b16 %v4746, %v4745
    %v4789 = vpack.c.b16 %v4748, %v4747
    %v4790 = vpack.c.b16 %v4750, %v4749
    %v4791 = vpack.c.b16 %v4752, %v4751
    %v4792 = vpack.c.b16 %v4754, %v4753
    %v4793 = vpack.c.b16 %v4756, %v4755
    %v4794 = vpack.c.b16 %v4758, %v4757
    %v4795 = vpack.c.b16 %v4760, %v4759
    %v4796 = vpack.c.b16 %v4762, %v4761
    %v4797 = vpack.c.b16 %v4764, %v4763
    %v4798 = vpack.c.b16 %v4766, %v4765
    %v4799 = vpack.c.b16 %v4768, %v4767
    %v4800 = vpack.c.b16 %v4770, %v4769
    %v4801 = vpack.c.b16 %v4772, %v4771
    %v4802 = vpack.c.b16 %v4774, %v4773
    %v4832 = vsel %vm1216, %v4659, 0
    %4834 = vmatprep.subr.bf16.mxu0 0
    %4835 = vmatpush1.bf16.msra.mxu0 %v4775
    %4836 = vmatprep.subr.bf16.mxu0 0
    %4837 = vmatpush1.bf16.msra.mxu0 %v4776
    %4838 = vmatprep.subr.bf16.mxu0 0
    %4839 = vmatpush1.bf16.msra.mxu0 %v4777
    %4840 = vmatprep.subr.bf16.mxu0 0
    %4841 = vmatpush1.bf16.msra.mxu0 %v4778
    %4842 = vmatprep.subr.bf16.mxu0 0
    %4843 = vmatpush1.bf16.msra.mxu0 %v4779
    %4844 = vmatprep.subr.bf16.mxu0 0
    %4845 = vmatpush1.bf16.msra.mxu0 %v4780
    %4846 = vmatprep.subr.bf16.mxu0 0
    %4847 = vmatpush1.bf16.msra.mxu0 %v4781
    %4848 = vmatprep.subr.bf16.mxu0 0
    %4849 = vmatpush1.bf16.msra.mxu0 %v4782
    %4850 = vmatprep.subr.bf16.mxu0 0
    %4851 = vmatpush1.bf16.msra.mxu0 %v4783
    %4852 = vmatprep.subr.bf16.mxu0 0
    %4853 = vmatpush1.bf16.msra.mxu0 %v4784
    %4854 = vmatprep.subr.bf16.mxu0 0
    %4855 = vmatpush1.bf16.msra.mxu0 %v4785
    %4856 = vmatprep.subr.bf16.mxu0 0
    %4857 = vmatpush1.bf16.msra.mxu0 %v4786
    %4858 = vmatprep.subr.bf16.mxu0 0
    %4859 = vmatpush1.bf16.msra.mxu0 %v4787
    %4860 = vmatprep.subr.bf16.mxu0 0
    %4861 = vmatpush1.bf16.msra.mxu0 %v4788
    %4862 = vmatprep.subr.bf16.mxu0 0
    %4863 = vmatpush1.bf16.msra.mxu0 %v4789
    %4864 = vmatprep.subr.bf16.mxu0 0
    %4865 = vmatpush1.bf16.msra.mxu0 %v4790
    %4866 = vmatprep.mubr.bf16.mxu0 %v4657
    %4867 = vmatmul.mubr.bf16.gmra.mrb[0].mxu0 %v4656
    %v4868 = vpop.f32.mrb[0].mxu0
    %v4869 = vadd.f32 0.0, %v4868
    %v4870 = vpop.f32.mrb[0].mxu0
    %v4871 = vpop.f32.mrb[0].mxu0
    %v4872 = vpop.f32.mrb[0].mxu0
    %4873 = vdwg.mxu0
    %4874 = vmatprep.subr.bf16.mxu0 0
    %4875 = vmatpush1.bf16.msra.mxu0 %v4791
    %4876 = vmatprep.subr.bf16.mxu0 0
    %4877 = vmatpush1.bf16.msra.mxu0 %v4792
    %4878 = vmatprep.subr.bf16.mxu0 0
    %4879 = vmatpush1.bf16.msra.mxu0 %v4793
    %4880 = vmatprep.subr.bf16.mxu0 0
    %4881 = vmatpush1.bf16.msra.mxu0 %v4794
    %4882 = vmatprep.subr.bf16.mxu0 0
    %4883 = vmatpush1.bf16.msra.mxu0 %v4795
    %4884 = vmatprep.subr.bf16.mxu0 0
    %4885 = vmatpush1.bf16.msra.mxu0 %v4796
    %4886 = vmatprep.subr.bf16.mxu0 0
    %4887 = vmatpush1.bf16.msra.mxu0 %v4797
    %4888 = vmatprep.subr.bf16.mxu0 0
    %4889 = vmatpush1.bf16.msra.mxu0 %v4798
    %4890 = vmatprep.subr.bf16.mxu0 0
    %4891 = vmatpush1.bf16.msra.mxu0 %v4799
    %4892 = vmatprep.subr.bf16.mxu0 0
    %4893 = vmatpush1.bf16.msra.mxu0 %v4800
    %4894 = vmatprep.subr.bf16.mxu0 0
    %4895 = vmatpush1.bf16.msra.mxu0 %v4801
    %4896 = vmatprep.subr.bf16.mxu0 0
    %4897 = vmatpush1.bf16.msra.mxu0 %v4802
    %4898 = vmatprep.subr.bf16.mxu0 0
    %4899 = vmatpush1.bf16.msra.mxu0 0
    %4900 = vmatprep.subr.bf16.mxu0 0
    %4901 = vmatpush1.bf16.msra.mxu0 0
    %4902 = vmatprep.subr.bf16.mxu0 0
    %4903 = vmatpush1.bf16.msra.mxu0 0
    %4904 = vmatprep.subr.bf16.mxu0 0
    %4905 = vmatpush1.bf16.msra.mxu0 0
    %4906 = vmatprep.mubr.bf16.mxu0 %v4832
    %4907 = vmatmul.mubr.bf16.gmra.mrb[0].mxu0 %v4658
    %v4908 = vpop.f32.mrb[0].mxu0
    %v4909 = vadd.f32 %v4869, %v4908
    %v4910 = vpop.f32.mrb[0].mxu0
    %v4911 = vpop.f32.mrb[0].mxu0
    %v4912 = vpop.f32.mrb[0].mxu0
    %4913 = vdwg.mxu0
    %v4914 = vadd.f32 %v4586, %v4909
    %v4915 = vld [vmem:[#allocation3 + $0x20] sm:$0x88]
    %v4916 = vld [vmem:[#allocation3 + $0x28] sm:$0x88]
    %s4917 = scalar_lea.vmem [#allocation9], 2464
    %v4918 = vld [vmem:[%s4917] sm:$0xf]
    %v4919 = vld [vmem:[%s4917 + $0x4] sm:$0xf]
    %v4920 = vld [vmem:[%s4917 + $0x8] sm:$0xf]
    %v4921 = vld [vmem:[%s4917 + $0xc] sm:$0xf]
    %v4922 = vld [vmem:[%s4917 + $0x10] sm:$0xf]
    %v4923 = vld [vmem:[%s4917 + $0x14] sm:$0xf]
    %v4924 = vld [vmem:[%s4917 + $0x18] sm:$0xf]
    %v4925 = vld [vmem:[%s4917 + $0x1c] sm:$0xf]
    %v4926 = vld [vmem:[%s4917 + $0x20] sm:$0xf]
    %v4927 = vld [vmem:[%s4917 + $0x24] sm:$0xf]
    %v4928 = vld [vmem:[%s4917 + $0x28] sm:$0xf]
    %v4929 = vld [vmem:[%s4917 + $0x2c] sm:$0xf]
    %v4930 = vld [vmem:[%s4917 + $0x30] sm:$0xf]
    %v4931 = vld [vmem:[%s4917 + $0x34] sm:$0xf]
    %v4932 = vld [vmem:[%s4917 + $0x38] sm:$0xf]
    %v4933 = vld [vmem:[%s4917 + $0x3c] sm:$0xf]
    %v4934 = vld [vmem:[%s4917 + $0x40] sm:$0xf]
    %v4935 = vld [vmem:[%s4917 + $0x44] sm:$0xf]
    %v4936 = vld [vmem:[%s4917 + $0x48] sm:$0xf]
    %v4937 = vld [vmem:[%s4917 + $0x4c] sm:$0xf]
    %v4938 = vld [vmem:[%s4917 + $0x50] sm:$0xf]
    %v4939 = vld [vmem:[%s4917 + $0x54] sm:$0xf]
    %v4940 = vld [vmem:[%s4917 + $0x58] sm:$0xf]
    %v4941 = vld [vmem:[%s4917 + $0x5c] sm:$0xf]
    %v4942 = vld [vmem:[%s4917 + $0x60] sm:$0xf]
    %v4943 = vld [vmem:[%s4917 + $0x64] sm:$0xf]
    %v4944 = vld [vmem:[%s4917 + $0x68] sm:$0xf]
    %v4945 = vld [vmem:[%s4917 + $0x6c] sm:$0xf]
    %v4946 = vld [vmem:[%s4917 + $0x70] sm:$0xf]
    %v4947 = vld [vmem:[%s4917 + $0x74] sm:$0xf]
    %v4948 = vld [vmem:[%s4917 + $0x78] sm:$0xf]
    %v4949 = vld [vmem:[%s4917 + $0x7c] sm:$0xf]
    %v4950 = vld [vmem:[%s4917 + $0x80] sm:$0xf]
    %v4951 = vld [vmem:[%s4917 + $0x84] sm:$0xf]
    %v4952 = vld [vmem:[%s4917 + $0x88] sm:$0xf]
    %v4953 = vld [vmem:[%s4917 + $0x8c] sm:$0xf]
    %v4954 = vld [vmem:[%s4917 + $0x90] sm:$0xf]
    %v4955 = vld [vmem:[%s4917 + $0x94] sm:$0xf]
    %v4956 = vld [vmem:[%s4917 + $0x98] sm:$0xf]
    %v4957 = vld [vmem:[%s4917 + $0x9c] sm:$0xf]
    %v4958 = vld [vmem:[%s4917 + $0xa0] sm:$0xf]
    %v4959 = vld [vmem:[%s4917 + $0xa4] sm:$0xf]
    %v4960 = vld [vmem:[%s4917 + $0xa8] sm:$0xf]
    %v4961 = vld [vmem:[%s4917 + $0xac] sm:$0xf]
    %v4962 = vld [vmem:[%s4917 + $0xb0] sm:$0xf]
    %v4963 = vld [vmem:[%s4917 + $0xb4] sm:$0xf]
    %v4964 = vld [vmem:[%s4917 + $0xb8] sm:$0xf]
    %v4965 = vld [vmem:[%s4917 + $0xbc] sm:$0xf]
    %v4966 = vld [vmem:[%s4917 + $0xc0] sm:$0xf]
    %v4967 = vld [vmem:[%s4917 + $0xc4] sm:$0xf]
    %v4968 = vld [vmem:[%s4917 + $0xc8] sm:$0xf]
    %v4969 = vld [vmem:[%s4917 + $0xcc] sm:$0xf]
    %v4970 = vld [vmem:[%s4917 + $0xd0] sm:$0xf]
    %v4971 = vld [vmem:[%s4917 + $0xd4] sm:$0xf]
    %v4972 = vld [vmem:[%s4917 + $0xd8] sm:$0xf]
    %v4973 = vld [vmem:[%s4917 + $0xdc] sm:$0xf]
    %v4976 = vunpack.c.l.b16 %v4915
    %v4977 = vunpack.c.h.b16 %v4915
    %v4978 = vunpack.c.l.b16 %v4916
    %v4979 = vunpack.c.h.b16 %v4916
    %v4980 = vpack.c.b16 %v4976, %v4976
    %v4981 = vpack.c.b16 %v4977, %v4977
    %v4982 = vpack.c.b16 %v4978, %v4978
    %v4983 = vpack.c.b16 %v4979, %v4979
    %v4984 = vrot.slane %v4980, 3
    %v4985 = vrot.slane %v4981, 3
    %v4986 = vrot.slane %v4982, 3
    %v4987 = vrot.slane %v4983, 3
    %v5047 = vunpack.c.l.b16 %v4918
    %v5048 = vunpack.c.l.b16 %v4919
    %v5049 = vunpack.c.l.b16 %v4920
    %v5050 = vunpack.c.l.b16 %v4921
    %v5051 = vunpack.c.l.b16 %v4922
    %v5052 = vunpack.c.l.b16 %v4923
    %v5053 = vunpack.c.l.b16 %v4924
    %v5054 = vunpack.c.l.b16 %v4925
    %v5055 = vunpack.c.l.b16 %v4926
    %v5056 = vunpack.c.l.b16 %v4927
    %v5057 = vunpack.c.l.b16 %v4928
    %v5058 = vunpack.c.l.b16 %v4929
    %v5059 = vunpack.c.l.b16 %v4930
    %v5060 = vunpack.c.l.b16 %v4931
    %v5061 = vunpack.c.l.b16 %v4932
    %v5062 = vunpack.c.l.b16 %v4933
    %v5063 = vunpack.c.l.b16 %v4934
    %v5064 = vunpack.c.l.b16 %v4935
    %v5065 = vunpack.c.l.b16 %v4936
    %v5066 = vunpack.c.l.b16 %v4937
    %v5067 = vunpack.c.l.b16 %v4938
    %v5068 = vunpack.c.l.b16 %v4939
    %v5069 = vunpack.c.l.b16 %v4940
    %v5070 = vunpack.c.l.b16 %v4941
    %v5071 = vunpack.c.l.b16 %v4942
    %v5072 = vunpack.c.l.b16 %v4943
    %v5073 = vunpack.c.l.b16 %v4944
    %v5074 = vunpack.c.l.b16 %v4945
    %v5075 = vunpack.c.l.b16 %v4946
    %v5076 = vunpack.c.l.b16 %v4947
    %v5077 = vunpack.c.l.b16 %v4948
    %v5078 = vunpack.c.l.b16 %v4949
    %v5079 = vunpack.c.l.b16 %v4950
    %v5080 = vunpack.c.l.b16 %v4951
    %v5081 = vunpack.c.l.b16 %v4952
    %v5082 = vunpack.c.l.b16 %v4953
    %v5083 = vunpack.c.l.b16 %v4954
    %v5084 = vunpack.c.l.b16 %v4955
    %v5085 = vunpack.c.l.b16 %v4956
    %v5086 = vunpack.c.l.b16 %v4957
    %v5087 = vunpack.c.l.b16 %v4958
    %v5088 = vunpack.c.l.b16 %v4959
    %v5089 = vunpack.c.l.b16 %v4960
    %v5090 = vunpack.c.l.b16 %v4961
    %v5091 = vunpack.c.l.b16 %v4962
    %v5092 = vunpack.c.l.b16 %v4963
    %v5093 = vunpack.c.l.b16 %v4964
    %v5094 = vunpack.c.l.b16 %v4965
    %v5095 = vunpack.c.l.b16 %v4966
    %v5096 = vunpack.c.l.b16 %v4967
    %v5097 = vunpack.c.l.b16 %v4968
    %v5098 = vunpack.c.l.b16 %v4969
    %v5099 = vunpack.c.l.b16 %v4970
    %v5100 = vunpack.c.l.b16 %v4971
    %v5101 = vunpack.c.l.b16 %v4972
    %v5102 = vunpack.c.l.b16 %v4973
    %v5103 = vpack.c.b16 %v5048, %v5047
    %v5104 = vpack.c.b16 %v5050, %v5049
    %v5105 = vpack.c.b16 %v5052, %v5051
    %v5106 = vpack.c.b16 %v5054, %v5053
    %v5107 = vpack.c.b16 %v5056, %v5055
    %v5108 = vpack.c.b16 %v5058, %v5057
    %v5109 = vpack.c.b16 %v5060, %v5059
    %v5110 = vpack.c.b16 %v5062, %v5061
    %v5111 = vpack.c.b16 %v5064, %v5063
    %v5112 = vpack.c.b16 %v5066, %v5065
    %v5113 = vpack.c.b16 %v5068, %v5067
    %v5114 = vpack.c.b16 %v5070, %v5069
    %v5115 = vpack.c.b16 %v5072, %v5071
    %v5116 = vpack.c.b16 %v5074, %v5073
    %v5117 = vpack.c.b16 %v5076, %v5075
    %v5118 = vpack.c.b16 %v5078, %v5077
    %v5119 = vpack.c.b16 %v5080, %v5079
    %v5120 = vpack.c.b16 %v5082, %v5081
    %v5121 = vpack.c.b16 %v5084, %v5083
    %v5122 = vpack.c.b16 %v5086, %v5085
    %v5123 = vpack.c.b16 %v5088, %v5087
    %v5124 = vpack.c.b16 %v5090, %v5089
    %v5125 = vpack.c.b16 %v5092, %v5091
    %v5126 = vpack.c.b16 %v5094, %v5093
    %v5127 = vpack.c.b16 %v5096, %v5095
    %v5128 = vpack.c.b16 %v5098, %v5097
    %v5129 = vpack.c.b16 %v5100, %v5099
    %v5130 = vpack.c.b16 %v5102, %v5101
    %v5160 = vsel %vm1216, %v4987, 0
    %5162 = vmatprep.subr.bf16.mxu0 0
    %5163 = vmatpush1.bf16.msra.mxu0 %v5103
    %5164 = vmatprep.subr.bf16.mxu0 0
    %5165 = vmatpush1.bf16.msra.mxu0 %v5104
    %5166 = vmatprep.subr.bf16.mxu0 0
    %5167 = vmatpush1.bf16.msra.mxu0 %v5105
    %5168 = vmatprep.subr.bf16.mxu0 0
    %5169 = vmatpush1.bf16.msra.mxu0 %v5106
    %5170 = vmatprep.subr.bf16.mxu0 0
    %5171 = vmatpush1.bf16.msra.mxu0 %v5107
    %5172 = vmatprep.subr.bf16.mxu0 0
    %5173 = vmatpush1.bf16.msra.mxu0 %v5108
    %5174 = vmatprep.subr.bf16.mxu0 0
    %5175 = vmatpush1.bf16.msra.mxu0 %v5109
    %5176 = vmatprep.subr.bf16.mxu0 0
    %5177 = vmatpush1.bf16.msra.mxu0 %v5110
    %5178 = vmatprep.subr.bf16.mxu0 0
    %5179 = vmatpush1.bf16.msra.mxu0 %v5111
    %5180 = vmatprep.subr.bf16.mxu0 0
    %5181 = vmatpush1.bf16.msra.mxu0 %v5112
    %5182 = vmatprep.subr.bf16.mxu0 0
    %5183 = vmatpush1.bf16.msra.mxu0 %v5113
    %5184 = vmatprep.subr.bf16.mxu0 0
    %5185 = vmatpush1.bf16.msra.mxu0 %v5114
    %5186 = vmatprep.subr.bf16.mxu0 0
    %5187 = vmatpush1.bf16.msra.mxu0 %v5115
    %5188 = vmatprep.subr.bf16.mxu0 0
    %5189 = vmatpush1.bf16.msra.mxu0 %v5116
    %5190 = vmatprep.subr.bf16.mxu0 0
    %5191 = vmatpush1.bf16.msra.mxu0 %v5117
    %5192 = vmatprep.subr.bf16.mxu0 0
    %5193 = vmatpush1.bf16.msra.mxu0 %v5118
    %5194 = vmatprep.mubr.bf16.mxu0 %v4985
    %5195 = vmatmul.mubr.bf16.gmra.mrb[0].mxu0 %v4984
    %v5196 = vpop.f32.mrb[0].mxu0
    %v5197 = vadd.f32 0.0, %v5196
    %v5198 = vpop.f32.mrb[0].mxu0
    %v5199 = vpop.f32.mrb[0].mxu0
    %v5200 = vpop.f32.mrb[0].mxu0
    %5201 = vdwg.mxu0
    %5202 = vmatprep.subr.bf16.mxu0 0
    %5203 = vmatpush1.bf16.msra.mxu0 %v5119
    %5204 = vmatprep.subr.bf16.mxu0 0
    %5205 = vmatpush1.bf16.msra.mxu0 %v5120
    %5206 = vmatprep.subr.bf16.mxu0 0
    %5207 = vmatpush1.bf16.msra.mxu0 %v5121
    %5208 = vmatprep.subr.bf16.mxu0 0
    %5209 = vmatpush1.bf16.msra.mxu0 %v5122
    %5210 = vmatprep.subr.bf16.mxu0 0
    %5211 = vmatpush1.bf16.msra.mxu0 %v5123
    %5212 = vmatprep.subr.bf16.mxu0 0
    %5213 = vmatpush1.bf16.msra.mxu0 %v5124
    %5214 = vmatprep.subr.bf16.mxu0 0
    %5215 = vmatpush1.bf16.msra.mxu0 %v5125
    %5216 = vmatprep.subr.bf16.mxu0 0
    %5217 = vmatpush1.bf16.msra.mxu0 %v5126
    %5218 = vmatprep.subr.bf16.mxu0 0
    %5219 = vmatpush1.bf16.msra.mxu0 %v5127
    %5220 = vmatprep.subr.bf16.mxu0 0
    %5221 = vmatpush1.bf16.msra.mxu0 %v5128
    %5222 = vmatprep.subr.bf16.mxu0 0
    %5223 = vmatpush1.bf16.msra.mxu0 %v5129
    %5224 = vmatprep.subr.bf16.mxu0 0
    %5225 = vmatpush1.bf16.msra.mxu0 %v5130
    %5226 = vmatprep.subr.bf16.mxu0 0
    %5227 = vmatpush1.bf16.msra.mxu0 0
    %5228 = vmatprep.subr.bf16.mxu0 0
    %5229 = vmatpush1.bf16.msra.mxu0 0
    %5230 = vmatprep.subr.bf16.mxu0 0
    %5231 = vmatpush1.bf16.msra.mxu0 0
    %5232 = vmatprep.subr.bf16.mxu0 0
    %5233 = vmatpush1.bf16.msra.mxu0 0
    %5234 = vmatprep.mubr.bf16.mxu0 %v5160
    %5235 = vmatmul.mubr.bf16.gmra.mrb[0].mxu0 %v4986
    %v5236 = vpop.f32.mrb[0].mxu0
    %v5237 = vadd.f32 %v5197, %v5236
    %v5238 = vpop.f32.mrb[0].mxu0
    %v5239 = vpop.f32.mrb[0].mxu0
    %v5240 = vpop.f32.mrb[0].mxu0
    %5241 = vdwg.mxu0
    %v5242 = vadd.f32 %v4914, %v5237
    %v5243 = vld [vmem:[#allocation3 + $0x30] sm:$0x11]
    %v5244 = vld [vmem:[#allocation3 + $0x38] sm:$0x11]
    %s5245 = scalar_lea.vmem [#allocation9], 2688
    %v5246 = vld [vmem:[%s5245] sm:$0xf]
    %v5247 = vld [vmem:[%s5245 + $0x4] sm:$0xf]
    %v5248 = vld [vmem:[%s5245 + $0x8] sm:$0xf]
    %v5249 = vld [vmem:[%s5245 + $0xc] sm:$0xf]
    %v5250 = vld [vmem:[%s5245 + $0x10] sm:$0xf]
    %v5251 = vld [vmem:[%s5245 + $0x14] sm:$0xf]
    %v5252 = vld [vmem:[%s5245 + $0x18] sm:$0xf]
    %v5253 = vld [vmem:[%s5245 + $0x1c] sm:$0xf]
    %v5254 = vld [vmem:[%s5245 + $0x20] sm:$0xf]
    %v5255 = vld [vmem:[%s5245 + $0x24] sm:$0xf]
    %v5256 = vld [vmem:[%s5245 + $0x28] sm:$0xf]
    %v5257 = vld [vmem:[%s5245 + $0x2c] sm:$0xf]
    %v5258 = vld [vmem:[%s5245 + $0x30] sm:$0xf]
    %v5259 = vld [vmem:[%s5245 + $0x34] sm:$0xf]
    %v5260 = vld [vmem:[%s5245 + $0x38] sm:$0xf]
    %v5261 = vld [vmem:[%s5245 + $0x3c] sm:$0xf]
    %v5262 = vld [vmem:[%s5245 + $0x40] sm:$0xf]
    %v5263 = vld [vmem:[%s5245 + $0x44] sm:$0xf]
    %v5264 = vld [vmem:[%s5245 + $0x48] sm:$0xf]
    %v5265 = vld [vmem:[%s5245 + $0x4c] sm:$0xf]
    %v5266 = vld [vmem:[%s5245 + $0x50] sm:$0xf]
    %v5267 = vld [vmem:[%s5245 + $0x54] sm:$0xf]
    %v5268 = vld [vmem:[%s5245 + $0x58] sm:$0xf]
    %v5269 = vld [vmem:[%s5245 + $0x5c] sm:$0xf]
    %v5270 = vld [vmem:[%s5245 + $0x60] sm:$0xf]
    %v5271 = vld [vmem:[%s5245 + $0x64] sm:$0xf]
    %v5272 = vld [vmem:[%s5245 + $0x68] sm:$0xf]
    %v5273 = vld [vmem:[%s5245 + $0x6c] sm:$0xf]
    %v5274 = vld [vmem:[%s5245 + $0x70] sm:$0xf]
    %v5275 = vld [vmem:[%s5245 + $0x74] sm:$0xf]
    %v5276 = vld [vmem:[%s5245 + $0x78] sm:$0xf]
    %v5277 = vld [vmem:[%s5245 + $0x7c] sm:$0xf]
    %v5278 = vld [vmem:[%s5245 + $0x80] sm:$0xf]
    %v5279 = vld [vmem:[%s5245 + $0x84] sm:$0xf]
    %v5280 = vld [vmem:[%s5245 + $0x88] sm:$0xf]
    %v5281 = vld [vmem:[%s5245 + $0x8c] sm:$0xf]
    %v5282 = vld [vmem:[%s5245 + $0x90] sm:$0xf]
    %v5283 = vld [vmem:[%s5245 + $0x94] sm:$0xf]
    %v5284 = vld [vmem:[%s5245 + $0x98] sm:$0xf]
    %v5285 = vld [vmem:[%s5245 + $0x9c] sm:$0xf]
    %v5286 = vld [vmem:[%s5245 + $0xa0] sm:$0xf]
    %v5287 = vld [vmem:[%s5245 + $0xa4] sm:$0xf]
    %v5288 = vld [vmem:[%s5245 + $0xa8] sm:$0xf]
    %v5289 = vld [vmem:[%s5245 + $0xac] sm:$0xf]
    %v5290 = vld [vmem:[%s5245 + $0xb0] sm:$0xf]
    %v5291 = vld [vmem:[%s5245 + $0xb4] sm:$0xf]
    %v5292 = vld [vmem:[%s5245 + $0xb8] sm:$0xf]
    %v5293 = vld [vmem:[%s5245 + $0xbc] sm:$0xf]
    %v5294 = vld [vmem:[%s5245 + $0xc0] sm:$0xf]
    %v5295 = vld [vmem:[%s5245 + $0xc4] sm:$0xf]
    %v5296 = vld [vmem:[%s5245 + $0xc8] sm:$0xf]
    %v5297 = vld [vmem:[%s5245 + $0xcc] sm:$0xf]
    %v5298 = vld [vmem:[%s5245 + $0xd0] sm:$0xf]
    %v5299 = vld [vmem:[%s5245 + $0xd4] sm:$0xf]
    %v5300 = vld [vmem:[%s5245 + $0xd8] sm:$0xf]
    %v5301 = vld [vmem:[%s5245 + $0xdc] sm:$0xf]
    %v5304 = vunpack.c.l.b16 %v5243
    %v5305 = vunpack.c.h.b16 %v5243
    %v5306 = vunpack.c.l.b16 %v5244
    %v5307 = vunpack.c.h.b16 %v5244
    %v5308 = vpack.c.b16 %v5304, %v5304
    %v5309 = vpack.c.b16 %v5305, %v5305
    %v5310 = vpack.c.b16 %v5306, %v5306
    %v5311 = vpack.c.b16 %v5307, %v5307
    %v5371 = vunpack.c.l.b16 %v5246
    %v5372 = vunpack.c.l.b16 %v5247
    %v5373 = vunpack.c.l.b16 %v5248
    %v5374 = vunpack.c.l.b16 %v5249
    %v5375 = vunpack.c.l.b16 %v5250
    %v5376 = vunpack.c.l.b16 %v5251
    %v5377 = vunpack.c.l.b16 %v5252
    %v5378 = vunpack.c.l.b16 %v5253
    %v5379 = vunpack.c.l.b16 %v5254
    %v5380 = vunpack.c.l.b16 %v5255
    %v5381 = vunpack.c.l.b16 %v5256
    %v5382 = vunpack.c.l.b16 %v5257
    %v5383 = vunpack.c.l.b16 %v5258
    %v5384 = vunpack.c.l.b16 %v5259
    %v5385 = vunpack.c.l.b16 %v5260
    %v5386 = vunpack.c.l.b16 %v5261
    %v5387 = vunpack.c.l.b16 %v5262
    %v5388 = vunpack.c.l.b16 %v5263
    %v5389 = vunpack.c.l.b16 %v5264
    %v5390 = vunpack.c.l.b16 %v5265
    %v5391 = vunpack.c.l.b16 %v5266
    %v5392 = vunpack.c.l.b16 %v5267
    %v5393 = vunpack.c.l.b16 %v5268
    %v5394 = vunpack.c.l.b16 %v5269
    %v5395 = vunpack.c.l.b16 %v5270
    %v5396 = vunpack.c.l.b16 %v5271
    %v5397 = vunpack.c.l.b16 %v5272
    %v5398 = vunpack.c.l.b16 %v5273
    %v5399 = vunpack.c.l.b16 %v5274
    %v5400 = vunpack.c.l.b16 %v5275
    %v5401 = vunpack.c.l.b16 %v5276
    %v5402 = vunpack.c.l.b16 %v5277
    %v5403 = vunpack.c.l.b16 %v5278
    %v5404 = vunpack.c.l.b16 %v5279
    %v5405 = vunpack.c.l.b16 %v5280
    %v5406 = vunpack.c.l.b16 %v5281
    %v5407 = vunpack.c.l.b16 %v5282
    %v5408 = vunpack.c.l.b16 %v5283
    %v5409 = vunpack.c.l.b16 %v5284
    %v5410 = vunpack.c.l.b16 %v5285
    %v5411 = vunpack.c.l.b16 %v5286
    %v5412 = vunpack.c.l.b16 %v5287
    %v5413 = vunpack.c.l.b16 %v5288
    %v5414 = vunpack.c.l.b16 %v5289
    %v5415 = vunpack.c.l.b16 %v5290
    %v5416 = vunpack.c.l.b16 %v5291
    %v5417 = vunpack.c.l.b16 %v5292
    %v5418 = vunpack.c.l.b16 %v5293
    %v5419 = vunpack.c.l.b16 %v5294
    %v5420 = vunpack.c.l.b16 %v5295
    %v5421 = vunpack.c.l.b16 %v5296
    %v5422 = vunpack.c.l.b16 %v5297
    %v5423 = vunpack.c.l.b16 %v5298
    %v5424 = vunpack.c.l.b16 %v5299
    %v5425 = vunpack.c.l.b16 %v5300
    %v5426 = vunpack.c.l.b16 %v5301
    %v5427 = vpack.c.b16 %v5372, %v5371
    %v5428 = vpack.c.b16 %v5374, %v5373
    %v5429 = vpack.c.b16 %v5376, %v5375
    %v5430 = vpack.c.b16 %v5378, %v5377
    %v5431 = vpack.c.b16 %v5380, %v5379
    %v5432 = vpack.c.b16 %v5382, %v5381
    %v5433 = vpack.c.b16 %v5384, %v5383
    %v5434 = vpack.c.b16 %v5386, %v5385
    %v5435 = vpack.c.b16 %v5388, %v5387
    %v5436 = vpack.c.b16 %v5390, %v5389
    %v5437 = vpack.c.b16 %v5392, %v5391
    %v5438 = vpack.c.b16 %v5394, %v5393
    %v5439 = vpack.c.b16 %v5396, %v5395
    %v5440 = vpack.c.b16 %v5398, %v5397
    %v5441 = vpack.c.b16 %v5400, %v5399
    %v5442 = vpack.c.b16 %v5402, %v5401
    %v5443 = vpack.c.b16 %v5404, %v5403
    %v5444 = vpack.c.b16 %v5406, %v5405
    %v5445 = vpack.c.b16 %v5408, %v5407
    %v5446 = vpack.c.b16 %v5410, %v5409
    %v5447 = vpack.c.b16 %v5412, %v5411
    %v5448 = vpack.c.b16 %v5414, %v5413
    %v5449 = vpack.c.b16 %v5416, %v5415
    %v5450 = vpack.c.b16 %v5418, %v5417
    %v5451 = vpack.c.b16 %v5420, %v5419
    %v5452 = vpack.c.b16 %v5422, %v5421
    %v5453 = vpack.c.b16 %v5424, %v5423
    %v5454 = vpack.c.b16 %v5426, %v5425
    %v5484 = vsel %vm1216, %v5311, 0
    %5486 = vmatprep.subr.bf16.mxu0 0
    %5487 = vmatpush1.bf16.msra.mxu0 %v5427
    %5488 = vmatprep.subr.bf16.mxu0 0
    %5489 = vmatpush1.bf16.msra.mxu0 %v5428
    %5490 = vmatprep.subr.bf16.mxu0 0
    %5491 = vmatpush1.bf16.msra.mxu0 %v5429
    %5492 = vmatprep.subr.bf16.mxu0 0
    %5493 = vmatpush1.bf16.msra.mxu0 %v5430
    %5494 = vmatprep.subr.bf16.mxu0 0
    %5495 = vmatpush1.bf16.msra.mxu0 %v5431
    %5496 = vmatprep.subr.bf16.mxu0 0
    %5497 = vmatpush1.bf16.msra.mxu0 %v5432
    %5498 = vmatprep.subr.bf16.mxu0 0
    %5499 = vmatpush1.bf16.msra.mxu0 %v5433
    %5500 = vmatprep.subr.bf16.mxu0 0
    %5501 = vmatpush1.bf16.msra.mxu0 %v5434
    %5502 = vmatprep.subr.bf16.mxu0 0
    %5503 = vmatpush1.bf16.msra.mxu0 %v5435
    %5504 = vmatprep.subr.bf16.mxu0 0
    %5505 = vmatpush1.bf16.msra.mxu0 %v5436
    %5506 = vmatprep.subr.bf16.mxu0 0
    %5507 = vmatpush1.bf16.msra.mxu0 %v5437
    %5508 = vmatprep.subr.bf16.mxu0 0
    %5509 = vmatpush1.bf16.msra.mxu0 %v5438
    %5510 = vmatprep.subr.bf16.mxu0 0
    %5511 = vmatpush1.bf16.msra.mxu0 %v5439
    %5512 = vmatprep.subr.bf16.mxu0 0
    %5513 = vmatpush1.bf16.msra.mxu0 %v5440
    %5514 = vmatprep.subr.bf16.mxu0 0
    %5515 = vmatpush1.bf16.msra.mxu0 %v5441
    %5516 = vmatprep.subr.bf16.mxu0 0
    %5517 = vmatpush1.bf16.msra.mxu0 %v5442
    %5518 = vmatprep.mubr.bf16.mxu0 %v5309
    %5519 = vmatmul.mubr.bf16.gmra.mrb[0].mxu0 %v5308
    %v5520 = vpop.f32.mrb[0].mxu0
    %v5521 = vadd.f32 0.0, %v5520
    %v5522 = vpop.f32.mrb[0].mxu0
    %v5523 = vpop.f32.mrb[0].mxu0
    %v5524 = vpop.f32.mrb[0].mxu0
    %5525 = vdwg.mxu0
    %5526 = vmatprep.subr.bf16.mxu0 0
    %5527 = vmatpush1.bf16.msra.mxu0 %v5443
    %5528 = vmatprep.subr.bf16.mxu0 0
    %5529 = vmatpush1.bf16.msra.mxu0 %v5444
    %5530 = vmatprep.subr.bf16.mxu0 0
    %5531 = vmatpush1.bf16.msra.mxu0 %v5445
    %5532 = vmatprep.subr.bf16.mxu0 0
    %5533 = vmatpush1.bf16.msra.mxu0 %v5446
    %5534 = vmatprep.subr.bf16.mxu0 0
    %5535 = vmatpush1.bf16.msra.mxu0 %v5447
    %5536 = vmatprep.subr.bf16.mxu0 0
    %5537 = vmatpush1.bf16.msra.mxu0 %v5448
    %5538 = vmatprep.subr.bf16.mxu0 0
    %5539 = vmatpush1.bf16.msra.mxu0 %v5449
    %5540 = vmatprep.subr.bf16.mxu0 0
    %5541 = vmatpush1.bf16.msra.mxu0 %v5450
    %5542 = vmatprep.subr.bf16.mxu0 0
    %5543 = vmatpush1.bf16.msra.mxu0 %v5451
    %5544 = vmatprep.subr.bf16.mxu0 0
    %5545 = vmatpush1.bf16.msra.mxu0 %v5452
    %5546 = vmatprep.subr.bf16.mxu0 0
    %5547 = vmatpush1.bf16.msra.mxu0 %v5453
    %5548 = vmatprep.subr.bf16.mxu0 0
    %5549 = vmatpush1.bf16.msra.mxu0 %v5454
    %5550 = vmatprep.subr.bf16.mxu0 0
    %5551 = vmatpush1.bf16.msra.mxu0 0
    %5552 = vmatprep.subr.bf16.mxu0 0
    %5553 = vmatpush1.bf16.msra.mxu0 0
    %5554 = vmatprep.subr.bf16.mxu0 0
    %5555 = vmatpush1.bf16.msra.mxu0 0
    %5556 = vmatprep.subr.bf16.mxu0 0
    %5557 = vmatpush1.bf16.msra.mxu0 0
    %5558 = vmatprep.mubr.bf16.mxu0 %v5484
    %5559 = vmatmul.mubr.bf16.gmra.mrb[0].mxu0 %v5310
    %v5560 = vpop.f32.mrb[0].mxu0
    %v5561 = vadd.f32 %v5521, %v5560
    %v5562 = vpop.f32.mrb[0].mxu0
    %v5563 = vpop.f32.mrb[0].mxu0
    %v5564 = vpop.f32.mrb[0].mxu0
    %5565 = vdwg.mxu0
    %v5566 = vadd.f32 %v5242, %v5561
    %v5567 = vld [vmem:[#allocation3 + $0x30] sm:$0x22]
    %v5568 = vld [vmem:[#allocation3 + $0x38] sm:$0x22]
    %s5569 = scalar_lea.vmem [#allocation9], 2912
    %v5570 = vld [vmem:[%s5569] sm:$0xf]
    %v5571 = vld [vmem:[%s5569 + $0x4] sm:$0xf]
    %v5572 = vld [vmem:[%s5569 + $0x8] sm:$0xf]
    %v5573 = vld [vmem:[%s5569 + $0xc] sm:$0xf]
    %v5574 = vld [vmem:[%s5569 + $0x10] sm:$0xf]
    %v5575 = vld [vmem:[%s5569 + $0x14] sm:$0xf]
    %v5576 = vld [vmem:[%s5569 + $0x18] sm:$0xf]
    %v5577 = vld [vmem:[%s5569 + $0x1c] sm:$0xf]
    %v5578 = vld [vmem:[%s5569 + $0x20] sm:$0xf]
    %v5579 = vld [vmem:[%s5569 + $0x24] sm:$0xf]
    %v5580 = vld [vmem:[%s5569 + $0x28] sm:$0xf]
    %v5581 = vld [vmem:[%s5569 + $0x2c] sm:$0xf]
    %v5582 = vld [vmem:[%s5569 + $0x30] sm:$0xf]
    %v5583 = vld [vmem:[%s5569 + $0x34] sm:$0xf]
    %v5584 = vld [vmem:[%s5569 + $0x38] sm:$0xf]
    %v5585 = vld [vmem:[%s5569 + $0x3c] sm:$0xf]
    %v5586 = vld [vmem:[%s5569 + $0x40] sm:$0xf]
    %v5587 = vld [vmem:[%s5569 + $0x44] sm:$0xf]
    %v5588 = vld [vmem:[%s5569 + $0x48] sm:$0xf]
    %v5589 = vld [vmem:[%s5569 + $0x4c] sm:$0xf]
    %v5590 = vld [vmem:[%s5569 + $0x50] sm:$0xf]
    %v5591 = vld [vmem:[%s5569 + $0x54] sm:$0xf]
    %v5592 = vld [vmem:[%s5569 + $0x58] sm:$0xf]
    %v5593 = vld [vmem:[%s5569 + $0x5c] sm:$0xf]
    %v5594 = vld [vmem:[%s5569 + $0x60] sm:$0xf]
    %v5595 = vld [vmem:[%s5569 + $0x64] sm:$0xf]
    %v5596 = vld [vmem:[%s5569 + $0x68] sm:$0xf]
    %v5597 = vld [vmem:[%s5569 + $0x6c] sm:$0xf]
    %v5598 = vld [vmem:[%s5569 + $0x70] sm:$0xf]
    %v5599 = vld [vmem:[%s5569 + $0x74] sm:$0xf]
    %v5600 = vld [vmem:[%s5569 + $0x78] sm:$0xf]
    %v5601 = vld [vmem:[%s5569 + $0x7c] sm:$0xf]
    %v5602 = vld [vmem:[%s5569 + $0x80] sm:$0xf]
    %v5603 = vld [vmem:[%s5569 + $0x84] sm:$0xf]
    %v5604 = vld [vmem:[%s5569 + $0x88] sm:$0xf]
    %v5605 = vld [vmem:[%s5569 + $0x8c] sm:$0xf]
    %v5606 = vld [vmem:[%s5569 + $0x90] sm:$0xf]
    %v5607 = vld [vmem:[%s5569 + $0x94] sm:$0xf]
    %v5608 = vld [vmem:[%s5569 + $0x98] sm:$0xf]
    %v5609 = vld [vmem:[%s5569 + $0x9c] sm:$0xf]
    %v5610 = vld [vmem:[%s5569 + $0xa0] sm:$0xf]
    %v5611 = vld [vmem:[%s5569 + $0xa4] sm:$0xf]
    %v5612 = vld [vmem:[%s5569 + $0xa8] sm:$0xf]
    %v5613 = vld [vmem:[%s5569 + $0xac] sm:$0xf]
    %v5614 = vld [vmem:[%s5569 + $0xb0] sm:$0xf]
    %v5615 = vld [vmem:[%s5569 + $0xb4] sm:$0xf]
    %v5616 = vld [vmem:[%s5569 + $0xb8] sm:$0xf]
    %v5617 = vld [vmem:[%s5569 + $0xbc] sm:$0xf]
    %v5618 = vld [vmem:[%s5569 + $0xc0] sm:$0xf]
    %v5619 = vld [vmem:[%s5569 + $0xc4] sm:$0xf]
    %v5620 = vld [vmem:[%s5569 + $0xc8] sm:$0xf]
    %v5621 = vld [vmem:[%s5569 + $0xcc] sm:$0xf]
    %v5622 = vld [vmem:[%s5569 + $0xd0] sm:$0xf]
    %v5623 = vld [vmem:[%s5569 + $0xd4] sm:$0xf]
    %v5624 = vld [vmem:[%s5569 + $0xd8] sm:$0xf]
    %v5625 = vld [vmem:[%s5569 + $0xdc] sm:$0xf]
    %v5628 = vunpack.c.l.b16 %v5567
    %v5629 = vunpack.c.h.b16 %v5567
    %v5630 = vunpack.c.l.b16 %v5568
    %v5631 = vunpack.c.h.b16 %v5568
    %v5632 = vpack.c.b16 %v5628, %v5628
    %v5633 = vpack.c.b16 %v5629, %v5629
    %v5634 = vpack.c.b16 %v5630, %v5630
    %v5635 = vpack.c.b16 %v5631, %v5631
    %v5636 = vrot.slane %v5632, 1
    %v5637 = vrot.slane %v5633, 1
    %v5638 = vrot.slane %v5634, 1
    %v5639 = vrot.slane %v5635, 1
    %v5699 = vunpack.c.l.b16 %v5570
    %v5700 = vunpack.c.l.b16 %v5571
    %v5701 = vunpack.c.l.b16 %v5572
    %v5702 = vunpack.c.l.b16 %v5573
    %v5703 = vunpack.c.l.b16 %v5574
    %v5704 = vunpack.c.l.b16 %v5575
    %v5705 = vunpack.c.l.b16 %v5576
    %v5706 = vunpack.c.l.b16 %v5577
    %v5707 = vunpack.c.l.b16 %v5578
    %v5708 = vunpack.c.l.b16 %v5579
    %v5709 = vunpack.c.l.b16 %v5580
    %v5710 = vunpack.c.l.b16 %v5581
    %v5711 = vunpack.c.l.b16 %v5582
    %v5712 = vunpack.c.l.b16 %v5583
    %v5713 = vunpack.c.l.b16 %v5584
    %v5714 = vunpack.c.l.b16 %v5585
    %v5715 = vunpack.c.l.b16 %v5586
    %v5716 = vunpack.c.l.b16 %v5587
    %v5717 = vunpack.c.l.b16 %v5588
    %v5718 = vunpack.c.l.b16 %v5589
    %v5719 = vunpack.c.l.b16 %v5590
    %v5720 = vunpack.c.l.b16 %v5591
    %v5721 = vunpack.c.l.b16 %v5592
    %v5722 = vunpack.c.l.b16 %v5593
    %v5723 = vunpack.c.l.b16 %v5594
    %v5724 = vunpack.c.l.b16 %v5595
    %v5725 = vunpack.c.l.b16 %v5596
    %v5726 = vunpack.c.l.b16 %v5597
    %v5727 = vunpack.c.l.b16 %v5598
    %v5728 = vunpack.c.l.b16 %v5599
    %v5729 = vunpack.c.l.b16 %v5600
    %v5730 = vunpack.c.l.b16 %v5601
    %v5731 = vunpack.c.l.b16 %v5602
    %v5732 = vunpack.c.l.b16 %v5603
    %v5733 = vunpack.c.l.b16 %v5604
    %v5734 = vunpack.c.l.b16 %v5605
    %v5735 = vunpack.c.l.b16 %v5606
    %v5736 = vunpack.c.l.b16 %v5607
    %v5737 = vunpack.c.l.b16 %v5608
    %v5738 = vunpack.c.l.b16 %v5609
    %v5739 = vunpack.c.l.b16 %v5610
    %v5740 = vunpack.c.l.b16 %v5611
    %v5741 = vunpack.c.l.b16 %v5612
    %v5742 = vunpack.c.l.b16 %v5613
    %v5743 = vunpack.c.l.b16 %v5614
    %v5744 = vunpack.c.l.b16 %v5615
    %v5745 = vunpack.c.l.b16 %v5616
    %v5746 = vunpack.c.l.b16 %v5617
    %v5747 = vunpack.c.l.b16 %v5618
    %v5748 = vunpack.c.l.b16 %v5619
    %v5749 = vunpack.c.l.b16 %v5620
    %v5750 = vunpack.c.l.b16 %v5621
    %v5751 = vunpack.c.l.b16 %v5622
    %v5752 = vunpack.c.l.b16 %v5623
    %v5753 = vunpack.c.l.b16 %v5624
    %v5754 = vunpack.c.l.b16 %v5625
    %v5755 = vpack.c.b16 %v5700, %v5699
    %v5756 = vpack.c.b16 %v5702, %v5701
    %v5757 = vpack.c.b16 %v5704, %v5703
    %v5758 = vpack.c.b16 %v5706, %v5705
    %v5759 = vpack.c.b16 %v5708, %v5707
    %v5760 = vpack.c.b16 %v5710, %v5709
    %v5761 = vpack.c.b16 %v5712, %v5711
    %v5762 = vpack.c.b16 %v5714, %v5713
    %v5763 = vpack.c.b16 %v5716, %v5715
    %v5764 = vpack.c.b16 %v5718, %v5717
    %v5765 = vpack.c.b16 %v5720, %v5719
    %v5766 = vpack.c.b16 %v5722, %v5721
    %v5767 = vpack.c.b16 %v5724, %v5723
    %v5768 = vpack.c.b16 %v5726, %v5725
    %v5769 = vpack.c.b16 %v5728, %v5727
    %v5770 = vpack.c.b16 %v5730, %v5729
    %v5771 = vpack.c.b16 %v5732, %v5731
    %v5772 = vpack.c.b16 %v5734, %v5733
    %v5773 = vpack.c.b16 %v5736, %v5735
    %v5774 = vpack.c.b16 %v5738, %v5737
    %v5775 = vpack.c.b16 %v5740, %v5739
    %v5776 = vpack.c.b16 %v5742, %v5741
    %v5777 = vpack.c.b16 %v5744, %v5743
    %v5778 = vpack.c.b16 %v5746, %v5745
    %v5779 = vpack.c.b16 %v5748, %v5747
    %v5780 = vpack.c.b16 %v5750, %v5749
    %v5781 = vpack.c.b16 %v5752, %v5751
    %v5782 = vpack.c.b16 %v5754, %v5753
    %v5812 = vsel %vm1216, %v5639, 0
    %5814 = vmatprep.subr.bf16.mxu0 0
    %5815 = vmatpush1.bf16.msra.mxu0 %v5755
    %5816 = vmatprep.subr.bf16.mxu0 0
    %5817 = vmatpush1.bf16.msra.mxu0 %v5756
    %5818 = vmatprep.subr.bf16.mxu0 0
    %5819 = vmatpush1.bf16.msra.mxu0 %v5757
    %5820 = vmatprep.subr.bf16.mxu0 0
    %5821 = vmatpush1.bf16.msra.mxu0 %v5758
    %5822 = vmatprep.subr.bf16.mxu0 0
    %5823 = vmatpush1.bf16.msra.mxu0 %v5759
    %5824 = vmatprep.subr.bf16.mxu0 0
    %5825 = vmatpush1.bf16.msra.mxu0 %v5760
    %5826 = vmatprep.subr.bf16.mxu0 0
    %5827 = vmatpush1.bf16.msra.mxu0 %v5761
    %5828 = vmatprep.subr.bf16.mxu0 0
    %5829 = vmatpush1.bf16.msra.mxu0 %v5762
    %5830 = vmatprep.subr.bf16.mxu0 0
    %5831 = vmatpush1.bf16.msra.mxu0 %v5763
    %5832 = vmatprep.subr.bf16.mxu0 0
    %5833 = vmatpush1.bf16.msra.mxu0 %v5764
    %5834 = vmatprep.subr.bf16.mxu0 0
    %5835 = vmatpush1.bf16.msra.mxu0 %v5765
    %5836 = vmatprep.subr.bf16.mxu0 0
    %5837 = vmatpush1.bf16.msra.mxu0 %v5766
    %5838 = vmatprep.subr.bf16.mxu0 0
    %5839 = vmatpush1.bf16.msra.mxu0 %v5767
    %5840 = vmatprep.subr.bf16.mxu0 0
    %5841 = vmatpush1.bf16.msra.mxu0 %v5768
    %5842 = vmatprep.subr.bf16.mxu0 0
    %5843 = vmatpush1.bf16.msra.mxu0 %v5769
    %5844 = vmatprep.subr.bf16.mxu0 0
    %5845 = vmatpush1.bf16.msra.mxu0 %v5770
    %5846 = vmatprep.mubr.bf16.mxu0 %v5637
    %5847 = vmatmul.mubr.bf16.gmra.mrb[0].mxu0 %v5636
    %v5848 = vpop.f32.mrb[0].mxu0
    %v5849 = vadd.f32 0.0, %v5848
    %v5850 = vpop.f32.mrb[0].mxu0
    %v5851 = vpop.f32.mrb[0].mxu0
    %v5852 = vpop.f32.mrb[0].mxu0
    %5853 = vdwg.mxu0
    %5854 = vmatprep.subr.bf16.mxu0 0
    %5855 = vmatpush1.bf16.msra.mxu0 %v5771
    %5856 = vmatprep.subr.bf16.mxu0 0
    %5857 = vmatpush1.bf16.msra.mxu0 %v5772
    %5858 = vmatprep.subr.bf16.mxu0 0
    %5859 = vmatpush1.bf16.msra.mxu0 %v5773
    %5860 = vmatprep.subr.bf16.mxu0 0
    %5861 = vmatpush1.bf16.msra.mxu0 %v5774
    %5862 = vmatprep.subr.bf16.mxu0 0
    %5863 = vmatpush1.bf16.msra.mxu0 %v5775
    %5864 = vmatprep.subr.bf16.mxu0 0
    %5865 = vmatpush1.bf16.msra.mxu0 %v5776
    %5866 = vmatprep.subr.bf16.mxu0 0
    %5867 = vmatpush1.bf16.msra.mxu0 %v5777
    %5868 = vmatprep.subr.bf16.mxu0 0
    %5869 = vmatpush1.bf16.msra.mxu0 %v5778
    %5870 = vmatprep.subr.bf16.mxu0 0
    %5871 = vmatpush1.bf16.msra.mxu0 %v5779
    %5872 = vmatprep.subr.bf16.mxu0 0
    %5873 = vmatpush1.bf16.msra.mxu0 %v5780
    %5874 = vmatprep.subr.bf16.mxu0 0
    %5875 = vmatpush1.bf16.msra.mxu0 %v5781
    %5876 = vmatprep.subr.bf16.mxu0 0
    %5877 = vmatpush1.bf16.msra.mxu0 %v5782
    %5878 = vmatprep.subr.bf16.mxu0 0
    %5879 = vmatpush1.bf16.msra.mxu0 0
    %5880 = vmatprep.subr.bf16.mxu0 0
    %5881 = vmatpush1.bf16.msra.mxu0 0
    %5882 = vmatprep.subr.bf16.mxu0 0
    %5883 = vmatpush1.bf16.msra.mxu0 0
    %5884 = vmatprep.subr.bf16.mxu0 0
    %5885 = vmatpush1.bf16.msra.mxu0 0
    %5886 = vmatprep.mubr.bf16.mxu0 %v5812
    %5887 = vmatmul.mubr.bf16.gmra.mrb[0].mxu0 %v5638
    %v5888 = vpop.f32.mrb[0].mxu0
    %v5889 = vadd.f32 %v5849, %v5888
    %v5890 = vpop.f32.mrb[0].mxu0
    %v5891 = vpop.f32.mrb[0].mxu0
    %v5892 = vpop.f32.mrb[0].mxu0
    %5893 = vdwg.mxu0
    %v5894 = vadd.f32 %v5566, %v5889
    %v5895 = vld [vmem:[#allocation10] sm:$0x1]
    %v5897 = vlaneseq
    %v5898 = vshrl.u32 %v5897, 7
    %v5899 = vsub.s32 0, %v5898
    %v5900 = vrot.slane %v5895, %v5899
    %v5902 = vadd.f32 %v5894, %v5900
    %5903 = vst [vmem:[#allocation12] sm:$0x3] %v5902
    // Predicated region
    $region38: #{cnn_forward.1} parent=1 // pred_check
      _
    $region39: #{cnn_forward.1} parent=1 // pred_check_branch
      %5905 = sbr.rel (0) target = $region41
    $region40: #{cnn_forward.1} parent=1 // pred_region
      %s5907 = ssub.s32 32, 32
      %5908 = vsyncadd [#allocation6], %s5907
      %s5910 = sshll.u32 [#allocation12], 4
      %s5911 = int_to_ptr.vmem [resolvable:$true] %s5910
      %5913 = dma.vmem_to_hbm [thread:$0]  %s5911, 32, %s5, [#allocation6]
    $region41: #{cnn_forward.1} parent=1 // pred_fallthru
      _
    // Predicated region
    $region42: #{cnn_forward.1} parent=1 // pred_check
      _
    $region43: #{cnn_forward.1} parent=1 // pred_check_branch
      %5915 = sbr.rel (0) target = $region45
    $region44: #{cnn_forward.1} parent=1 // pred_region
      %5916 = dma.done [#allocation6], 32
    $region45: #{cnn_forward.1} parent=1 // pred_fallthru
      _
    %5917 = vsyncpa [#allocation5], 1
    %5918 = vsyncpa [#allocation8], 1
    %5919 = vsyncpa [#allocation11], 1
    %5920 = vsyncpa [#allocation6], 1

</llo_original>
